<compile_context>
chip_gen: v7x
topology: tpu7x:2x2x1
jax: 0.10.0
libtpu: 0.0.40
codegen_flags: <defaults>
</compile_context>

<pallas_src>
import functools

import jax
import jax.numpy as jnp
from jax import lax
from jax.experimental import pallas as pl
from jax.experimental.pallas import tpu as pltpu

EPS = 1e-5


# ------------------------------------------------------------------ kernels
def _conv3x3_bn_stats_kernel(x_ref, scale_ref, shift_ref, w_ref,
                             y_ref, sum_ref, ssq_ref, acc_ref, *, fuse_bn_relu):
    """[optional prev-BN affine + ReLU] -> 3x3 conv -> per-tile BN partial stats.

    x_ref:     (Nb, H, W, Cin)  bf16 activation tile
    scale_ref: (1, Cin) f32     folded BN scale of previous conv (unused if not fused)
    shift_ref: (1, Cin) f32     folded BN shift of previous conv (unused if not fused)
    w_ref:     (3, 3*Cin, Cout) bf16 weights packed as [ky][kx*Cin + ci][co]
    y_ref:     (Nb, H, W, Cout) bf16 conv output (bf16 inter-phase activation)
    sum_ref:   (1, 1, Cout) f32 per-tile channel sum      (for global BN stats)
    ssq_ref:   (1, 1, Cout) f32 per-tile channel sum(x^2) (for global BN stats)
    acc_ref:   (Nb*H*W, Cout)   f32 VMEM scratch accumulator
    """
    Nb, H, W, Cin = x_ref.shape
    Cout = y_ref.shape[-1]
    HW = H * W

    if fuse_bn_relu:
        xf = x_ref[...].astype(jnp.float32)
        xf = xf * scale_ref[...].reshape(1, 1, 1, Cin) \
            + shift_ref[...].reshape(1, 1, 1, Cin)
        xb = jnp.maximum(xf, 0.0).astype(jnp.bfloat16)      # bf16 operand for the MXU
    else:
        xb = x_ref[...]                                     # already bf16

    # Pack the 3 dx taps along channels: xw[..., x, kx*Cin + c] = in[..., x+kx-1, c]
    # (zero-padded at the W borders).  Column shifts never cross image boundaries.
    zcol = jnp.zeros((Nb, H, 1, Cin), jnp.bfloat16)
    xw = jnp.concatenate([
        jnp.concatenate([zcol, xb[:, :, :W - 1, :]], axis=2),   # kx=0 -> column x-1
        xb,                                                     # kx=1 -> column x
        jnp.concatenate([xb[:, :, 1:, :], zcol], axis=2),       # kx=2 -> column x+1
    ], axis=-1)                                                 # (Nb, H, W, 3*Cin)

    w_up, w_mid, w_dn = w_ref[0], w_ref[1], w_ref[2]            # (3*Cin, Cout) each

    # Row (ky) taps accumulate into row-offset slices of the f32 scratch instead of
    # materializing zero-row-shifted copies of xw.  3 matmuls per image, K = 3*Cin.
    # TODO(synk): for deep compute-bound layers on v6e/v7x, pack K to >=256
    # (9-tap / Cin-blocked weights) to fill the 256-wide MXU contraction.
    for n in range(Nb):                                         # static, small Nb
        flat = xw[n].reshape(HW, 3 * Cin)
        base = n * HW
        # ky=1: same row; also initializes this image's slice of the accumulator.
        acc_ref[pl.ds(base, HW), :] = jnp.dot(
            flat, w_mid, preferred_element_type=jnp.float32)
        # ky=0: output row y reads input row y-1 (output rows [1, H)).
        acc_ref[pl.ds(base + W, (H - 1) * W), :] += jnp.dot(
            flat[:(H - 1) * W], w_up, preferred_element_type=jnp.float32)
        # ky=2: output row y reads input row y+1 (output rows [0, H-1)).
        acc_ref[pl.ds(base, (H - 1) * W), :] += jnp.dot(
            flat[W:], w_dn, preferred_element_type=jnp.float32)

    acc = acc_ref[...]                                          # (Nb*H*W, Cout) f32
    y_ref[...] = acc.reshape(Nb, H, W, Cout).astype(y_ref.dtype)
    # Single-pass per-tile BN statistics in f32 (globally reduced in the wrapper;
    # training-mode BN needs GLOBAL (N,H,W) stats so per-tile normalization is wrong).
    sum_ref[...] = jnp.sum(acc, axis=0).reshape(1, 1, Cout)
    ssq_ref[...] = jnp.sum(acc * acc, axis=0).reshape(1, 1, Cout)


def _bn_residual_relu_kernel(y_ref, x_ref, scale_ref, shift_ref, o_ref):
    """out = relu(scale * y2 + shift + identity) on a lane-dense flattened block."""
    y = y_ref[...].astype(jnp.float32)
    x = x_ref[...].astype(jnp.float32)
    o_ref[...] = jnp.maximum(y * scale_ref[...] + shift_ref[...] + x, 0.0)


# ------------------------------------------------------------------ sizing helpers
def _vmem_limit_bytes():
    cap = 64 * 1024 * 1024                       # conservative default (v7x physical)
    try:
        cap = int(pltpu.get_tpu_info().vmem_capacity_bytes)
    except Exception:
        pass
    # ~48 MiB on v7x (64 MiB physical), up to 96 MiB on v5e/v6e (128 MiB physical).
    return int(min(max(cap * 3 // 4, 32 * 1024 * 1024), 96 * 1024 * 1024))


def _pick_batch_block(n, h, w, c, vmem_budget):
    # Rough per-image VMEM footprint of the conv kernel (bf16 in/out double-buffered,
    # bf16 xw temporary, f32 accumulator): ~18 * H * W * C bytes.
    per_image = max(1, 18 * h * w * c)
    nb = max(1, min(n, vmem_budget // (3 * per_image)))
    nb = min(nb, max(1, n // 8))                 # keep several grid steps when possible
    while n % nb:                                # largest divisor of N that fits
        nb -= 1
    return nb


def _pick_row_block(rows, target):
    if rows <= target:
        return rows
    for b in range(min(target, rows), 7, -1):    # divisor of rows, multiple of 8
        if rows % b == 0 and b % 8 == 0:
            return b
    return rows


# ------------------------------------------------------------------ forward
def basic_block_forward(x_nchw, params):
    """x_nchw: (N, C, H, W) f32.  params: (w1, b1, g1, be1, w2, b2, g2, be2).

    Conv biases b1/b2 are accepted but never added: bias followed by training-mode
    BatchNorm cancels exactly in the folded (scale, shift), so the output is
    mathematically identical and the bias add is dead work.
    """
    w1, _b1, g1, be1, w2, _b2, g2, be2 = params
    N, C, H, W = x_nchw.shape
    Cout = w1.shape[0]
    assert C == Cout, "stride=1 / downsample=None requires in_channels == out_channels"

    # Single bf16 NHWC copy; the residual path reads it too (cast in-kernel).
    # TODO(synk): in a full NHWC model these boundary transposes disappear.
    x_bf16 = jnp.transpose(x_nchw, (0, 2, 3, 1)).astype(jnp.bfloat16)

    def pack_w(w):  # OIHW -> (ky, kx*Cin + ci, Cout), bf16 for the MXU
        return jnp.transpose(w, (2, 3, 1, 0)).reshape(3, 3 * C, Cout).astype(jnp.bfloat16)

    w1p, w2p = pack_w(w1), pack_w(w2)

    nhw = N * H * W
    vmem_limit = _vmem_limit_bytes()
    nb = _pick_batch_block(N, H, W, C, vmem_limit)
    num_tiles = N // nb

    cparams = pltpu.CompilerParams(
        dimension_semantics=("parallel",),       # shard the grid across TCs (v7x)
        vmem_limit_bytes=vmem_limit)

    tile_spec = pl.BlockSpec((nb, H, W, C), lambda t: (t, 0, 0, 0))
    chan_spec = pl.BlockSpec((1, C), lambda t: (0, 0))
    w_spec = pl.BlockSpec((3, 3 * C, C), lambda t: (0, 0, 0))
    stat_spec = pl.BlockSpec((1, 1, C), lambda t: (t, 0, 0))

    def conv_call(xin, scale, shift, wp, fuse):
        kernel = functools.partial(_conv3x3_bn_stats_kernel, fuse_bn_relu=fuse)
        ce = pl.CostEstimate(
            flops=2 * 9 * nhw * C * C,
            transcendentals=0,
            bytes_accessed=int(2 * nhw * C       # bf16 activation in
                               + 2 * nhw * C     # bf16 activation out
                               + wp.size * 2 + 8 * num_tiles * C))
        return pl.pallas_call(
            kernel,
            grid=(num_tiles,),
            in_specs=[tile_spec, chan_spec, chan_spec, w_spec],
            out_specs=[tile_spec, stat_spec, stat_spec],
            out_shape=[jax.ShapeDtypeStruct((N, H, W, C), jnp.bfloat16),
                       jax.ShapeDtypeStruct((num_tiles, 1, C), jnp.float32),
                       jax.ShapeDtypeStruct((num_tiles, 1, C), jnp.float32)],
            scratch_shapes=[pltpu.VMEM((nb * H * W, C), jnp.float32)],
            compiler_params=cparams,
            cost_estimate=ce,
        )(xin, scale, shift, wp)

    def bn_fold(sum_tc, ssq_tc, gamma, beta):
        # Global training-mode BN stats (biased variance), folded into a per-channel
        # affine.  (Bias-free conv keeps |mean| small -> less E[x^2]-E[x]^2 cancel.)
        s = jnp.sum(sum_tc, axis=0).reshape(C)
        sq = jnp.sum(ssq_tc, axis=0).reshape(C)
        mean = s / nhw
        var = sq / nhw - mean * mean
        scale = gamma.astype(jnp.float32) * lax.rsqrt(var + EPS)
        shift = beta.astype(jnp.float32) - mean * scale
        return scale.reshape(1, C), shift.reshape(1, C)

    ones = jnp.ones((1, C), jnp.float32)
    zeros = jnp.zeros((1, C), jnp.float32)

    # Phase 1: conv1 (+ partial BN1 stats).
    y1, s1, q1 = conv_call(x_bf16, ones, zeros, w1p, fuse=False)
    scale1, shift1 = bn_fold(s1, q1, g1, be1)

    # Phase 2: bn1-affine + relu + conv2 (+ partial BN2 stats).
    y2, s2, q2 = conv_call(y1, scale1, shift1, w2p, fuse=True)
    scale2, shift2 = bn_fold(s2, q2, g2, be2)

    # Phase 3: bn2-affine + residual add + relu on a lane-dense flattened view.
    total = nhw * C
    if 128 % C == 0 and total % 128 == 0:
        lanes, reps = 128, 128 // C              # lane-dense (rows, 128) layout
    else:
        lanes, reps = C, 1                       # fallback: channel-last layout
    rows = total // lanes
    rb = _pick_row_block(rows, 2048)
    scale_row = jnp.tile(scale2.reshape(C), reps).reshape(1, lanes)
    shift_row = jnp.tile(shift2.reshape(C), reps).reshape(1, lanes)

    row_spec = pl.BlockSpec((rb, lanes), lambda r: (r, 0))
    vec_spec = pl.BlockSpec((1, lanes), lambda r: (0, 0))
    out_flat = pl.pallas_call(
        _bn_residual_relu_kernel,
        grid=(rows // rb,),
        in_specs=[row_spec, row_spec, vec_spec, vec_spec],
        out_specs=row_spec,
        out_shape=jax.ShapeDtypeStruct((rows, lanes), jnp.float32),
        compiler_params=cparams,
    )(y2.reshape(rows, lanes), x_bf16.reshape(rows, lanes), scale_row, shift_row)

    return jnp.transpose(out_flat.reshape(N, H, W, C), (0, 3, 1, 2))  # back to NCHW


# ------------------------------------------------------------------ reference
def basic_block_reference(x, params):
    """Pure-JAX f32 reference matching the PyTorch forward (training-mode BN)."""
    w1, b1, g1, be1, w2, b2, g2, be2 = params

    def conv(x, w, b):
        y = lax.conv_general_dilated(
            x, w, window_strides=(1, 1), padding=((1, 1), (1, 1)),
            dimension_numbers=('NCHW', 'OIHW', 'NCHW'))
        return y + b.reshape(1, -1, 1, 1)

    def bn(x, g, be):
        mean = jnp.mean(x, axis=(0, 2, 3), keepdims=True)
        var = jnp.mean((x - mean) ** 2, axis=(0, 2, 3), keepdims=True)
        return (x - mean) * lax.rsqrt(var + EPS) * g.reshape(1, -1, 1, 1) \
            + be.reshape(1, -1, 1, 1)

    out = jnp.maximum(bn(conv(x, w1, b1), g1, be1), 0.0)
    out = bn(conv(out, w2, b2), g2, be2)
    return jnp.maximum(out + x, 0.0)


if __name__ == "__main__":
    N, C, H, W = 2, 8, 16, 16   # in_channels == out_channels, stride=1
    key = jax.random.PRNGKey(0)
    kx, kw1, kb1, kw2, kb2 = jax.random.split(key, 5)

    x = jax.random.normal(kx, (N, C, H, W), dtype=jnp.float32)

    # Deterministic synthetic parameters (shapes from BasicBlock.__init__).
    w1 = jax.random.normal(kw1, (C, C, 3, 3), dtype=jnp.float32) * 0.1
    b1 = jax.random.normal(kb1, (C,), dtype=jnp.float32) * 0.1
    g1 = jnp.ones((C,), jnp.float32)      # BatchNorm2d weight init
    be1 = jnp.zeros((C,), jnp.float32)    # BatchNorm2d bias init
    w2 = jax.random.normal(kw2, (C, C, 3, 3), dtype=jnp.float32) * 0.1
    b2 = jax.random.normal(kb2, (C,), dtype=jnp.float32) * 0.1
    g2 = jnp.ones((C,), jnp.float32)
    be2 = jnp.zeros((C,), jnp.float32)
    params = (w1, b1, g1, be1, w2, b2, g2, be2)

    out = jax.block_until_ready(jax.jit(basic_block_forward)(x, params))
    ref = jax.block_until_ready(basic_block_reference(x, params))

    assert out.shape == (N, C, H, W) and out.dtype == jnp.float32
    max_diff = float(jnp.max(jnp.abs(out - ref)))
    # Tolerance accounts for bf16 MXU operands + bf16 inter-phase activations / residual
    # (f32 accumulation and f32 BN statistics) vs the pure f32 reference.
    assert jnp.allclose(out, ref, rtol=2e-2, atol=5e-2), f"max abs diff {max_diff}"
    print("KERNEL_OK")
</pallas_src>

<mosaic_0001>
module attributes {stable_mosaic.version = 11 : i64} {
  func.func @_conv3x3_bn_stats_kernel(%arg0: i32, %arg1: memref<1x16x16x8xbf16, #tpu.memory_space<vmem>>, %arg2: memref<1x8xf32, #tpu.memory_space<vmem>>, %arg3: memref<1x8xf32, #tpu.memory_space<vmem>>, %arg4: memref<3x24x8xbf16, #tpu.memory_space<vmem>>, %arg5: memref<1x16x16x8xbf16, #tpu.memory_space<vmem>>, %arg6: memref<1x1x8xf32, #tpu.memory_space<vmem>>, %arg7: memref<1x1x8xf32, #tpu.memory_space<vmem>>, %arg8: memref<256x8xf32, #tpu.memory_space<vmem>>) attributes {dimension_semantics = [#tpu.dimension_semantics<parallel>], iteration_bounds = array<i64: 2>, scalar_prefetch = 0 : i64, scratch_operands = 1 : i64, tpu.core_type = #tpu.core_type<tc>, window_params = [{transform_indices = @transform_0, window_bounds = array<i64: 1, 16, 16, 8>}, {pipeline_mode = #tpu.pipeline_mode<synchronous>, transform_indices = @transform_1, window_bounds = array<i64: 1, 8>}, {pipeline_mode = #tpu.pipeline_mode<synchronous>, transform_indices = @transform_2, window_bounds = array<i64: 1, 8>}, {pipeline_mode = #tpu.pipeline_mode<synchronous>, transform_indices = @transform_3, window_bounds = array<i64: 3, 24, 8>}, {transform_indices = @transform_4, window_bounds = array<i64: 1, 16, 16, 8>}, {transform_indices = @transform_5, window_bounds = array<i64: 1, 1, 8>}, {transform_indices = @transform_6, window_bounds = array<i64: 1, 1, 8>}]} {
    %c0 = arith.constant 0 : index
    %c0_0 = arith.constant 0 : index
    %c0_1 = arith.constant 0 : index
    %c0_2 = arith.constant 0 : index
    %0 = vector.load %arg1[%c0, %c0_0, %c0_1, %c0_2] : memref<1x16x16x8xbf16, #tpu.memory_space<vmem>>, vector<1x16x16x8xbf16>
    %cst = arith.constant 0.000000e+00 : bf16
    %1 = vector.broadcast %cst : bf16 to vector<1x16x1x8xbf16>
    %2 = vector.extract_strided_slice %0 {offsets = [0, 0, 0, 0], sizes = [1, 16, 15, 8], strides = [1, 1, 1, 1]} : vector<1x16x16x8xbf16> to vector<1x16x15x8xbf16>
    %3 = tpu.concatenate %1, %2 in 2 : vector<1x16x1x8xbf16>, vector<1x16x15x8xbf16> -> vector<1x16x16x8xbf16>
    %4 = vector.extract_strided_slice %0 {offsets = [0, 0, 1, 0], sizes = [1, 16, 15, 8], strides = [1, 1, 1, 1]} : vector<1x16x16x8xbf16> to vector<1x16x15x8xbf16>
    %5 = tpu.concatenate %4, %1 in 2 : vector<1x16x15x8xbf16>, vector<1x16x1x8xbf16> -> vector<1x16x16x8xbf16>
    %6 = tpu.concatenate %3, %0, %5 in 3 : vector<1x16x16x8xbf16>, vector<1x16x16x8xbf16>, vector<1x16x16x8xbf16> -> vector<1x16x16x24xbf16>
    %c0_3 = arith.constant 0 : index
    %c0_4 = arith.constant 0 : index
    %c0_5 = arith.constant 0 : index
    %7 = vector.load %arg4[%c0_3, %c0_4, %c0_5] : memref<3x24x8xbf16, #tpu.memory_space<vmem>>, vector<1x24x8xbf16>
    %8 = vector.shape_cast %7 : vector<1x24x8xbf16> to vector<24x8xbf16>
    %c1 = arith.constant 1 : index
    %c0_6 = arith.constant 0 : index
    %c0_7 = arith.constant 0 : index
    %9 = vector.load %arg4[%c1, %c0_6, %c0_7] : memref<3x24x8xbf16, #tpu.memory_space<vmem>>, vector<1x24x8xbf16>
    %10 = vector.shape_cast %9 : vector<1x24x8xbf16> to vector<24x8xbf16>
    %c2 = arith.constant 2 : index
    %c0_8 = arith.constant 0 : index
    %c0_9 = arith.constant 0 : index
    %11 = vector.load %arg4[%c2, %c0_8, %c0_9] : memref<3x24x8xbf16, #tpu.memory_space<vmem>>, vector<1x24x8xbf16>
    %12 = vector.shape_cast %11 : vector<1x24x8xbf16> to vector<24x8xbf16>
    %13 = vector.shape_cast %6 : vector<1x16x16x24xbf16> to vector<16x16x24xbf16>
    %14 = vector.shape_cast %13 : vector<16x16x24xbf16> to vector<256x24xbf16>
    %cst_10 = arith.constant dense<0.000000e+00> : vector<256x8xf32>
    %15 = tpu.matmul %14, %10, %cst_10 {dimension_numbers = #tpu.dot_dimension_numbers<[1], [0], [0], [1], [0, 0, 1, 1], [], []>} : vector<256x24xbf16>, vector<24x8xbf16>, vector<256x8xf32> -> vector<256x8xf32>
    %c0_11 = arith.constant 0 : index
    %c0_12 = arith.constant 0 : index
    %16 = vector.load %arg8[%c0_11, %c0_12] : memref<256x8xf32, #tpu.memory_space<vmem>>, vector<256x8xf32>
    tpu.vector_store %arg8[%c0_11, %c0_12], %15 {strides = array<i32>} : memref<256x8xf32, #tpu.memory_space<vmem>>, vector<256x8xf32>,
    %c16 = arith.constant 16 : index
    %c0_13 = arith.constant 0 : index
    %17 = vector.load %arg8[%c16, %c0_13] : memref<256x8xf32, #tpu.memory_space<vmem>>, vector<240x8xf32>
    %18 = vector.extract_strided_slice %14 {offsets = [0, 0], sizes = [240, 24], strides = [1, 1]} : vector<256x24xbf16> to vector<240x24xbf16>
    %cst_14 = arith.constant dense<0.000000e+00> : vector<240x8xf32>
    %19 = tpu.matmul %18, %8, %cst_14 {dimension_numbers = #tpu.dot_dimension_numbers<[1], [0], [0], [1], [0, 0, 1, 1], [], []>} : vector<240x24xbf16>, vector<24x8xbf16>, vector<240x8xf32> -> vector<240x8xf32>
    %20 = arith.addf %17, %19 : vector<240x8xf32>
    %c16_15 = arith.constant 16 : index
    %c0_16 = arith.constant 0 : index
    %21 = vector.load %arg8[%c16_15, %c0_16] : memref<256x8xf32, #tpu.memory_space<vmem>>, vector<240x8xf32>
    tpu.vector_store %arg8[%c16_15, %c0_16], %20 {strides = array<i32>} : memref<256x8xf32, #tpu.memory_space<vmem>>, vector<240x8xf32>,
    %c0_17 = arith.constant 0 : index
    %c0_18 = arith.constant 0 : index
    %22 = vector.load %arg8[%c0_17, %c0_18] : memref<256x8xf32, #tpu.memory_space<vmem>>, vector<240x8xf32>
    %23 = vector.extract_strided_slice %14 {offsets = [16, 0], sizes = [240, 24], strides = [1, 1]} : vector<256x24xbf16> to vector<240x24xbf16>
    %cst_19 = arith.constant dense<0.000000e+00> : vector<240x8xf32>
    %24 = tpu.matmul %23, %12, %cst_19 {dimension_numbers = #tpu.dot_dimension_numbers<[1], [0], [0], [1], [0, 0, 1, 1], [], []>} : vector<240x24xbf16>, vector<24x8xbf16>, vector<240x8xf32> -> vector<240x8xf32>
    %25 = arith.addf %22, %24 : vector<240x8xf32>
    %c0_20 = arith.constant 0 : index
    %c0_21 = arith.constant 0 : index
    %26 = vector.load %arg8[%c0_20, %c0_21] : memref<256x8xf32, #tpu.memory_space<vmem>>, vector<240x8xf32>
    tpu.vector_store %arg8[%c0_20, %c0_21], %25 {strides = array<i32>} : memref<256x8xf32, #tpu.memory_space<vmem>>, vector<240x8xf32>,
    %c0_22 = arith.constant 0 : index
    %c0_23 = arith.constant 0 : index
    %27 = vector.load %arg8[%c0_22, %c0_23] : memref<256x8xf32, #tpu.memory_space<vmem>>, vector<256x8xf32>
    %28 = vector.shape_cast %27 : vector<256x8xf32> to vector<1x16x16x8xf32>
    %29 = arith.truncf %28 : vector<1x16x16x8xf32> to vector<1x16x16x8xbf16>
    %c0_24 = arith.constant 0 : index
    %c0_25 = arith.constant 0 : index
    %c0_26 = arith.constant 0 : index
    %c0_27 = arith.constant 0 : index
    %30 = vector.load %arg5[%c0_24, %c0_25, %c0_26, %c0_27] : memref<1x16x16x8xbf16, #tpu.memory_space<vmem>>, vector<1x16x16x8xbf16>
    tpu.vector_store %arg5[%c0_24, %c0_25, %c0_26, %c0_27], %29 {strides = array<i32>} : memref<1x16x16x8xbf16, #tpu.memory_space<vmem>>, vector<1x16x16x8xbf16>,
    %cst_28 = arith.constant dense<0.000000e+00> : vector<8xf32>
    %31 = vector.multi_reduction <add>, %27, %cst_28 [0] : vector<256x8xf32> to vector<8xf32>
    %32 = vector.shape_cast %31 : vector<8xf32> to vector<1x1x8xf32>
    %c0_29 = arith.constant 0 : index
    %c0_30 = arith.constant 0 : index
    %c0_31 = arith.constant 0 : index
    %33 = vector.load %arg6[%c0_29, %c0_30, %c0_31] : memref<1x1x8xf32, #tpu.memory_space<vmem>>, vector<1x1x8xf32>
    tpu.vector_store %arg6[%c0_29, %c0_30, %c0_31], %32 {strides = array<i32>} : memref<1x1x8xf32, #tpu.memory_space<vmem>>, vector<1x1x8xf32>,
    %34 = arith.mulf %27, %27 : vector<256x8xf32>
    %cst_32 = arith.constant dense<0.000000e+00> : vector<8xf32>
    %35 = vector.multi_reduction <add>, %34, %cst_32 [0] : vector<256x8xf32> to vector<8xf32>
    %36 = vector.shape_cast %35 : vector<8xf32> to vector<1x1x8xf32>
    %c0_33 = arith.constant 0 : index
    %c0_34 = arith.constant 0 : index
    %c0_35 = arith.constant 0 : index
    %37 = vector.load %arg7[%c0_33, %c0_34, %c0_35] : memref<1x1x8xf32, #tpu.memory_space<vmem>>, vector<1x1x8xf32>
    tpu.vector_store %arg7[%c0_33, %c0_34, %c0_35], %36 {strides = array<i32>} : memref<1x1x8xf32, #tpu.memory_space<vmem>>, vector<1x1x8xf32>,
    return
  }
  func.func @transform_0(%arg0: i32) -> (i32, i32, i32, i32) {
    %c0_i32 = arith.constant 0 : i32
    %c0_i32_0 = arith.constant 0 : i32
    %c0_i32_1 = arith.constant 0 : i32
    %c0_i32_2 = arith.constant 0 : i32
    return %arg0, %c0_i32, %c0_i32_0, %c0_i32_1 : i32, i32, i32, i32
  }
  func.func @transform_1(%arg0: i32) -> (i32, i32) {
    %c0_i32 = arith.constant 0 : i32
    %c0_i32_0 = arith.constant 0 : i32
    %c0_i32_1 = arith.constant 0 : i32
    return %c0_i32, %c0_i32_0 : i32, i32
  }
  func.func @transform_2(%arg0: i32) -> (i32, i32) {
    %c0_i32 = arith.constant 0 : i32
    %c0_i32_0 = arith.constant 0 : i32
    %c0_i32_1 = arith.constant 0 : i32
    return %c0_i32, %c0_i32_0 : i32, i32
  }
  func.func @transform_3(%arg0: i32) -> (i32, i32, i32) {
    %c0_i32 = arith.constant 0 : i32
    %c0_i32_0 = arith.constant 0 : i32
    %c0_i32_1 = arith.constant 0 : i32
    %c0_i32_2 = arith.constant 0 : i32
    return %c0_i32, %c0_i32_0, %c0_i32_1 : i32, i32, i32
  }
  func.func @transform_4(%arg0: i32) -> (i32, i32, i32, i32) {
    %c0_i32 = arith.constant 0 : i32
    %c0_i32_0 = arith.constant 0 : i32
    %c0_i32_1 = arith.constant 0 : i32
    %c0_i32_2 = arith.constant 0 : i32
    return %arg0, %c0_i32, %c0_i32_0, %c0_i32_1 : i32, i32, i32, i32
  }
  func.func @transform_5(%arg0: i32) -> (i32, i32, i32) {
    %c0_i32 = arith.constant 0 : i32
    %c0_i32_0 = arith.constant 0 : i32
    %c0_i32_1 = arith.constant 0 : i32
    return %arg0, %c0_i32, %c0_i32_0 : i32, i32, i32
  }
  func.func @transform_6(%arg0: i32) -> (i32, i32, i32) {
    %c0_i32 = arith.constant 0 : i32
    %c0_i32_0 = arith.constant 0 : i32
    %c0_i32_1 = arith.constant 0 : i32
    return %arg0, %c0_i32, %c0_i32_0 : i32, i32, i32
  }
}

module attributes {stable_mosaic.version = 11 : i64} {
  func.func @_conv3x3_bn_stats_kernel(%arg0: i32, %arg1: memref<1x16x16x8xbf16, #tpu.memory_space<vmem>>, %arg2: memref<1x8xf32, #tpu.memory_space<vmem>>, %arg3: memref<1x8xf32, #tpu.memory_space<vmem>>, %arg4: memref<3x24x8xbf16, #tpu.memory_space<vmem>>, %arg5: memref<1x16x16x8xbf16, #tpu.memory_space<vmem>>, %arg6: memref<1x1x8xf32, #tpu.memory_space<vmem>>, %arg7: memref<1x1x8xf32, #tpu.memory_space<vmem>>, %arg8: memref<256x8xf32, #tpu.memory_space<vmem>>) attributes {dimension_semantics = [#tpu.dimension_semantics<parallel>], iteration_bounds = array<i64: 2>, scalar_prefetch = 0 : i64, scratch_operands = 1 : i64, tpu.core_type = #tpu.core_type<tc>, window_params = [{transform_indices = @transform_0, window_bounds = array<i64: 1, 16, 16, 8>}, {pipeline_mode = #tpu.pipeline_mode<synchronous>, transform_indices = @transform_1, window_bounds = array<i64: 1, 8>}, {pipeline_mode = #tpu.pipeline_mode<synchronous>, transform_indices = @transform_2, window_bounds = array<i64: 1, 8>}, {pipeline_mode = #tpu.pipeline_mode<synchronous>, transform_indices = @transform_3, window_bounds = array<i64: 3, 24, 8>}, {transform_indices = @transform_4, window_bounds = array<i64: 1, 16, 16, 8>}, {transform_indices = @transform_5, window_bounds = array<i64: 1, 1, 8>}, {transform_indices = @transform_6, window_bounds = array<i64: 1, 1, 8>}]} {
    %c0 = arith.constant 0 : index
    %c0_0 = arith.constant 0 : index
    %c0_1 = arith.constant 0 : index
    %c0_2 = arith.constant 0 : index
    %0 = vector.load %arg1[%c0, %c0_0, %c0_1, %c0_2] : memref<1x16x16x8xbf16, #tpu.memory_space<vmem>>, vector<1x16x16x8xbf16>
    %1 = arith.extf %0 : vector<1x16x16x8xbf16> to vector<1x16x16x8xf32>
    %c0_3 = arith.constant 0 : index
    %c0_4 = arith.constant 0 : index
    %2 = vector.load %arg2[%c0_3, %c0_4] : memref<1x8xf32, #tpu.memory_space<vmem>>, vector<1x8xf32>
    %3 = vector.shape_cast %2 : vector<1x8xf32> to vector<1x1x1x8xf32>
    %4 = vector.broadcast %3 : vector<1x1x1x8xf32> to vector<1x16x16x8xf32>
    %5 = arith.mulf %1, %4 : vector<1x16x16x8xf32>
    %c0_5 = arith.constant 0 : index
    %c0_6 = arith.constant 0 : index
    %6 = vector.load %arg3[%c0_5, %c0_6] : memref<1x8xf32, #tpu.memory_space<vmem>>, vector<1x8xf32>
    %7 = vector.shape_cast %6 : vector<1x8xf32> to vector<1x1x1x8xf32>
    %8 = vector.broadcast %7 : vector<1x1x1x8xf32> to vector<1x16x16x8xf32>
    %9 = arith.addf %5, %8 : vector<1x16x16x8xf32>
    %cst = arith.constant 0.000000e+00 : f32
    %10 = vector.broadcast %cst : f32 to vector<1x16x16x8xf32>
    %11 = arith.maximumf %9, %10 : vector<1x16x16x8xf32>
    %12 = arith.truncf %11 : vector<1x16x16x8xf32> to vector<1x16x16x8xbf16>
    %cst_7 = arith.constant 0.000000e+00 : bf16
    %13 = vector.broadcast %cst_7 : bf16 to vector<1x16x1x8xbf16>
    %14 = vector.extract_strided_slice %12 {offsets = [0, 0, 0, 0], sizes = [1, 16, 15, 8], strides = [1, 1, 1, 1]} : vector<1x16x16x8xbf16> to vector<1x16x15x8xbf16>
    %15 = tpu.concatenate %13, %14 in 2 : vector<1x16x1x8xbf16>, vector<1x16x15x8xbf16> -> vector<1x16x16x8xbf16>
    %16 = vector.extract_strided_slice %12 {offsets = [0, 0, 1, 0], sizes = [1, 16, 15, 8], strides = [1, 1, 1, 1]} : vector<1x16x16x8xbf16> to vector<1x16x15x8xbf16>
    %17 = tpu.concatenate %16, %13 in 2 : vector<1x16x15x8xbf16>, vector<1x16x1x8xbf16> -> vector<1x16x16x8xbf16>
    %18 = tpu.concatenate %15, %12, %17 in 3 : vector<1x16x16x8xbf16>, vector<1x16x16x8xbf16>, vector<1x16x16x8xbf16> -> vector<1x16x16x24xbf16>
    %c0_8 = arith.constant 0 : index
    %c0_9 = arith.constant 0 : index
    %c0_10 = arith.constant 0 : index
    %19 = vector.load %arg4[%c0_8, %c0_9, %c0_10] : memref<3x24x8xbf16, #tpu.memory_space<vmem>>, vector<1x24x8xbf16>
    %20 = vector.shape_cast %19 : vector<1x24x8xbf16> to vector<24x8xbf16>
    %c1 = arith.constant 1 : index
    %c0_11 = arith.constant 0 : index
    %c0_12 = arith.constant 0 : index
    %21 = vector.load %arg4[%c1, %c0_11, %c0_12] : memref<3x24x8xbf16, #tpu.memory_space<vmem>>, vector<1x24x8xbf16>
    %22 = vector.shape_cast %21 : vector<1x24x8xbf16> to vector<24x8xbf16>
    %c2 = arith.constant 2 : index
    %c0_13 = arith.constant 0 : index
    %c0_14 = arith.constant 0 : index
    %23 = vector.load %arg4[%c2, %c0_13, %c0_14] : memref<3x24x8xbf16, #tpu.memory_space<vmem>>, vector<1x24x8xbf16>
    %24 = vector.shape_cast %23 : vector<1x24x8xbf16> to vector<24x8xbf16>
    %25 = vector.shape_cast %18 : vector<1x16x16x24xbf16> to vector<16x16x24xbf16>
    %26 = vector.shape_cast %25 : vector<16x16x24xbf16> to vector<256x24xbf16>
    %cst_15 = arith.constant dense<0.000000e+00> : vector<256x8xf32>
    %27 = tpu.matmul %26, %22, %cst_15 {dimension_numbers = #tpu.dot_dimension_numbers<[1], [0], [0], [1], [0, 0, 1, 1], [], []>} : vector<256x24xbf16>, vector<24x8xbf16>, vector<256x8xf32> -> vector<256x8xf32>
    %c0_16 = arith.constant 0 : index
    %c0_17 = arith.constant 0 : index
    %28 = vector.load %arg8[%c0_16, %c0_17] : memref<256x8xf32, #tpu.memory_space<vmem>>, vector<256x8xf32>
    tpu.vector_store %arg8[%c0_16, %c0_17], %27 {strides = array<i32>} : memref<256x8xf32, #tpu.memory_space<vmem>>, vector<256x8xf32>,
    %c16 = arith.constant 16 : index
    %c0_18 = arith.constant 0 : index
    %29 = vector.load %arg8[%c16, %c0_18] : memref<256x8xf32, #tpu.memory_space<vmem>>, vector<240x8xf32>
    %30 = vector.extract_strided_slice %26 {offsets = [0, 0], sizes = [240, 24], strides = [1, 1]} : vector<256x24xbf16> to vector<240x24xbf16>
    %cst_19 = arith.constant dense<0.000000e+00> : vector<240x8xf32>
    %31 = tpu.matmul %30, %20, %cst_19 {dimension_numbers = #tpu.dot_dimension_numbers<[1], [0], [0], [1], [0, 0, 1, 1], [], []>} : vector<240x24xbf16>, vector<24x8xbf16>, vector<240x8xf32> -> vector<240x8xf32>
    %32 = arith.addf %29, %31 : vector<240x8xf32>
    %c16_20 = arith.constant 16 : index
    %c0_21 = arith.constant 0 : index
    %33 = vector.load %arg8[%c16_20, %c0_21] : memref<256x8xf32, #tpu.memory_space<vmem>>, vector<240x8xf32>
    tpu.vector_store %arg8[%c16_20, %c0_21], %32 {strides = array<i32>} : memref<256x8xf32, #tpu.memory_space<vmem>>, vector<240x8xf32>,
    %c0_22 = arith.constant 0 : index
    %c0_23 = arith.constant 0 : index
    %34 = vector.load %arg8[%c0_22, %c0_23] : memref<256x8xf32, #tpu.memory_space<vmem>>, vector<240x8xf32>
    %35 = vector.extract_strided_slice %26 {offsets = [16, 0], sizes = [240, 24], strides = [1, 1]} : vector<256x24xbf16> to vector<240x24xbf16>
    %cst_24 = arith.constant dense<0.000000e+00> : vector<240x8xf32>
    %36 = tpu.matmul %35, %24, %cst_24 {dimension_numbers = #tpu.dot_dimension_numbers<[1], [0], [0], [1], [0, 0, 1, 1], [], []>} : vector<240x24xbf16>, vector<24x8xbf16>, vector<240x8xf32> -> vector<240x8xf32>
    %37 = arith.addf %34, %36 : vector<240x8xf32>
    %c0_25 = arith.constant 0 : index
    %c0_26 = arith.constant 0 : index
    %38 = vector.load %arg8[%c0_25, %c0_26] : memref<256x8xf32, #tpu.memory_space<vmem>>, vector<240x8xf32>
    tpu.vector_store %arg8[%c0_25, %c0_26], %37 {strides = array<i32>} : memref<256x8xf32, #tpu.memory_space<vmem>>, vector<240x8xf32>,
    %c0_27 = arith.constant 0 : index
    %c0_28 = arith.constant 0 : index
    %39 = vector.load %arg8[%c0_27, %c0_28] : memref<256x8xf32, #tpu.memory_space<vmem>>, vector<256x8xf32>
    %40 = vector.shape_cast %39 : vector<256x8xf32> to vector<1x16x16x8xf32>
    %41 = arith.truncf %40 : vector<1x16x16x8xf32> to vector<1x16x16x8xbf16>
    %c0_29 = arith.constant 0 : index
    %c0_30 = arith.constant 0 : index
    %c0_31 = arith.constant 0 : index
    %c0_32 = arith.constant 0 : index
    %42 = vector.load %arg5[%c0_29, %c0_30, %c0_31, %c0_32] : memref<1x16x16x8xbf16, #tpu.memory_space<vmem>>, vector<1x16x16x8xbf16>
    tpu.vector_store %arg5[%c0_29, %c0_30, %c0_31, %c0_32], %41 {strides = array<i32>} : memref<1x16x16x8xbf16, #tpu.memory_space<vmem>>, vector<1x16x16x8xbf16>,
    %cst_33 = arith.constant dense<0.000000e+00> : vector<8xf32>
    %43 = vector.multi_reduction <add>, %39, %cst_33 [0] : vector<256x8xf32> to vector<8xf32>
    %44 = vector.shape_cast %43 : vector<8xf32> to vector<1x1x8xf32>
    %c0_34 = arith.constant 0 : index
    %c0_35 = arith.constant 0 : index
    %c0_36 = arith.constant 0 : index
    %45 = vector.load %arg6[%c0_34, %c0_35, %c0_36] : memref<1x1x8xf32, #tpu.memory_space<vmem>>, vector<1x1x8xf32>
    tpu.vector_store %arg6[%c0_34, %c0_35, %c0_36], %44 {strides = array<i32>} : memref<1x1x8xf32, #tpu.memory_space<vmem>>, vector<1x1x8xf32>,
    %46 = arith.mulf %39, %39 : vector<256x8xf32>
    %cst_37 = arith.constant dense<0.000000e+00> : vector<8xf32>
    %47 = vector.multi_reduction <add>, %46, %cst_37 [0] : vector<256x8xf32> to vector<8xf32>
    %48 = vector.shape_cast %47 : vector<8xf32> to vector<1x1x8xf32>
    %c0_38 = arith.constant 0 : index
    %c0_39 = arith.constant 0 : index
    %c0_40 = arith.constant 0 : index
    %49 = vector.load %arg7[%c0_38, %c0_39, %c0_40] : memref<1x1x8xf32, #tpu.memory_space<vmem>>, vector<1x1x8xf32>
    tpu.vector_store %arg7[%c0_38, %c0_39, %c0_40], %48 {strides = array<i32>} : memref<1x1x8xf32, #tpu.memory_space<vmem>>, vector<1x1x8xf32>,
    return
  }
  func.func @transform_0(%arg0: i32) -> (i32, i32, i32, i32) {
    %c0_i32 = arith.constant 0 : i32
    %c0_i32_0 = arith.constant 0 : i32
    %c0_i32_1 = arith.constant 0 : i32
    %c0_i32_2 = arith.constant 0 : i32
    return %arg0, %c0_i32, %c0_i32_0, %c0_i32_1 : i32, i32, i32, i32
  }
  func.func @transform_1(%arg0: i32) -> (i32, i32) {
    %c0_i32 = arith.constant 0 : i32
    %c0_i32_0 = arith.constant 0 : i32
    %c0_i32_1 = arith.constant 0 : i32
    return %c0_i32, %c0_i32_0 : i32, i32
  }
  func.func @transform_2(%arg0: i32) -> (i32, i32) {
    %c0_i32 = arith.constant 0 : i32
    %c0_i32_0 = arith.constant 0 : i32
    %c0_i32_1 = arith.constant 0 : i32
    return %c0_i32, %c0_i32_0 : i32, i32
  }
  func.func @transform_3(%arg0: i32) -> (i32, i32, i32) {
    %c0_i32 = arith.constant 0 : i32
    %c0_i32_0 = arith.constant 0 : i32
    %c0_i32_1 = arith.constant 0 : i32
    %c0_i32_2 = arith.constant 0 : i32
    return %c0_i32, %c0_i32_0, %c0_i32_1 : i32, i32, i32
  }
  func.func @transform_4(%arg0: i32) -> (i32, i32, i32, i32) {
    %c0_i32 = arith.constant 0 : i32
    %c0_i32_0 = arith.constant 0 : i32
    %c0_i32_1 = arith.constant 0 : i32
    %c0_i32_2 = arith.constant 0 : i32
    return %arg0, %c0_i32, %c0_i32_0, %c0_i32_1 : i32, i32, i32, i32
  }
  func.func @transform_5(%arg0: i32) -> (i32, i32, i32) {
    %c0_i32 = arith.constant 0 : i32
    %c0_i32_0 = arith.constant 0 : i32
    %c0_i32_1 = arith.constant 0 : i32
    return %arg0, %c0_i32, %c0_i32_0 : i32, i32, i32
  }
  func.func @transform_6(%arg0: i32) -> (i32, i32, i32) {
    %c0_i32 = arith.constant 0 : i32
    %c0_i32_0 = arith.constant 0 : i32
    %c0_i32_1 = arith.constant 0 : i32
    return %arg0, %c0_i32, %c0_i32_0 : i32, i32, i32
  }
}

module attributes {stable_mosaic.version = 11 : i64} {
  func.func @_bn_residual_relu_kernel(%arg0: i32, %arg1: memref<32x128xbf16, #tpu.memory_space<vmem>>, %arg2: memref<32x128xbf16, #tpu.memory_space<vmem>>, %arg3: memref<1x128xf32, #tpu.memory_space<vmem>>, %arg4: memref<1x128xf32, #tpu.memory_space<vmem>>, %arg5: memref<32x128xf32, #tpu.memory_space<vmem>>) attributes {dimension_semantics = [#tpu.dimension_semantics<parallel>], iteration_bounds = array<i64: 1>, scalar_prefetch = 0 : i64, scratch_operands = 0 : i64, tpu.core_type = #tpu.core_type<tc>, window_params = [{transform_indices = @transform_0, window_bounds = array<i64: 32, 128>}, {transform_indices = @transform_1, window_bounds = array<i64: 32, 128>}, {pipeline_mode = #tpu.pipeline_mode<synchronous>, transform_indices = @transform_2, window_bounds = array<i64: 1, 128>}, {pipeline_mode = #tpu.pipeline_mode<synchronous>, transform_indices = @transform_3, window_bounds = array<i64: 1, 128>}, {transform_indices = @transform_4, window_bounds = array<i64: 32, 128>}]} {
    %c0 = arith.constant 0 : index
    %c0_0 = arith.constant 0 : index
    %0 = vector.load %arg1[%c0, %c0_0] : memref<32x128xbf16, #tpu.memory_space<vmem>>, vector<32x128xbf16>
    %1 = arith.extf %0 : vector<32x128xbf16> to vector<32x128xf32>
    %c0_1 = arith.constant 0 : index
    %c0_2 = arith.constant 0 : index
    %2 = vector.load %arg2[%c0_1, %c0_2] : memref<32x128xbf16, #tpu.memory_space<vmem>>, vector<32x128xbf16>
    %3 = arith.extf %2 : vector<32x128xbf16> to vector<32x128xf32>
    %c0_3 = arith.constant 0 : index
    %c0_4 = arith.constant 0 : index
    %4 = vector.load %arg3[%c0_3, %c0_4] : memref<1x128xf32, #tpu.memory_space<vmem>>, vector<1x128xf32>
    %5 = vector.broadcast %4 : vector<1x128xf32> to vector<32x128xf32>
    %6 = arith.mulf %1, %5 : vector<32x128xf32>
    %c0_5 = arith.constant 0 : index
    %c0_6 = arith.constant 0 : index
    %7 = vector.load %arg4[%c0_5, %c0_6] : memref<1x128xf32, #tpu.memory_space<vmem>>, vector<1x128xf32>
    %8 = vector.broadcast %7 : vector<1x128xf32> to vector<32x128xf32>
    %9 = arith.addf %6, %8 : vector<32x128xf32>
    %10 = arith.addf %9, %3 : vector<32x128xf32>
    %cst = arith.constant 0.000000e+00 : f32
    %11 = vector.broadcast %cst : f32 to vector<32x128xf32>
    %12 = arith.maximumf %10, %11 : vector<32x128xf32>
    %c0_7 = arith.constant 0 : index
    %c0_8 = arith.constant 0 : index
    %13 = vector.load %arg5[%c0_7, %c0_8] : memref<32x128xf32, #tpu.memory_space<vmem>>, vector<32x128xf32>
    tpu.vector_store %arg5[%c0_7, %c0_8], %12 {strides = array<i32>} : memref<32x128xf32, #tpu.memory_space<vmem>>, vector<32x128xf32>,
    return
  }
  func.func @transform_0(%arg0: i32) -> (i32, i32) {
    %c0_i32 = arith.constant 0 : i32
    %c0_i32_0 = arith.constant 0 : i32
    return %arg0, %c0_i32 : i32, i32
  }
  func.func @transform_1(%arg0: i32) -> (i32, i32) {
    %c0_i32 = arith.constant 0 : i32
    %c0_i32_0 = arith.constant 0 : i32
    return %arg0, %c0_i32 : i32, i32
  }
  func.func @transform_2(%arg0: i32) -> (i32, i32) {
    %c0_i32 = arith.constant 0 : i32
    %c0_i32_0 = arith.constant 0 : i32
    %c0_i32_1 = arith.constant 0 : i32
    return %c0_i32, %c0_i32_0 : i32, i32
  }
  func.func @transform_3(%arg0: i32) -> (i32, i32) {
    %c0_i32 = arith.constant 0 : i32
    %c0_i32_0 = arith.constant 0 : i32
    %c0_i32_1 = arith.constant 0 : i32
    return %c0_i32, %c0_i32_0 : i32, i32
  }
  func.func @transform_4(%arg0: i32) -> (i32, i32) {
    %c0_i32 = arith.constant 0 : i32
    %c0_i32_0 = arith.constant 0 : i32
    return %arg0, %c0_i32 : i32, i32
  }
}

</mosaic_0001>

<llo_original>
// kernel: tile.10
$region0: #{tile.10}
  #allocation0 [shape = 's32[1]{0}', space=sflag, size = 0x4, scoped, tag = 'scoped memory for tile.10']
  %s0 = inlined_call_operand.vmem [shape: f32[8], index: 0, kind: input, shape index: {}]
  %s1 = inlined_call_operand.vmem [shape: f32[16,8], index: 1, kind: output, shape index: {}]
  // Predicated region
  $region2: #{tile.10} parent=0 // pred_check
    _
  $region3: #{tile.10} parent=0 // pred_check_branch
    %3 = sbr.rel (0) target = $region5
  $region4: #{tile.10} parent=0 // pred_region
    _
  $region5: #{tile.10} parent=0 // pred_fallthru
    _
  %v4 = vld [vmem:[%s0] ss:$0 sm:$0xff]
  %5 = vst [vmem:[%s1] sm:$0xff] %v4
  %s6 = scalar_lea.vmem %s1, 8
  %7 = vst [vmem:[%s6] sm:$0xff] %v4

// kernel: tile.11
$region0: #{tile.11}
  %s0 = inlined_call_operand.vmem [shape: f32[16,8], index: 0, kind: input, shape index: {}]
  %s1 = inlined_call_operand.vmem [shape: f32[1,128], index: 1, kind: output, shape index: {}]
  $region1: #{tile.11} parent=0
    #allocation0 [shape = 'u8[4096]{0}', space=vmem, size = 0x1000, scoped, tag = 'scoped mem for output reshape']
    %v2 = vld [vmem:[%s0] sm:$0x1]
    %vm3 = vcmask 64512
    %4 = vst.msk [vmem:[#allocation0] sm:$0x1] %vm3, %v2
    %s5 = scalar_lea.vmem %s0, 15
    %v6 = vld [vmem:[%s5] sm:$0x1]
    %7 = vrot.lane.b32.xlu0 %v6, 120
    %v8 = vpop.permute.xlu0 %7
    %vm9 = vcmask 1048512
    %10 = vst.msk [vmem:[#allocation0] sm:$0x1] %vm9, %v8
    %s11 = scalar_lea.vmem %s0, 14
    %v12 = vld [vmem:[%s11] sm:$0x1]
    %13 = vrot.lane.b32.xlu0 %v12, 112
    %v14 = vpop.permute.xlu0 %13
    %vm15 = vcmask 982912
    %16 = vst.msk [vmem:[#allocation0] sm:$0x1] %vm15, %v14
    %s17 = scalar_lea.vmem %s0, 13
    %v18 = vld [vmem:[%s17] sm:$0x1]
    %19 = vrot.lane.b32.xlu0 %v18, 104
    %v20 = vpop.permute.xlu0 %19
    %vm21 = vcmask 917312
    %22 = vst.msk [vmem:[#allocation0] sm:$0x1] %vm21, %v20
    %s23 = scalar_lea.vmem %s0, 12
    %v24 = vld [vmem:[%s23] sm:$0x1]
    %25 = vrot.lane.b32.xlu0 %v24, 96
    %v26 = vpop.permute.xlu0 %25
    %vm27 = vcmask 851712
    %28 = vst.msk [vmem:[#allocation0] sm:$0x1] %vm27, %v26
    %s29 = scalar_lea.vmem %s0, 11
    %v30 = vld [vmem:[%s29] sm:$0x1]
    %31 = vrot.lane.b32.xlu0 %v30, 88
    %v32 = vpop.permute.xlu0 %31
    %vm33 = vcmask 786112
    %34 = vst.msk [vmem:[#allocation0] sm:$0x1] %vm33, %v32
    %s35 = scalar_lea.vmem %s0, 10
    %v36 = vld [vmem:[%s35] sm:$0x1]
    %37 = vrot.lane.b32.xlu0 %v36, 80
    %v38 = vpop.permute.xlu0 %37
    %vm39 = vcmask 720512
    %40 = vst.msk [vmem:[#allocation0] sm:$0x1] %vm39, %v38
    %s41 = scalar_lea.vmem %s0, 9
    %v42 = vld [vmem:[%s41] sm:$0x1]
    %43 = vrot.lane.b32.xlu0 %v42, 72
    %v44 = vpop.permute.xlu0 %43
    %vm45 = vcmask 654912
    %46 = vst.msk [vmem:[#allocation0] sm:$0x1] %vm45, %v44
    %s47 = scalar_lea.vmem %s0, 8
    %v48 = vld [vmem:[%s47] sm:$0x1]
    %49 = vrot.lane.b32.xlu0 %v48, 64
    %v50 = vpop.permute.xlu0 %49
    %vm51 = vcmask 589312
    %52 = vst.msk [vmem:[#allocation0] sm:$0x1] %vm51, %v50
    %s53 = scalar_lea.vmem %s0, 7
    %v54 = vld [vmem:[%s53] sm:$0x1]
    %55 = vrot.lane.b32.xlu0 %v54, 56
    %v56 = vpop.permute.xlu0 %55
    %vm57 = vcmask 523712
    %58 = vst.msk [vmem:[#allocation0] sm:$0x1] %vm57, %v56
    %s59 = scalar_lea.vmem %s0, 6
    %v60 = vld [vmem:[%s59] sm:$0x1]
    %61 = vrot.lane.b32.xlu0 %v60, 48
    %v62 = vpop.permute.xlu0 %61
    %vm63 = vcmask 458112
    %64 = vst.msk [vmem:[#allocation0] sm:$0x1] %vm63, %v62
    %s65 = scalar_lea.vmem %s0, 5
    %v66 = vld [vmem:[%s65] sm:$0x1]
    %67 = vrot.lane.b32.xlu0 %v66, 40
    %v68 = vpop.permute.xlu0 %67
    %vm69 = vcmask 392512
    %70 = vst.msk [vmem:[#allocation0] sm:$0x1] %vm69, %v68
    %s71 = scalar_lea.vmem %s0, 4
    %v72 = vld [vmem:[%s71] sm:$0x1]
    %73 = vrot.lane.b32.xlu0 %v72, 32
    %v74 = vpop.permute.xlu0 %73
    %vm75 = vcmask 326912
    %76 = vst.msk [vmem:[#allocation0] sm:$0x1] %vm75, %v74
    %s77 = scalar_lea.vmem %s0, 3
    %v78 = vld [vmem:[%s77] sm:$0x1]
    %79 = vrot.lane.b32.xlu0 %v78, 24
    %v80 = vpop.permute.xlu0 %79
    %vm81 = vcmask 261312
    %82 = vst.msk [vmem:[#allocation0] sm:$0x1] %vm81, %v80
    %s83 = scalar_lea.vmem %s0, 2
    %v84 = vld [vmem:[%s83] sm:$0x1]
    %85 = vrot.lane.b32.xlu0 %v84, 16
    %v86 = vpop.permute.xlu0 %85
    %vm87 = vcmask 195712
    %88 = vst.msk [vmem:[#allocation0] sm:$0x1] %vm87, %v86
    %s89 = scalar_lea.vmem %s0, 1
    %v90 = vld [vmem:[%s89] sm:$0x1]
    %91 = vrot.lane.b32.xlu0 %v90, 8
    %v92 = vpop.permute.xlu0 %91
    %vm93 = vcmask 130112
    %94 = vst.msk [vmem:[#allocation0] sm:$0x1] %vm93, %v92
    %s96 = sshllo.u32 0, 1
    %v98 = vld [vmem:[#allocation0] sm:%s96]
    %s99 = sshllo.u32 0, 1
    %100 = vst [vmem:[%s1] sm:%s99] %v98

// kernel: basic_block_forward.3
$region0: #{basic_block_forward.3}
  #allocation0 [shape = 'u32[]', space=smem, size = 0x4, offset = 0x4, fixed_abs, tag = 'smem constant byte address 0x4 - core index']
  #allocation1 [shape = 'u32[144,128]{1,0:T(1,128)}', space=vmem, size = 0x12000, scoped, tag = 'internal scratch']
  #allocation2 [shape = 'f32[256,8]{1,0:T(8,128)}', space=vmem, size = 0x20000, scoped, tag = 'scratch operand']
  %s0 = inlined_call_operand.vmem [shape: bf16[2,16,16,8], index: 0, kind: input, shape index: {}]
  %s1 = inlined_call_operand.vmem [shape: f32[1,8], index: 1, kind: input, shape index: {}]
  %s2 = inlined_call_operand.vmem [shape: f32[1,8], index: 2, kind: input, shape index: {}]
  %s3 = inlined_call_operand.vmem [shape: bf16[3,24,8], index: 3, kind: input, shape index: {}]
  %s4 = inlined_call_operand.vmem [shape: bf16[2,16,16,8], index: 4, kind: output, shape index: {0}]
  %s5 = inlined_call_operand.vmem [shape: f32[2,1,8], index: 5, kind: output, shape index: {1}]
  %s6 = inlined_call_operand.vmem [shape: f32[2,1,8], index: 6, kind: output, shape index: {2}]
  %7 = xla_tuple %s4, %s5, %s6
  %s8 = sld [smem:[#allocation0]]
  $region65: #{basic_block_forward.3} parent=0
    _
  %s10 = ssub.s32 1, %s8
  %s11 = scalar_select 0, %s10, %s8
  loop: start=0, step=1, limit=4
  $region2: #{basic_block_forward.3} parent=0 // loop_pre_header
    _
  $region3: #{basic_block_forward.3} parent=0 // loop_header
    %s13 = sphi 0, %s17
    %p14 = scmp.ge.s32.totalorder %s13, 4
    %s23 = sphi 0, %s25
    %s26 = sphi 0, %s23
    %s27 = sphi 0, %s26
    %s43 = sphi 0, %s27
    %s47 = sphi 0, %s47
    %s49 = sphi 0, %s47
    %s50 = sphi 0, %s49
    %s64 = sphi 0, %s50
    %s68 = sphi 0, %s68
    %s70 = sphi 0, %s68
    %s71 = sphi 0, %s70
    %s85 = sphi 0, %s71
    %s89 = sphi 0, %s89
    %s91 = sphi 0, %s89
    %s92 = sphi 0, %s91
    %s106 = sphi 0, %s92
    %s112 = sphi 0, %s114
    %s115 = sphi 0, %s112
    %s116 = sphi 0, %s115
    %s132 = sphi 0, %s116
    %s138 = sphi 0, %s140
    %s141 = sphi 0, %s138
    %s142 = sphi 0, %s141
    %s158 = sphi 0, %s142
    %s164 = sphi 0, %s166
    %s167 = sphi 0, %s164
    %s168 = sphi 0, %s167
    %s184 = sphi 0, %s168
  $region4: #{basic_block_forward.3} parent=0 // loop_header_branch
    %16 = sbr.rel (%p14) target = $region8
  $region5: #{basic_block_forward.3} parent=0 // loop_body
    %s18 = ssub.s32 %s13, 1
    %s19 = ssub.s32 %s13, 2
    %s20 = sadd.s32 %s13, 1
    %s21 = ssub.s32 %s13, %s20
    %p22 = scmp.eq.s32.totalorder %s21, 0
    %s24 = sadd.s32 %s23, 1
    %s25 = scalar_select %p22, %s23, %s24
    %p28 = pneg %p22
    %p29 = scmp.eq.s32.totalorder %s13, 1
    %p30 = por %p28, %p29
    %p31 = scmp.ne.s32.totalorder %s23, %s26
    %p32 = scmp.eq.s32.totalorder %s13, 0
    %p33 = por %p31, %p32
    %p34 = scmp.ne.s32.totalorder %s23, %s26
    %p35 = scmp.eq.s32.totalorder %s18, 1
    %p36 = por %p34, %p35
    %p37 = scmp.ne.s32.totalorder %s26, %s27
    %p38 = scmp.eq.s32.totalorder %s18, 0
    %p39 = por %p37, %p38
    %p40 = scmp.ne.s32.totalorder %s26, %s27
    %p41 = scmp.eq.s32.totalorder %s19, 1
    %p42 = por %p40, %p41
    %p44 = scmp.ne.s32.totalorder %s27, %s43
    %p45 = scmp.eq.s32.totalorder %s19, 0
    %p46 = por %p44, %p45
    %s48 = sadd.s32 %s47, 1
    %p51 = scmp.eq.s32.totalorder %s13, 1
    %p52 = scmp.ne.s32.totalorder %s47, %s49
    %p53 = scmp.eq.s32.totalorder %s13, 0
    %p54 = por %p52, %p53
    %p55 = scmp.ne.s32.totalorder %s47, %s49
    %p56 = scmp.eq.s32.totalorder %s18, 1
    %p57 = por %p55, %p56
    %p58 = scmp.ne.s32.totalorder %s49, %s50
    %p59 = scmp.eq.s32.totalorder %s18, 0
    %p60 = por %p58, %p59
    %p61 = scmp.ne.s32.totalorder %s49, %s50
    %p62 = scmp.eq.s32.totalorder %s19, 1
    %p63 = por %p61, %p62
    %p65 = scmp.ne.s32.totalorder %s50, %s64
    %p66 = scmp.eq.s32.totalorder %s19, 0
    %p67 = por %p65, %p66
    %s69 = sadd.s32 %s68, 1
    %p72 = scmp.eq.s32.totalorder %s13, 1
    %p73 = scmp.ne.s32.totalorder %s68, %s70
    %p74 = scmp.eq.s32.totalorder %s13, 0
    %p75 = por %p73, %p74
    %p76 = scmp.ne.s32.totalorder %s68, %s70
    %p77 = scmp.eq.s32.totalorder %s18, 1
    %p78 = por %p76, %p77
    %p79 = scmp.ne.s32.totalorder %s70, %s71
    %p80 = scmp.eq.s32.totalorder %s18, 0
    %p81 = por %p79, %p80
    %p82 = scmp.ne.s32.totalorder %s70, %s71
    %p83 = scmp.eq.s32.totalorder %s19, 1
    %p84 = por %p82, %p83
    %p86 = scmp.ne.s32.totalorder %s71, %s85
    %p87 = scmp.eq.s32.totalorder %s19, 0
    %p88 = por %p86, %p87
    %s90 = sadd.s32 %s89, 1
    %p93 = scmp.eq.s32.totalorder %s13, 1
    %p94 = scmp.ne.s32.totalorder %s89, %s91
    %p95 = scmp.eq.s32.totalorder %s13, 0
    %p96 = por %p94, %p95
    %p97 = scmp.ne.s32.totalorder %s89, %s91
    %p98 = scmp.eq.s32.totalorder %s18, 1
    %p99 = por %p97, %p98
    %p100 = scmp.ne.s32.totalorder %s91, %s92
    %p101 = scmp.eq.s32.totalorder %s18, 0
    %p102 = por %p100, %p101
    %p103 = scmp.ne.s32.totalorder %s91, %s92
    %p104 = scmp.eq.s32.totalorder %s19, 1
    %p105 = por %p103, %p104
    %p107 = scmp.ne.s32.totalorder %s92, %s106
    %p108 = scmp.eq.s32.totalorder %s19, 0
    %p109 = por %p107, %p108
    %s110 = ssub.s32 %s13, %s20
    %p111 = scmp.eq.s32.totalorder %s110, 0
    %s113 = sadd.s32 %s112, 1
    %s114 = scalar_select %p111, %s112, %s113
    %p117 = pneg %p111
    %p118 = scmp.eq.s32.totalorder %s13, 1
    %p119 = por %p117, %p118
    %p120 = scmp.ne.s32.totalorder %s112, %s115
    %p121 = scmp.eq.s32.totalorder %s13, 0
    %p122 = por %p120, %p121
    %p123 = scmp.ne.s32.totalorder %s112, %s115
    %p124 = scmp.eq.s32.totalorder %s18, 1
    %p125 = por %p123, %p124
    %p126 = scmp.ne.s32.totalorder %s115, %s116
    %p127 = scmp.eq.s32.totalorder %s18, 0
    %p128 = por %p126, %p127
    %p129 = scmp.ne.s32.totalorder %s115, %s116
    %p130 = scmp.eq.s32.totalorder %s19, 1
    %p131 = por %p129, %p130
    %p133 = scmp.ne.s32.totalorder %s116, %s132
    %p134 = scmp.eq.s32.totalorder %s19, 0
    %p135 = por %p133, %p134
    %s136 = ssub.s32 %s13, %s20
    %p137 = scmp.eq.s32.totalorder %s136, 0
    %s139 = sadd.s32 %s138, 1
    %s140 = scalar_select %p137, %s138, %s139
    %p143 = pneg %p137
    %p144 = scmp.eq.s32.totalorder %s13, 1
    %p145 = por %p143, %p144
    %p146 = scmp.ne.s32.totalorder %s138, %s141
    %p147 = scmp.eq.s32.totalorder %s13, 0
    %p148 = por %p146, %p147
    %p149 = scmp.ne.s32.totalorder %s138, %s141
    %p150 = scmp.eq.s32.totalorder %s18, 1
    %p151 = por %p149, %p150
    %p152 = scmp.ne.s32.totalorder %s141, %s142
    %p153 = scmp.eq.s32.totalorder %s18, 0
    %p154 = por %p152, %p153
    %p155 = scmp.ne.s32.totalorder %s141, %s142
    %p156 = scmp.eq.s32.totalorder %s19, 1
    %p157 = por %p155, %p156
    %p159 = scmp.ne.s32.totalorder %s142, %s158
    %p160 = scmp.eq.s32.totalorder %s19, 0
    %p161 = por %p159, %p160
    %s162 = ssub.s32 %s13, %s20
    %p163 = scmp.eq.s32.totalorder %s162, 0
    %s165 = sadd.s32 %s164, 1
    %s166 = scalar_select %p163, %s164, %s165
    %p169 = pneg %p163
    %p170 = scmp.eq.s32.totalorder %s13, 1
    %p171 = por %p169, %p170
    %p172 = scmp.ne.s32.totalorder %s164, %s167
    %p173 = scmp.eq.s32.totalorder %s13, 0
    %p174 = por %p172, %p173
    %p175 = scmp.ne.s32.totalorder %s164, %s167
    %p176 = scmp.eq.s32.totalorder %s18, 1
    %p177 = por %p175, %p176
    %p178 = scmp.ne.s32.totalorder %s167, %s168
    %p179 = scmp.eq.s32.totalorder %s18, 0
    %p180 = por %p178, %p179
    %p181 = scmp.ne.s32.totalorder %s167, %s168
    %p182 = scmp.eq.s32.totalorder %s19, 1
    %p183 = por %p181, %p182
    %p185 = scmp.ne.s32.totalorder %s168, %s184
    %p186 = scmp.eq.s32.totalorder %s19, 0
    %p187 = por %p185, %p186
    %p188 = scmp.le.s32.totalorder 1, %s13
    %p189 = scmp.lt.s32.totalorder %s13, 3
    %p190 = pnand %p188, %p189
    %p191 = pneg %p190
    // Predicated region
    $region9: #{basic_block_forward.3} parent=5 // pred_check
      _
    $region10: #{basic_block_forward.3} parent=5 // pred_check_branch
      %193 = sbr.rel (%p190) target = $region12
    $region11: #{basic_block_forward.3} parent=5 // pred_region
      %s194 = ssub.s32 %s13, 1
      // Predicated region
      $region13: #{basic_block_forward.3} parent=11 // pred_check
        %p195 = pneg %p60
      $region14: #{basic_block_forward.3} parent=11 // pred_check_branch
        %197 = sbr.rel (%p195) target = $region16
      $region15: #{basic_block_forward.3} parent=11 // pred_region
        _
      $region16: #{basic_block_forward.3} parent=11 // pred_fallthru
        _
      // Predicated region
      $region17: #{basic_block_forward.3} parent=11 // pred_check
        %p198 = pneg %p81
      $region18: #{basic_block_forward.3} parent=11 // pred_check_branch
        %200 = sbr.rel (%p198) target = $region20
      $region19: #{basic_block_forward.3} parent=11 // pred_region
        _
      $region20: #{basic_block_forward.3} parent=11 // pred_fallthru
        _
      // Predicated region
      $region21: #{basic_block_forward.3} parent=11 // pred_check
        %p201 = pneg %p102
      $region22: #{basic_block_forward.3} parent=11 // pred_check_branch
        %203 = sbr.rel (%p201) target = $region24
      $region23: #{basic_block_forward.3} parent=11 // pred_region
        _
      $region24: #{basic_block_forward.3} parent=11 // pred_fallthru
        _
    $region12: #{basic_block_forward.3} parent=5 // pred_fallthru
      _
    %p204 = scmp.lt.s32.totalorder %s13, 2
    // Predicated region
    $region25: #{basic_block_forward.3} parent=5 // pred_check
      %p205 = pneg %p204
    $region26: #{basic_block_forward.3} parent=5 // pred_check_branch
      %207 = sbr.rel (%p205) target = $region28
    $region27: #{basic_block_forward.3} parent=5 // pred_region
      // Predicated region
      $region29: #{basic_block_forward.3} parent=27 // pred_check
        %p208 = pneg %p33
      $region30: #{basic_block_forward.3} parent=27 // pred_check_branch
        %210 = sbr.rel (%p208) target = $region32
      $region31: #{basic_block_forward.3} parent=27 // pred_region
        %p211 = scmp.lt.s32.totalorder %s13, 1
        %s212 = scalar_select %p211, %s13, 1
        %s213 = smul.addr %s212, 32
        %s214 = smul.addr %s213, 4
        %s215 = scalar_lea.vmem %s0, %s214
      $region32: #{basic_block_forward.3} parent=27 // pred_fallthru
        _
    $region28: #{basic_block_forward.3} parent=5 // pred_fallthru
      _
    %p216 = scmp.le.s32.totalorder 1, %s13
    %p217 = scmp.lt.s32.totalorder %s13, 3
    %p218 = pnand %p216, %p217
    %p219 = pneg %p218
    // Predicated region
    $region33: #{basic_block_forward.3} parent=5 // pred_check
      _
    $region34: #{basic_block_forward.3} parent=5 // pred_check_branch
      %221 = sbr.rel (%p218) target = $region36
    $region35: #{basic_block_forward.3} parent=5 // pred_region
      %s222 = ssub.s32 %s13, 1
      %p223 = scmp.lt.s32.totalorder %s18, 1
      %s224 = scalar_select %p223, %s18, 1
      %s225 = smul.addr %s224, 32
      %s226 = smul.addr %s225, 4
      %s227 = scalar_lea.vmem %s0, %s226
      %p228 = pneg %p39
      %p229 = pneg %p36
      %p230 = pneg %p60
      %p231 = pneg %p57
      %p232 = pneg %p81
      %p233 = pneg %p78
      %p234 = pneg %p102
      %p235 = pneg %p99
      %p236 = pneg %p128
      %p237 = pneg %p125
      %p238 = scmp.lt.s32.totalorder %s18, 1
      %s239 = scalar_select %p238, %s18, 1
      %s240 = smul.addr %s239, 32
      %s241 = smul.addr %s240, 4
      %s242 = scalar_lea.vmem %s4, %s241
      %p243 = pneg %p154
      %p244 = pneg %p151
      %p245 = scmp.lt.s32.totalorder %s18, 1
      %s246 = scalar_select %p245, %s18, 1
      %s247 = scalar_lea.vmem %s5, %s246
      %p248 = pneg %p180
      %p249 = pneg %p177
      %p250 = scmp.lt.s32.totalorder %s18, 1
      %s251 = scalar_select %p250, %s18, 1
      %s252 = scalar_lea.vmem %s6, %s251
      %p253 = scmp.lt.s32.totalorder %s18, 1
      %s254 = scalar_select %p253, %s18, 1
      %s255 = smul.addr %s254, 32
      %s256 = smul.addr %s255, 4
      %s257 = scalar_lea.vmem %s0, %s256
      %p258 = scmp.lt.s32.totalorder %s18, 1
      %s259 = scalar_select %p258, %s18, 1
      %s260 = smul.addr %s259, 32
      %s261 = smul.addr %s260, 4
      %s262 = scalar_lea.vmem %s4, %s261
      %p263 = scmp.lt.s32.totalorder %s18, 1
      %s264 = scalar_select %p263, %s18, 1
      %s265 = scalar_lea.vmem %s5, %s264
      %p266 = scmp.lt.s32.totalorder %s18, 1
      %s267 = scalar_select %p266, %s18, 1
      %s268 = scalar_lea.vmem %s6, %s267
      %v270 = vld [vmem:[%s257] sm:$0xf]
      %v271 = vld [vmem:[%s257 + $0x4] sm:$0xf]
      %v272 = vld [vmem:[%s257 + $0x8] sm:$0xf]
      %v273 = vld [vmem:[%s257 + $0xc] sm:$0xf]
      %v274 = vld [vmem:[%s257 + $0x10] sm:$0xf]
      %v275 = vld [vmem:[%s257 + $0x14] sm:$0xf]
      %v276 = vld [vmem:[%s257 + $0x18] sm:$0xf]
      %v277 = vld [vmem:[%s257 + $0x1c] sm:$0xf]
      %v278 = vld [vmem:[%s257 + $0x20] sm:$0xf]
      %v279 = vld [vmem:[%s257 + $0x24] sm:$0xf]
      %v280 = vld [vmem:[%s257 + $0x28] sm:$0xf]
      %v281 = vld [vmem:[%s257 + $0x2c] sm:$0xf]
      %v282 = vld [vmem:[%s257 + $0x30] sm:$0xf]
      %v283 = vld [vmem:[%s257 + $0x34] sm:$0xf]
      %v284 = vld [vmem:[%s257 + $0x38] sm:$0xf]
      %v285 = vld [vmem:[%s257 + $0x3c] sm:$0xf]
      %v286 = vld [vmem:[%s257 + $0x40] sm:$0xf]
      %v287 = vld [vmem:[%s257 + $0x44] sm:$0xf]
      %v288 = vld [vmem:[%s257 + $0x48] sm:$0xf]
      %v289 = vld [vmem:[%s257 + $0x4c] sm:$0xf]
      %v290 = vld [vmem:[%s257 + $0x50] sm:$0xf]
      %v291 = vld [vmem:[%s257 + $0x54] sm:$0xf]
      %v292 = vld [vmem:[%s257 + $0x58] sm:$0xf]
      %v293 = vld [vmem:[%s257 + $0x5c] sm:$0xf]
      %v294 = vld [vmem:[%s257 + $0x60] sm:$0xf]
      %v295 = vld [vmem:[%s257 + $0x64] sm:$0xf]
      %v296 = vld [vmem:[%s257 + $0x68] sm:$0xf]
      %v297 = vld [vmem:[%s257 + $0x6c] sm:$0xf]
      %v298 = vld [vmem:[%s257 + $0x70] sm:$0xf]
      %v299 = vld [vmem:[%s257 + $0x74] sm:$0xf]
      %v300 = vld [vmem:[%s257 + $0x78] sm:$0xf]
      %v301 = vld [vmem:[%s257 + $0x7c] sm:$0xf]
      %v334 = vunpack.c.l.b16 %v270
      %v335 = vunpack.c.l.b16 %v271
      %v336 = vunpack.c.l.b16 %v272
      %v337 = vunpack.c.l.b16 %v273
      %v338 = vunpack.c.l.b16 %v274
      %v339 = vunpack.c.l.b16 %v275
      %v340 = vunpack.c.l.b16 %v276
      %v341 = vunpack.c.l.b16 %v277
      %v342 = vunpack.c.l.b16 %v278
      %v343 = vunpack.c.l.b16 %v279
      %v344 = vunpack.c.l.b16 %v280
      %v345 = vunpack.c.l.b16 %v281
      %v346 = vunpack.c.l.b16 %v282
      %v347 = vunpack.c.l.b16 %v283
      %v348 = vunpack.c.l.b16 %v284
      %v349 = vunpack.c.l.b16 %v285
      %v350 = vunpack.c.l.b16 %v286
      %v351 = vunpack.c.l.b16 %v287
      %v352 = vunpack.c.l.b16 %v288
      %v353 = vunpack.c.l.b16 %v289
      %v354 = vunpack.c.l.b16 %v290
      %v355 = vunpack.c.l.b16 %v291
      %v356 = vunpack.c.l.b16 %v292
      %v357 = vunpack.c.l.b16 %v293
      %v358 = vunpack.c.l.b16 %v294
      %v359 = vunpack.c.l.b16 %v295
      %v360 = vunpack.c.l.b16 %v296
      %v361 = vunpack.c.l.b16 %v297
      %v362 = vunpack.c.l.b16 %v298
      %v363 = vunpack.c.l.b16 %v299
      %v364 = vunpack.c.l.b16 %v300
      %v365 = vunpack.c.l.b16 %v301
      %v366 = vpack.c.b16 %v335, %v334
      %v367 = vpack.c.b16 %v337, %v336
      %v368 = vpack.c.b16 %v339, %v338
      %v369 = vpack.c.b16 %v341, %v340
      %v370 = vpack.c.b16 %v343, %v342
      %v371 = vpack.c.b16 %v345, %v344
      %v372 = vpack.c.b16 %v347, %v346
      %v373 = vpack.c.b16 %v349, %v348
      %v374 = vpack.c.b16 %v351, %v350
      %v375 = vpack.c.b16 %v353, %v352
      %v376 = vpack.c.b16 %v355, %v354
      %v377 = vpack.c.b16 %v357, %v356
      %v378 = vpack.c.b16 %v359, %v358
      %v379 = vpack.c.b16 %v361, %v360
      %v380 = vpack.c.b16 %v363, %v362
      %v381 = vpack.c.b16 %v365, %v364
      %v383 = vshrl.u32 %v366, 16
      %v385 = vrot.slane %v383, 7
      %v386 = vshll.u32 %v366, 16
      %v388 = vor.u32 %v385, %v386
      %v390 = vshrl.u32 %v367, 16
      %v392 = vrot.slane %v390, 7
      %v393 = vshll.u32 %v367, 16
      %v395 = vor.u32 %v392, %v393
      %v397 = vshrl.u32 %v368, 16
      %v399 = vrot.slane %v397, 7
      %v400 = vshll.u32 %v368, 16
      %v402 = vor.u32 %v399, %v400
      %v404 = vshrl.u32 %v369, 16
      %v406 = vrot.slane %v404, 7
      %v407 = vshll.u32 %v369, 16
      %v409 = vor.u32 %v406, %v407
      %v411 = vshrl.u32 %v370, 16
      %v413 = vrot.slane %v411, 7
      %v414 = vshll.u32 %v370, 16
      %v416 = vor.u32 %v413, %v414
      %v418 = vshrl.u32 %v371, 16
      %v420 = vrot.slane %v418, 7
      %v421 = vshll.u32 %v371, 16
      %v423 = vor.u32 %v420, %v421
      %v425 = vshrl.u32 %v372, 16
      %v427 = vrot.slane %v425, 7
      %v428 = vshll.u32 %v372, 16
      %v430 = vor.u32 %v427, %v428
      %v432 = vshrl.u32 %v373, 16
      %v434 = vrot.slane %v432, 7
      %v435 = vshll.u32 %v373, 16
      %v437 = vor.u32 %v434, %v435
      %v439 = vshrl.u32 %v374, 16
      %v441 = vrot.slane %v439, 7
      %v442 = vshll.u32 %v374, 16
      %v444 = vor.u32 %v441, %v442
      %v446 = vshrl.u32 %v375, 16
      %v448 = vrot.slane %v446, 7
      %v449 = vshll.u32 %v375, 16
      %v451 = vor.u32 %v448, %v449
      %v453 = vshrl.u32 %v376, 16
      %v455 = vrot.slane %v453, 7
      %v456 = vshll.u32 %v376, 16
      %v458 = vor.u32 %v455, %v456
      %v460 = vshrl.u32 %v377, 16
      %v462 = vrot.slane %v460, 7
      %v463 = vshll.u32 %v377, 16
      %v465 = vor.u32 %v462, %v463
      %v467 = vshrl.u32 %v378, 16
      %v469 = vrot.slane %v467, 7
      %v470 = vshll.u32 %v378, 16
      %v472 = vor.u32 %v469, %v470
      %v474 = vshrl.u32 %v379, 16
      %v476 = vrot.slane %v474, 7
      %v477 = vshll.u32 %v379, 16
      %v479 = vor.u32 %v476, %v477
      %v481 = vshrl.u32 %v380, 16
      %v483 = vrot.slane %v481, 7
      %v484 = vshll.u32 %v380, 16
      %v486 = vor.u32 %v483, %v484
      %v488 = vshrl.u32 %v381, 16
      %v490 = vrot.slane %v488, 7
      %v491 = vshll.u32 %v381, 16
      %v493 = vor.u32 %v490, %v491
      %vm510 = vcmask 1040384
      %vm511 = vsmask.f32 256
      %vm512 = vmand %vm510, %vm511
      %v513 = vsel %vm512, 0, %v388
      %v514 = vsel %vm512, 0, %v395
      %v515 = vsel %vm512, 0, %v402
      %v516 = vsel %vm512, 0, %v409
      %v517 = vsel %vm512, 0, %v416
      %v518 = vsel %vm512, 0, %v423
      %v519 = vsel %vm512, 0, %v430
      %v520 = vsel %vm512, 0, %v437
      %v521 = vsel %vm512, 0, %v444
      %v522 = vsel %vm512, 0, %v451
      %v523 = vsel %vm512, 0, %v458
      %v524 = vsel %vm512, 0, %v465
      %v525 = vsel %vm512, 0, %v472
      %v526 = vsel %vm512, 0, %v479
      %v527 = vsel %vm512, 0, %v486
      %v528 = vsel %vm512, 0, %v493
      %v529 = vrot.slane %v386, 1
      %v530 = vor.u32 %v383, %v529
      %v531 = vrot.slane %v393, 1
      %v532 = vor.u32 %v390, %v531
      %v533 = vrot.slane %v400, 1
      %v534 = vor.u32 %v397, %v533
      %v535 = vrot.slane %v407, 1
      %v536 = vor.u32 %v404, %v535
      %v537 = vrot.slane %v414, 1
      %v538 = vor.u32 %v411, %v537
      %v539 = vrot.slane %v421, 1
      %v540 = vor.u32 %v418, %v539
      %v541 = vrot.slane %v428, 1
      %v542 = vor.u32 %v425, %v541
      %v543 = vrot.slane %v435, 1
      %v544 = vor.u32 %v432, %v543
      %v545 = vrot.slane %v442, 1
      %v546 = vor.u32 %v439, %v545
      %v547 = vrot.slane %v449, 1
      %v548 = vor.u32 %v446, %v547
      %v549 = vrot.slane %v456, 1
      %v550 = vor.u32 %v453, %v549
      %v551 = vrot.slane %v463, 1
      %v552 = vor.u32 %v460, %v551
      %v553 = vrot.slane %v470, 1
      %v554 = vor.u32 %v467, %v553
      %v555 = vrot.slane %v477, 1
      %v556 = vor.u32 %v474, %v555
      %v557 = vrot.slane %v484, 1
      %v558 = vor.u32 %v481, %v557
      %v559 = vrot.slane %v491, 1
      %v560 = vor.u32 %v488, %v559
      %vm577 = vcmask 1047552
      %vm578 = vsmask.f32 7424
      %vm579 = vmand %vm577, %vm578
      %v580 = vsel %vm579, %v530, 0
      %v581 = vsel %vm579, %v532, 0
      %v582 = vsel %vm579, %v534, 0
      %v583 = vsel %vm579, %v536, 0
      %v584 = vsel %vm579, %v538, 0
      %v585 = vsel %vm579, %v540, 0
      %v586 = vsel %vm579, %v542, 0
      %v587 = vsel %vm579, %v544, 0
      %v588 = vsel %vm579, %v546, 0
      %v589 = vsel %vm579, %v548, 0
      %v590 = vsel %vm579, %v550, 0
      %v591 = vsel %vm579, %v552, 0
      %v592 = vsel %vm579, %v554, 0
      %v593 = vsel %vm579, %v556, 0
      %v594 = vsel %vm579, %v558, 0
      %v595 = vsel %vm579, %v560, 0
      %596 = vrot.lane.b32.xlu0 %v366, 8
      %v597 = vpop.permute.xlu0 %596
      %598 = vrot.lane.b32.xlu0 %v367, 8
      %v599 = vpop.permute.xlu0 %598
      %600 = vrot.lane.b32.xlu0 %v368, 8
      %v601 = vpop.permute.xlu0 %600
      %602 = vrot.lane.b32.xlu0 %v369, 8
      %v603 = vpop.permute.xlu0 %602
      %604 = vrot.lane.b32.xlu0 %v370, 8
      %v605 = vpop.permute.xlu0 %604
      %606 = vrot.lane.b32.xlu0 %v371, 8
      %v607 = vpop.permute.xlu0 %606
      %608 = vrot.lane.b32.xlu0 %v372, 8
      %v609 = vpop.permute.xlu0 %608
      %610 = vrot.lane.b32.xlu0 %v373, 8
      %v611 = vpop.permute.xlu0 %610
      %612 = vrot.lane.b32.xlu0 %v374, 8
      %v613 = vpop.permute.xlu0 %612
      %614 = vrot.lane.b32.xlu0 %v375, 8
      %v615 = vpop.permute.xlu0 %614
      %616 = vrot.lane.b32.xlu0 %v376, 8
      %v617 = vpop.permute.xlu0 %616
      %618 = vrot.lane.b32.xlu0 %v377, 8
      %v619 = vpop.permute.xlu0 %618
      %620 = vrot.lane.b32.xlu0 %v378, 8
      %v621 = vpop.permute.xlu0 %620
      %622 = vrot.lane.b32.xlu0 %v379, 8
      %v623 = vpop.permute.xlu0 %622
      %624 = vrot.lane.b32.xlu0 %v380, 8
      %v625 = vpop.permute.xlu0 %624
      %626 = vrot.lane.b32.xlu0 %v381, 8
      %v627 = vpop.permute.xlu0 %626
      %644 = vrot.lane.b32.xlu0 %v580, 16
      %v645 = vpop.permute.xlu0 %644
      %646 = vrot.lane.b32.xlu0 %v581, 16
      %v647 = vpop.permute.xlu0 %646
      %648 = vrot.lane.b32.xlu0 %v582, 16
      %v649 = vpop.permute.xlu0 %648
      %650 = vrot.lane.b32.xlu0 %v583, 16
      %v651 = vpop.permute.xlu0 %650
      %652 = vrot.lane.b32.xlu0 %v584, 16
      %v653 = vpop.permute.xlu0 %652
      %654 = vrot.lane.b32.xlu0 %v585, 16
      %v655 = vpop.permute.xlu0 %654
      %656 = vrot.lane.b32.xlu0 %v586, 16
      %v657 = vpop.permute.xlu0 %656
      %658 = vrot.lane.b32.xlu0 %v587, 16
      %v659 = vpop.permute.xlu0 %658
      %660 = vrot.lane.b32.xlu0 %v588, 16
      %v661 = vpop.permute.xlu0 %660
      %662 = vrot.lane.b32.xlu0 %v589, 16
      %v663 = vpop.permute.xlu0 %662
      %664 = vrot.lane.b32.xlu0 %v590, 16
      %v665 = vpop.permute.xlu0 %664
      %666 = vrot.lane.b32.xlu0 %v591, 16
      %v667 = vpop.permute.xlu0 %666
      %668 = vrot.lane.b32.xlu0 %v592, 16
      %v669 = vpop.permute.xlu0 %668
      %670 = vrot.lane.b32.xlu0 %v593, 16
      %v671 = vpop.permute.xlu0 %670
      %672 = vrot.lane.b32.xlu0 %v594, 16
      %v673 = vpop.permute.xlu0 %672
      %674 = vrot.lane.b32.xlu0 %v595, 16
      %v675 = vpop.permute.xlu0 %674
      %vm676 = vcmask 64512
      %v679 = vsel %vm676, %v513, %v597
      %v682 = vsel %vm676, %v514, %v599
      %v685 = vsel %vm676, %v515, %v601
      %v688 = vsel %vm676, %v516, %v603
      %v691 = vsel %vm676, %v517, %v605
      %v694 = vsel %vm676, %v518, %v607
      %v697 = vsel %vm676, %v519, %v609
      %v700 = vsel %vm676, %v520, %v611
      %v703 = vsel %vm676, %v521, %v613
      %v706 = vsel %vm676, %v522, %v615
      %v709 = vsel %vm676, %v523, %v617
      %v712 = vsel %vm676, %v524, %v619
      %v715 = vsel %vm676, %v525, %v621
      %v718 = vsel %vm676, %v526, %v623
      %v721 = vsel %vm676, %v527, %v625
      %v724 = vsel %vm676, %v528, %v627
      %vm725 = vcmask 130048
      %v727 = vsel %vm725, %v679, %v645
      %v729 = vsel %vm725, %v682, %v647
      %v731 = vsel %vm725, %v685, %v649
      %v733 = vsel %vm725, %v688, %v651
      %v735 = vsel %vm725, %v691, %v653
      %v737 = vsel %vm725, %v694, %v655
      %v739 = vsel %vm725, %v697, %v657
      %v741 = vsel %vm725, %v700, %v659
      %v743 = vsel %vm725, %v703, %v661
      %v745 = vsel %vm725, %v706, %v663
      %v747 = vsel %vm725, %v709, %v665
      %v749 = vsel %vm725, %v712, %v667
      %v751 = vsel %vm725, %v715, %v669
      %v753 = vsel %vm725, %v718, %v671
      %v755 = vsel %vm725, %v721, %v673
      %v757 = vsel %vm725, %v724, %v675
      %v758 = vld [vmem:[%s3] sm:$0xf]
      %v759 = vld [vmem:[%s3 + $0x4] sm:$0xf]
      %v760 = vld [vmem:[%s3 + $0x8] sm:$0xf]
      %s761 = scalar_lea.vmem %s3, 12
      %v762 = vld [vmem:[%s761] sm:$0xf]
      %v763 = vld [vmem:[%s761 + $0x4] sm:$0xf]
      %v764 = vld [vmem:[%s761 + $0x8] sm:$0xf]
      %s765 = scalar_lea.vmem %s3, 24
      %v766 = vld [vmem:[%s765] sm:$0xf]
      %v767 = vld [vmem:[%s765 + $0x4] sm:$0xf]
      %v768 = vld [vmem:[%s765 + $0x8] sm:$0xf]
      %v772 = vunpack.c.l.b16 %v762
      %v773 = vunpack.c.l.b16 %v763
      %v774 = vunpack.c.l.b16 %v764
      %v775 = vpack.c.b16 %v773, %v772
      %v776 = vpack.c.b16 %v774, %v774
      %vm778 = vcmask 195584
      %v779 = vsel %vm778, %v727, 0
      %v781 = vsel %vm778, %v729, 0
      %v783 = vsel %vm778, %v731, 0
      %v785 = vsel %vm778, %v733, 0
      %v787 = vsel %vm778, %v735, 0
      %v789 = vsel %vm778, %v737, 0
      %v791 = vsel %vm778, %v739, 0
      %v793 = vsel %vm778, %v741, 0
      %v795 = vsel %vm778, %v743, 0
      %v797 = vsel %vm778, %v745, 0
      %v799 = vsel %vm778, %v747, 0
      %v801 = vsel %vm778, %v749, 0
      %v803 = vsel %vm778, %v751, 0
      %v805 = vsel %vm778, %v753, 0
      %v807 = vsel %vm778, %v755, 0
      %v809 = vsel %vm778, %v757, 0
      %vm811 = vcmask 1043456
      %v813 = vsel %vm811, %v776, 0
      %815 = vmatprep.subr.bf16.mxu0 0
      %816 = vmatpush1.bf16.msra.mxu0 %v775
      %817 = vmatprep.subr.bf16.mxu0 0
      %818 = vmatpush1.bf16.msra.mxu0 %v813
      %819 = vmatprep.subr.bf16.mxu0 0
      %820 = vmatpush1.bf16.msra.mxu0 0
      %821 = vmatprep.subr.bf16.mxu0 0
      %822 = vmatpush1.bf16.msra.mxu0 0
      %823 = vmatprep.subr.bf16.mxu0 0
      %824 = vmatpush1.bf16.msra.mxu0 0
      %825 = vmatprep.subr.bf16.mxu0 0
      %826 = vmatpush1.bf16.msra.mxu0 0
      %827 = vmatprep.subr.bf16.mxu0 0
      %828 = vmatpush1.bf16.msra.mxu0 0
      %829 = vmatprep.subr.bf16.mxu0 0
      %830 = vmatpush1.bf16.msra.mxu0 0
      %831 = vmatprep.subr.bf16.mxu0 0
      %832 = vmatpush1.bf16.msra.mxu0 0
      %833 = vmatprep.subr.bf16.mxu0 0
      %834 = vmatpush1.bf16.msra.mxu0 0
      %835 = vmatprep.subr.bf16.mxu0 0
      %836 = vmatpush1.bf16.msra.mxu0 0
      %837 = vmatprep.subr.bf16.mxu0 0
      %838 = vmatpush1.bf16.msra.mxu0 0
      %839 = vmatprep.subr.bf16.mxu0 0
      %840 = vmatpush1.bf16.msra.mxu0 0
      %841 = vmatprep.subr.bf16.mxu0 0
      %842 = vmatpush1.bf16.msra.mxu0 0
      %843 = vmatprep.subr.bf16.mxu0 0
      %844 = vmatpush1.bf16.msra.mxu0 0
      %845 = vmatprep.subr.bf16.mxu0 0
      %846 = vmatpush1.bf16.msra.mxu0 0
      %847 = vmatprep.mubr.bf16.mxu0 0
      %848 = vmatmul.mubr.bf16.gmra.mrb[0].mxu0 %v779
      %v849 = vpop.f32.mrb[0].mxu0
      %v850 = vadd.f32 0.0, %v849
      %v851 = vpop.f32.mrb[0].mxu0
      %v852 = vpop.f32.mrb[0].mxu0
      %v853 = vadd.f32 0.0, %v852
      %v854 = vpop.f32.mrb[0].mxu0
      %855 = vmatprep.mubr.bf16.mxu0 0
      %856 = vmatmul.mubr.bf16.gmra.mrb[0].mxu0 %v781
      %v857 = vpop.f32.mrb[0].mxu0
      %v858 = vadd.f32 0.0, %v857
      %v859 = vpop.f32.mrb[0].mxu0
      %v860 = vpop.f32.mrb[0].mxu0
      %v861 = vadd.f32 0.0, %v860
      %v862 = vpop.f32.mrb[0].mxu0
      %863 = vmatprep.mubr.bf16.mxu0 0
      %864 = vmatmul.mubr.bf16.gmra.mrb[0].mxu0 %v783
      %v865 = vpop.f32.mrb[0].mxu0
      %v866 = vadd.f32 0.0, %v865
      %v867 = vpop.f32.mrb[0].mxu0
      %v868 = vpop.f32.mrb[0].mxu0
      %v869 = vadd.f32 0.0, %v868
      %v870 = vpop.f32.mrb[0].mxu0
      %871 = vmatprep.mubr.bf16.mxu0 0
      %872 = vmatmul.mubr.bf16.gmra.mrb[0].mxu0 %v785
      %v873 = vpop.f32.mrb[0].mxu0
      %v874 = vadd.f32 0.0, %v873
      %v875 = vpop.f32.mrb[0].mxu0
      %v876 = vpop.f32.mrb[0].mxu0
      %v877 = vadd.f32 0.0, %v876
      %v878 = vpop.f32.mrb[0].mxu0
      %879 = vmatprep.mubr.bf16.mxu0 0
      %880 = vmatmul.mubr.bf16.gmra.mrb[0].mxu0 %v787
      %v881 = vpop.f32.mrb[0].mxu0
      %v882 = vadd.f32 0.0, %v881
      %v883 = vpop.f32.mrb[0].mxu0
      %v884 = vpop.f32.mrb[0].mxu0
      %v885 = vadd.f32 0.0, %v884
      %v886 = vpop.f32.mrb[0].mxu0
      %887 = vmatprep.mubr.bf16.mxu0 0
      %888 = vmatmul.mubr.bf16.gmra.mrb[0].mxu0 %v789
      %v889 = vpop.f32.mrb[0].mxu0
      %v890 = vadd.f32 0.0, %v889
      %v891 = vpop.f32.mrb[0].mxu0
      %v892 = vpop.f32.mrb[0].mxu0
      %v893 = vadd.f32 0.0, %v892
      %v894 = vpop.f32.mrb[0].mxu0
      %895 = vmatprep.mubr.bf16.mxu0 0
      %896 = vmatmul.mubr.bf16.gmra.mrb[0].mxu0 %v791
      %v897 = vpop.f32.mrb[0].mxu0
      %v898 = vadd.f32 0.0, %v897
      %v899 = vpop.f32.mrb[0].mxu0
      %v900 = vpop.f32.mrb[0].mxu0
      %v901 = vadd.f32 0.0, %v900
      %v902 = vpop.f32.mrb[0].mxu0
      %903 = vmatprep.mubr.bf16.mxu0 0
      %904 = vmatmul.mubr.bf16.gmra.mrb[0].mxu0 %v793
      %v905 = vpop.f32.mrb[0].mxu0
      %v906 = vadd.f32 0.0, %v905
      %v907 = vpop.f32.mrb[0].mxu0
      %v908 = vpop.f32.mrb[0].mxu0
      %v909 = vadd.f32 0.0, %v908
      %v910 = vpop.f32.mrb[0].mxu0
      %911 = vmatprep.mubr.bf16.mxu0 0
      %912 = vmatmul.mubr.bf16.gmra.mrb[0].mxu0 %v795
      %v913 = vpop.f32.mrb[0].mxu0
      %v914 = vadd.f32 0.0, %v913
      %v915 = vpop.f32.mrb[0].mxu0
      %v916 = vpop.f32.mrb[0].mxu0
      %v917 = vadd.f32 0.0, %v916
      %v918 = vpop.f32.mrb[0].mxu0
      %919 = vmatprep.mubr.bf16.mxu0 0
      %920 = vmatmul.mubr.bf16.gmra.mrb[0].mxu0 %v797
      %v921 = vpop.f32.mrb[0].mxu0
      %v922 = vadd.f32 0.0, %v921
      %v923 = vpop.f32.mrb[0].mxu0
      %v924 = vpop.f32.mrb[0].mxu0
      %v925 = vadd.f32 0.0, %v924
      %v926 = vpop.f32.mrb[0].mxu0
      %927 = vmatprep.mubr.bf16.mxu0 0
      %928 = vmatmul.mubr.bf16.gmra.mrb[0].mxu0 %v799
      %v929 = vpop.f32.mrb[0].mxu0
      %v930 = vadd.f32 0.0, %v929
      %v931 = vpop.f32.mrb[0].mxu0
      %v932 = vpop.f32.mrb[0].mxu0
      %v933 = vadd.f32 0.0, %v932
      %v934 = vpop.f32.mrb[0].mxu0
      %935 = vmatprep.mubr.bf16.mxu0 0
      %936 = vmatmul.mubr.bf16.gmra.mrb[0].mxu0 %v801
      %v937 = vpop.f32.mrb[0].mxu0
      %v938 = vadd.f32 0.0, %v937
      %v939 = vpop.f32.mrb[0].mxu0
      %v940 = vpop.f32.mrb[0].mxu0
      %v941 = vadd.f32 0.0, %v940
      %v942 = vpop.f32.mrb[0].mxu0
      %943 = vmatprep.mubr.bf16.mxu0 0
      %944 = vmatmul.mubr.bf16.gmra.mrb[0].mxu0 %v803
      %v945 = vpop.f32.mrb[0].mxu0
      %v946 = vadd.f32 0.0, %v945
      %v947 = vpop.f32.mrb[0].mxu0
      %v948 = vpop.f32.mrb[0].mxu0
      %v949 = vadd.f32 0.0, %v948
      %v950 = vpop.f32.mrb[0].mxu0
      %951 = vmatprep.mubr.bf16.mxu0 0
      %952 = vmatmul.mubr.bf16.gmra.mrb[0].mxu0 %v805
      %v953 = vpop.f32.mrb[0].mxu0
      %v954 = vadd.f32 0.0, %v953
      %v955 = vpop.f32.mrb[0].mxu0
      %v956 = vpop.f32.mrb[0].mxu0
      %v957 = vadd.f32 0.0, %v956
      %v958 = vpop.f32.mrb[0].mxu0
      %959 = vmatprep.mubr.bf16.mxu0 0
      %960 = vmatmul.mubr.bf16.gmra.mrb[0].mxu0 %v807
      %v961 = vpop.f32.mrb[0].mxu0
      %v962 = vadd.f32 0.0, %v961
      %v963 = vpop.f32.mrb[0].mxu0
      %v964 = vpop.f32.mrb[0].mxu0
      %v965 = vadd.f32 0.0, %v964
      %v966 = vpop.f32.mrb[0].mxu0
      %967 = vmatprep.mubr.bf16.mxu0 0
      %968 = vmatmul.mubr.bf16.gmra.mrb[0].mxu0 %v809
      %v969 = vpop.f32.mrb[0].mxu0
      %v970 = vadd.f32 0.0, %v969
      %v971 = vpop.f32.mrb[0].mxu0
      %v972 = vpop.f32.mrb[0].mxu0
      %v973 = vadd.f32 0.0, %v972
      %v974 = vpop.f32.mrb[0].mxu0
      %975 = vdwg.mxu0
      %976 = vst.msk [vmem:[#allocation2] sm:$0xff] %vm676, %v850
      %977 = vst.msk [vmem:[#allocation2 + $0x8] sm:$0xff] %vm676, %v853
      %978 = vst.msk [vmem:[#allocation2 + $0x10] sm:$0xff] %vm676, %v858
      %979 = vst.msk [vmem:[#allocation2 + $0x18] sm:$0xff] %vm676, %v861
      %980 = vst.msk [vmem:[#allocation2 + $0x20] sm:$0xff] %vm676, %v866
      %981 = vst.msk [vmem:[#allocation2 + $0x28] sm:$0xff] %vm676, %v869
      %982 = vst.msk [vmem:[#allocation2 + $0x30] sm:$0xff] %vm676, %v874
      %983 = vst.msk [vmem:[#allocation2 + $0x38] sm:$0xff] %vm676, %v877
      %984 = vst.msk [vmem:[#allocation2 + $0x40] sm:$0xff] %vm676, %v882
      %985 = vst.msk [vmem:[#allocation2 + $0x48] sm:$0xff] %vm676, %v885
      %986 = vst.msk [vmem:[#allocation2 + $0x50] sm:$0xff] %vm676, %v890
      %987 = vst.msk [vmem:[#allocation2 + $0x58] sm:$0xff] %vm676, %v893
      %988 = vst.msk [vmem:[#allocation2 + $0x60] sm:$0xff] %vm676, %v898
      %989 = vst.msk [vmem:[#allocation2 + $0x68] sm:$0xff] %vm676, %v901
      %990 = vst.msk [vmem:[#allocation2 + $0x70] sm:$0xff] %vm676, %v906
      %991 = vst.msk [vmem:[#allocation2 + $0x78] sm:$0xff] %vm676, %v909
      %992 = vst.msk [vmem:[#allocation2 + $0x80] sm:$0xff] %vm676, %v914
      %993 = vst.msk [vmem:[#allocation2 + $0x88] sm:$0xff] %vm676, %v917
      %994 = vst.msk [vmem:[#allocation2 + $0x90] sm:$0xff] %vm676, %v922
      %995 = vst.msk [vmem:[#allocation2 + $0x98] sm:$0xff] %vm676, %v925
      %996 = vst.msk [vmem:[#allocation2 + $0xa0] sm:$0xff] %vm676, %v930
      %997 = vst.msk [vmem:[#allocation2 + $0xa8] sm:$0xff] %vm676, %v933
      %998 = vst.msk [vmem:[#allocation2 + $0xb0] sm:$0xff] %vm676, %v938
      %999 = vst.msk [vmem:[#allocation2 + $0xb8] sm:$0xff] %vm676, %v941
      %1000 = vst.msk [vmem:[#allocation2 + $0xc0] sm:$0xff] %vm676, %v946
      %1001 = vst.msk [vmem:[#allocation2 + $0xc8] sm:$0xff] %vm676, %v949
      %1002 = vst.msk [vmem:[#allocation2 + $0xd0] sm:$0xff] %vm676, %v954
      %1003 = vst.msk [vmem:[#allocation2 + $0xd8] sm:$0xff] %vm676, %v957
      %1004 = vst.msk [vmem:[#allocation2 + $0xe0] sm:$0xff] %vm676, %v962
      %1005 = vst.msk [vmem:[#allocation2 + $0xe8] sm:$0xff] %vm676, %v965
      %1006 = vst.msk [vmem:[#allocation2 + $0xf0] sm:$0xff] %vm676, %v970
      %1007 = vst.msk [vmem:[#allocation2 + $0xf8] sm:$0xff] %vm676, %v973
      %v1008 = vld [vmem:[#allocation2 + $0x10] sm:$0xff]
      %v1009 = vld [vmem:[#allocation2 + $0x18] sm:$0xff]
      %v1010 = vld [vmem:[#allocation2 + $0x20] sm:$0xff]
      %v1011 = vld [vmem:[#allocation2 + $0x28] sm:$0xff]
      %v1012 = vld [vmem:[#allocation2 + $0x30] sm:$0xff]
      %v1013 = vld [vmem:[#allocation2 + $0x38] sm:$0xff]
      %v1014 = vld [vmem:[#allocation2 + $0x40] sm:$0xff]
      %v1015 = vld [vmem:[#allocation2 + $0x48] sm:$0xff]
      %v1016 = vld [vmem:[#allocation2 + $0x50] sm:$0xff]
      %v1017 = vld [vmem:[#allocation2 + $0x58] sm:$0xff]
      %v1018 = vld [vmem:[#allocation2 + $0x60] sm:$0xff]
      %v1019 = vld [vmem:[#allocation2 + $0x68] sm:$0xff]
      %v1020 = vld [vmem:[#allocation2 + $0x70] sm:$0xff]
      %v1021 = vld [vmem:[#allocation2 + $0x78] sm:$0xff]
      %v1022 = vld [vmem:[#allocation2 + $0x80] sm:$0xff]
      %v1023 = vld [vmem:[#allocation2 + $0x88] sm:$0xff]
      %v1024 = vld [vmem:[#allocation2 + $0x90] sm:$0xff]
      %v1025 = vld [vmem:[#allocation2 + $0x98] sm:$0xff]
      %v1026 = vld [vmem:[#allocation2 + $0xa0] sm:$0xff]
      %v1027 = vld [vmem:[#allocation2 + $0xa8] sm:$0xff]
      %v1028 = vld [vmem:[#allocation2 + $0xb0] sm:$0xff]
      %v1029 = vld [vmem:[#allocation2 + $0xb8] sm:$0xff]
      %v1030 = vld [vmem:[#allocation2 + $0xc0] sm:$0xff]
      %v1031 = vld [vmem:[#allocation2 + $0xc8] sm:$0xff]
      %v1032 = vld [vmem:[#allocation2 + $0xd0] sm:$0xff]
      %v1033 = vld [vmem:[#allocation2 + $0xd8] sm:$0xff]
      %v1034 = vld [vmem:[#allocation2 + $0xe0] sm:$0xff]
      %v1035 = vld [vmem:[#allocation2 + $0xe8] sm:$0xff]
      %v1036 = vld [vmem:[#allocation2 + $0xf0] sm:$0xff]
      %v1037 = vld [vmem:[#allocation2 + $0xf8] sm:$0xff]
      %v1041 = vunpack.c.l.b16 %v758
      %v1042 = vunpack.c.l.b16 %v759
      %v1043 = vunpack.c.l.b16 %v760
      %v1044 = vpack.c.b16 %v1042, %v1041
      %v1045 = vpack.c.b16 %v1043, %v1043
      %v1048 = vsel %vm811, %v1045, 0
      %1050 = vmatprep.subr.bf16.mxu0 0
      %1051 = vmatpush1.bf16.msra.mxu0 %v1044
      %1052 = vmatprep.subr.bf16.mxu0 0
      %1053 = vmatpush1.bf16.msra.mxu0 %v1048
      %1054 = vmatprep.subr.bf16.mxu0 0
      %1055 = vmatpush1.bf16.msra.mxu0 0
      %1056 = vmatprep.subr.bf16.mxu0 0
      %1057 = vmatpush1.bf16.msra.mxu0 0
      %1058 = vmatprep.subr.bf16.mxu0 0
      %1059 = vmatpush1.bf16.msra.mxu0 0
      %1060 = vmatprep.subr.bf16.mxu0 0
      %1061 = vmatpush1.bf16.msra.mxu0 0
      %1062 = vmatprep.subr.bf16.mxu0 0
      %1063 = vmatpush1.bf16.msra.mxu0 0
      %1064 = vmatprep.subr.bf16.mxu0 0
      %1065 = vmatpush1.bf16.msra.mxu0 0
      %1066 = vmatprep.subr.bf16.mxu0 0
      %1067 = vmatpush1.bf16.msra.mxu0 0
      %1068 = vmatprep.subr.bf16.mxu0 0
      %1069 = vmatpush1.bf16.msra.mxu0 0
      %1070 = vmatprep.subr.bf16.mxu0 0
      %1071 = vmatpush1.bf16.msra.mxu0 0
      %1072 = vmatprep.subr.bf16.mxu0 0
      %1073 = vmatpush1.bf16.msra.mxu0 0
      %1074 = vmatprep.subr.bf16.mxu0 0
      %1075 = vmatpush1.bf16.msra.mxu0 0
      %1076 = vmatprep.subr.bf16.mxu0 0
      %1077 = vmatpush1.bf16.msra.mxu0 0
      %1078 = vmatprep.subr.bf16.mxu0 0
      %1079 = vmatpush1.bf16.msra.mxu0 0
      %1080 = vmatprep.subr.bf16.mxu0 0
      %1081 = vmatpush1.bf16.msra.mxu0 0
      %1082 = vmatprep.mubr.bf16.mxu0 0
      %1083 = vmatmul.mubr.bf16.gmra.mrb[0].mxu0 %v779
      %v1084 = vpop.f32.mrb[0].mxu0
      %v1085 = vadd.f32 0.0, %v1084
      %v1086 = vpop.f32.mrb[0].mxu0
      %v1087 = vpop.f32.mrb[0].mxu0
      %v1088 = vadd.f32 0.0, %v1087
      %v1089 = vpop.f32.mrb[0].mxu0
      %1090 = vmatprep.mubr.bf16.mxu0 0
      %1091 = vmatmul.mubr.bf16.gmra.mrb[0].mxu0 %v781
      %v1092 = vpop.f32.mrb[0].mxu0
      %v1093 = vadd.f32 0.0, %v1092
      %v1094 = vpop.f32.mrb[0].mxu0
      %v1095 = vpop.f32.mrb[0].mxu0
      %v1096 = vadd.f32 0.0, %v1095
      %v1097 = vpop.f32.mrb[0].mxu0
      %1098 = vmatprep.mubr.bf16.mxu0 0
      %1099 = vmatmul.mubr.bf16.gmra.mrb[0].mxu0 %v783
      %v1100 = vpop.f32.mrb[0].mxu0
      %v1101 = vadd.f32 0.0, %v1100
      %v1102 = vpop.f32.mrb[0].mxu0
      %v1103 = vpop.f32.mrb[0].mxu0
      %v1104 = vadd.f32 0.0, %v1103
      %v1105 = vpop.f32.mrb[0].mxu0
      %1106 = vmatprep.mubr.bf16.mxu0 0
      %1107 = vmatmul.mubr.bf16.gmra.mrb[0].mxu0 %v785
      %v1108 = vpop.f32.mrb[0].mxu0
      %v1109 = vadd.f32 0.0, %v1108
      %v1110 = vpop.f32.mrb[0].mxu0
      %v1111 = vpop.f32.mrb[0].mxu0
      %v1112 = vadd.f32 0.0, %v1111
      %v1113 = vpop.f32.mrb[0].mxu0
      %1114 = vmatprep.mubr.bf16.mxu0 0
      %1115 = vmatmul.mubr.bf16.gmra.mrb[0].mxu0 %v787
      %v1116 = vpop.f32.mrb[0].mxu0
      %v1117 = vadd.f32 0.0, %v1116
      %v1118 = vpop.f32.mrb[0].mxu0
      %v1119 = vpop.f32.mrb[0].mxu0
      %v1120 = vadd.f32 0.0, %v1119
      %v1121 = vpop.f32.mrb[0].mxu0
      %1122 = vmatprep.mubr.bf16.mxu0 0
      %1123 = vmatmul.mubr.bf16.gmra.mrb[0].mxu0 %v789
      %v1124 = vpop.f32.mrb[0].mxu0
      %v1125 = vadd.f32 0.0, %v1124
      %v1126 = vpop.f32.mrb[0].mxu0
      %v1127 = vpop.f32.mrb[0].mxu0
      %v1128 = vadd.f32 0.0, %v1127
      %v1129 = vpop.f32.mrb[0].mxu0
      %1130 = vmatprep.mubr.bf16.mxu0 0
      %1131 = vmatmul.mubr.bf16.gmra.mrb[0].mxu0 %v791
      %v1132 = vpop.f32.mrb[0].mxu0
      %v1133 = vadd.f32 0.0, %v1132
      %v1134 = vpop.f32.mrb[0].mxu0
      %v1135 = vpop.f32.mrb[0].mxu0
      %v1136 = vadd.f32 0.0, %v1135
      %v1137 = vpop.f32.mrb[0].mxu0
      %1138 = vmatprep.mubr.bf16.mxu0 0
      %1139 = vmatmul.mubr.bf16.gmra.mrb[0].mxu0 %v793
      %v1140 = vpop.f32.mrb[0].mxu0
      %v1141 = vadd.f32 0.0, %v1140
      %v1142 = vpop.f32.mrb[0].mxu0
      %v1143 = vpop.f32.mrb[0].mxu0
      %v1144 = vadd.f32 0.0, %v1143
      %v1145 = vpop.f32.mrb[0].mxu0
      %1146 = vmatprep.mubr.bf16.mxu0 0
      %1147 = vmatmul.mubr.bf16.gmra.mrb[0].mxu0 %v795
      %v1148 = vpop.f32.mrb[0].mxu0
      %v1149 = vadd.f32 0.0, %v1148
      %v1150 = vpop.f32.mrb[0].mxu0
      %v1151 = vpop.f32.mrb[0].mxu0
      %v1152 = vadd.f32 0.0, %v1151
      %v1153 = vpop.f32.mrb[0].mxu0
      %1154 = vmatprep.mubr.bf16.mxu0 0
      %1155 = vmatmul.mubr.bf16.gmra.mrb[0].mxu0 %v797
      %v1156 = vpop.f32.mrb[0].mxu0
      %v1157 = vadd.f32 0.0, %v1156
      %v1158 = vpop.f32.mrb[0].mxu0
      %v1159 = vpop.f32.mrb[0].mxu0
      %v1160 = vadd.f32 0.0, %v1159
      %v1161 = vpop.f32.mrb[0].mxu0
      %1162 = vmatprep.mubr.bf16.mxu0 0
      %1163 = vmatmul.mubr.bf16.gmra.mrb[0].mxu0 %v799
      %v1164 = vpop.f32.mrb[0].mxu0
      %v1165 = vadd.f32 0.0, %v1164
      %v1166 = vpop.f32.mrb[0].mxu0
      %v1167 = vpop.f32.mrb[0].mxu0
      %v1168 = vadd.f32 0.0, %v1167
      %v1169 = vpop.f32.mrb[0].mxu0
      %1170 = vmatprep.mubr.bf16.mxu0 0
      %1171 = vmatmul.mubr.bf16.gmra.mrb[0].mxu0 %v801
      %v1172 = vpop.f32.mrb[0].mxu0
      %v1173 = vadd.f32 0.0, %v1172
      %v1174 = vpop.f32.mrb[0].mxu0
      %v1175 = vpop.f32.mrb[0].mxu0
      %v1176 = vadd.f32 0.0, %v1175
      %v1177 = vpop.f32.mrb[0].mxu0
      %1178 = vmatprep.mubr.bf16.mxu0 0
      %1179 = vmatmul.mubr.bf16.gmra.mrb[0].mxu0 %v803
      %v1180 = vpop.f32.mrb[0].mxu0
      %v1181 = vadd.f32 0.0, %v1180
      %v1182 = vpop.f32.mrb[0].mxu0
      %v1183 = vpop.f32.mrb[0].mxu0
      %v1184 = vadd.f32 0.0, %v1183
      %v1185 = vpop.f32.mrb[0].mxu0
      %1186 = vmatprep.mubr.bf16.mxu0 0
      %1187 = vmatmul.mubr.bf16.gmra.mrb[0].mxu0 %v805
      %v1188 = vpop.f32.mrb[0].mxu0
      %v1189 = vadd.f32 0.0, %v1188
      %v1190 = vpop.f32.mrb[0].mxu0
      %v1191 = vpop.f32.mrb[0].mxu0
      %v1192 = vadd.f32 0.0, %v1191
      %v1193 = vpop.f32.mrb[0].mxu0
      %1194 = vmatprep.mubr.bf16.mxu0 0
      %1195 = vmatmul.mubr.bf16.gmra.mrb[0].mxu0 %v807
      %v1196 = vpop.f32.mrb[0].mxu0
      %v1197 = vadd.f32 0.0, %v1196
      %v1198 = vpop.f32.mrb[0].mxu0
      %v1199 = vpop.f32.mrb[0].mxu0
      %v1200 = vadd.f32 0.0, %v1199
      %v1201 = vpop.f32.mrb[0].mxu0
      %1202 = vdwg.mxu0
      %v1203 = vadd.f32 %v1008, %v1085
      %v1204 = vadd.f32 %v1009, %v1088
      %v1205 = vadd.f32 %v1010, %v1093
      %v1206 = vadd.f32 %v1011, %v1096
      %v1207 = vadd.f32 %v1012, %v1101
      %v1208 = vadd.f32 %v1013, %v1104
      %v1209 = vadd.f32 %v1014, %v1109
      %v1210 = vadd.f32 %v1015, %v1112
      %v1211 = vadd.f32 %v1016, %v1117
      %v1212 = vadd.f32 %v1017, %v1120
      %v1213 = vadd.f32 %v1018, %v1125
      %v1214 = vadd.f32 %v1019, %v1128
      %v1215 = vadd.f32 %v1020, %v1133
      %v1216 = vadd.f32 %v1021, %v1136
      %v1217 = vadd.f32 %v1022, %v1141
      %v1218 = vadd.f32 %v1023, %v1144
      %v1219 = vadd.f32 %v1024, %v1149
      %v1220 = vadd.f32 %v1025, %v1152
      %v1221 = vadd.f32 %v1026, %v1157
      %v1222 = vadd.f32 %v1027, %v1160
      %v1223 = vadd.f32 %v1028, %v1165
      %v1224 = vadd.f32 %v1029, %v1168
      %v1225 = vadd.f32 %v1030, %v1173
      %v1226 = vadd.f32 %v1031, %v1176
      %v1227 = vadd.f32 %v1032, %v1181
      %v1228 = vadd.f32 %v1033, %v1184
      %v1229 = vadd.f32 %v1034, %v1189
      %v1230 = vadd.f32 %v1035, %v1192
      %v1231 = vadd.f32 %v1036, %v1197
      %v1232 = vadd.f32 %v1037, %v1200
      %1233 = vst.msk [vmem:[#allocation2 + $0x10] sm:$0xff] %vm676, %v1203
      %1234 = vst.msk [vmem:[#allocation2 + $0x18] sm:$0xff] %vm676, %v1204
      %1235 = vst.msk [vmem:[#allocation2 + $0x20] sm:$0xff] %vm676, %v1205
      %1236 = vst.msk [vmem:[#allocation2 + $0x28] sm:$0xff] %vm676, %v1206
      %1237 = vst.msk [vmem:[#allocation2 + $0x30] sm:$0xff] %vm676, %v1207
      %1238 = vst.msk [vmem:[#allocation2 + $0x38] sm:$0xff] %vm676, %v1208
      %1239 = vst.msk [vmem:[#allocation2 + $0x40] sm:$0xff] %vm676, %v1209
      %1240 = vst.msk [vmem:[#allocation2 + $0x48] sm:$0xff] %vm676, %v1210
      %1241 = vst.msk [vmem:[#allocation2 + $0x50] sm:$0xff] %vm676, %v1211
      %1242 = vst.msk [vmem:[#allocation2 + $0x58] sm:$0xff] %vm676, %v1212
      %1243 = vst.msk [vmem:[#allocation2 + $0x60] sm:$0xff] %vm676, %v1213
      %1244 = vst.msk [vmem:[#allocation2 + $0x68] sm:$0xff] %vm676, %v1214
      %1245 = vst.msk [vmem:[#allocation2 + $0x70] sm:$0xff] %vm676, %v1215
      %1246 = vst.msk [vmem:[#allocation2 + $0x78] sm:$0xff] %vm676, %v1216
      %1247 = vst.msk [vmem:[#allocation2 + $0x80] sm:$0xff] %vm676, %v1217
      %1248 = vst.msk [vmem:[#allocation2 + $0x88] sm:$0xff] %vm676, %v1218
      %1249 = vst.msk [vmem:[#allocation2 + $0x90] sm:$0xff] %vm676, %v1219
      %1250 = vst.msk [vmem:[#allocation2 + $0x98] sm:$0xff] %vm676, %v1220
      %1251 = vst.msk [vmem:[#allocation2 + $0xa0] sm:$0xff] %vm676, %v1221
      %1252 = vst.msk [vmem:[#allocation2 + $0xa8] sm:$0xff] %vm676, %v1222
      %1253 = vst.msk [vmem:[#allocation2 + $0xb0] sm:$0xff] %vm676, %v1223
      %1254 = vst.msk [vmem:[#allocation2 + $0xb8] sm:$0xff] %vm676, %v1224
      %1255 = vst.msk [vmem:[#allocation2 + $0xc0] sm:$0xff] %vm676, %v1225
      %1256 = vst.msk [vmem:[#allocation2 + $0xc8] sm:$0xff] %vm676, %v1226
      %1257 = vst.msk [vmem:[#allocation2 + $0xd0] sm:$0xff] %vm676, %v1227
      %1258 = vst.msk [vmem:[#allocation2 + $0xd8] sm:$0xff] %vm676, %v1228
      %1259 = vst.msk [vmem:[#allocation2 + $0xe0] sm:$0xff] %vm676, %v1229
      %1260 = vst.msk [vmem:[#allocation2 + $0xe8] sm:$0xff] %vm676, %v1230
      %1261 = vst.msk [vmem:[#allocation2 + $0xf0] sm:$0xff] %vm676, %v1231
      %1262 = vst.msk [vmem:[#allocation2 + $0xf8] sm:$0xff] %vm676, %v1232
      %v1263 = vld [vmem:[#allocation2] sm:$0xff]
      %v1264 = vld [vmem:[#allocation2 + $0x8] sm:$0xff]
      %v1265 = vld [vmem:[#allocation2 + $0x10] sm:$0xff]
      %v1266 = vld [vmem:[#allocation2 + $0x18] sm:$0xff]
      %v1267 = vld [vmem:[#allocation2 + $0x20] sm:$0xff]
      %v1268 = vld [vmem:[#allocation2 + $0x28] sm:$0xff]
      %v1269 = vld [vmem:[#allocation2 + $0x30] sm:$0xff]
      %v1270 = vld [vmem:[#allocation2 + $0x38] sm:$0xff]
      %v1271 = vld [vmem:[#allocation2 + $0x40] sm:$0xff]
      %v1272 = vld [vmem:[#allocation2 + $0x48] sm:$0xff]
      %v1273 = vld [vmem:[#allocation2 + $0x50] sm:$0xff]
      %v1274 = vld [vmem:[#allocation2 + $0x58] sm:$0xff]
      %v1275 = vld [vmem:[#allocation2 + $0x60] sm:$0xff]
      %v1276 = vld [vmem:[#allocation2 + $0x68] sm:$0xff]
      %v1277 = vld [vmem:[#allocation2 + $0x70] sm:$0xff]
      %v1278 = vld [vmem:[#allocation2 + $0x78] sm:$0xff]
      %v1279 = vld [vmem:[#allocation2 + $0x80] sm:$0xff]
      %v1280 = vld [vmem:[#allocation2 + $0x88] sm:$0xff]
      %v1281 = vld [vmem:[#allocation2 + $0x90] sm:$0xff]
      %v1282 = vld [vmem:[#allocation2 + $0x98] sm:$0xff]
      %v1283 = vld [vmem:[#allocation2 + $0xa0] sm:$0xff]
      %v1284 = vld [vmem:[#allocation2 + $0xa8] sm:$0xff]
      %v1285 = vld [vmem:[#allocation2 + $0xb0] sm:$0xff]
      %v1286 = vld [vmem:[#allocation2 + $0xb8] sm:$0xff]
      %v1287 = vld [vmem:[#allocation2 + $0xc0] sm:$0xff]
      %v1288 = vld [vmem:[#allocation2 + $0xc8] sm:$0xff]
      %v1289 = vld [vmem:[#allocation2 + $0xd0] sm:$0xff]
      %v1290 = vld [vmem:[#allocation2 + $0xd8] sm:$0xff]
      %v1291 = vld [vmem:[#allocation2 + $0xe0] sm:$0xff]
      %v1292 = vld [vmem:[#allocation2 + $0xe8] sm:$0xff]
      %v1296 = vunpack.c.l.b16 %v766
      %v1297 = vunpack.c.l.b16 %v767
      %v1298 = vunpack.c.l.b16 %v768
      %v1299 = vpack.c.b16 %v1297, %v1296
      %v1300 = vpack.c.b16 %v1298, %v1298
      %v1303 = vsel %vm811, %v1300, 0
      %1305 = vmatprep.subr.bf16.mxu0 0
      %1306 = vmatpush1.bf16.msra.mxu0 %v1299
      %1307 = vmatprep.subr.bf16.mxu0 0
      %1308 = vmatpush1.bf16.msra.mxu0 %v1303
      %1309 = vmatprep.subr.bf16.mxu0 0
      %1310 = vmatpush1.bf16.msra.mxu0 0
      %1311 = vmatprep.subr.bf16.mxu0 0
      %1312 = vmatpush1.bf16.msra.mxu0 0
      %1313 = vmatprep.subr.bf16.mxu0 0
      %1314 = vmatpush1.bf16.msra.mxu0 0
      %1315 = vmatprep.subr.bf16.mxu0 0
      %1316 = vmatpush1.bf16.msra.mxu0 0
      %1317 = vmatprep.subr.bf16.mxu0 0
      %1318 = vmatpush1.bf16.msra.mxu0 0
      %1319 = vmatprep.subr.bf16.mxu0 0
      %1320 = vmatpush1.bf16.msra.mxu0 0
      %1321 = vmatprep.subr.bf16.mxu0 0
      %1322 = vmatpush1.bf16.msra.mxu0 0
      %1323 = vmatprep.subr.bf16.mxu0 0
      %1324 = vmatpush1.bf16.msra.mxu0 0
      %1325 = vmatprep.subr.bf16.mxu0 0
      %1326 = vmatpush1.bf16.msra.mxu0 0
      %1327 = vmatprep.subr.bf16.mxu0 0
      %1328 = vmatpush1.bf16.msra.mxu0 0
      %1329 = vmatprep.subr.bf16.mxu0 0
      %1330 = vmatpush1.bf16.msra.mxu0 0
      %1331 = vmatprep.subr.bf16.mxu0 0
      %1332 = vmatpush1.bf16.msra.mxu0 0
      %1333 = vmatprep.subr.bf16.mxu0 0
      %1334 = vmatpush1.bf16.msra.mxu0 0
      %1335 = vmatprep.subr.bf16.mxu0 0
      %1336 = vmatpush1.bf16.msra.mxu0 0
      %1337 = vmatprep.mubr.bf16.mxu0 0
      %1338 = vmatmul.mubr.bf16.gmra.mrb[0].mxu0 %v781
      %v1339 = vpop.f32.mrb[0].mxu0
      %v1340 = vadd.f32 0.0, %v1339
      %v1341 = vpop.f32.mrb[0].mxu0
      %v1342 = vpop.f32.mrb[0].mxu0
      %v1343 = vadd.f32 0.0, %v1342
      %v1344 = vpop.f32.mrb[0].mxu0
      %1345 = vmatprep.mubr.bf16.mxu0 0
      %1346 = vmatmul.mubr.bf16.gmra.mrb[0].mxu0 %v783
      %v1347 = vpop.f32.mrb[0].mxu0
      %v1348 = vadd.f32 0.0, %v1347
      %v1349 = vpop.f32.mrb[0].mxu0
      %v1350 = vpop.f32.mrb[0].mxu0
      %v1351 = vadd.f32 0.0, %v1350
      %v1352 = vpop.f32.mrb[0].mxu0
      %1353 = vmatprep.mubr.bf16.mxu0 0
      %1354 = vmatmul.mubr.bf16.gmra.mrb[0].mxu0 %v785
      %v1355 = vpop.f32.mrb[0].mxu0
      %v1356 = vadd.f32 0.0, %v1355
      %v1357 = vpop.f32.mrb[0].mxu0
      %v1358 = vpop.f32.mrb[0].mxu0
      %v1359 = vadd.f32 0.0, %v1358
      %v1360 = vpop.f32.mrb[0].mxu0
      %1361 = vmatprep.mubr.bf16.mxu0 0
      %1362 = vmatmul.mubr.bf16.gmra.mrb[0].mxu0 %v787
      %v1363 = vpop.f32.mrb[0].mxu0
      %v1364 = vadd.f32 0.0, %v1363
      %v1365 = vpop.f32.mrb[0].mxu0
      %v1366 = vpop.f32.mrb[0].mxu0
      %v1367 = vadd.f32 0.0, %v1366
      %v1368 = vpop.f32.mrb[0].mxu0
      %1369 = vmatprep.mubr.bf16.mxu0 0
      %1370 = vmatmul.mubr.bf16.gmra.mrb[0].mxu0 %v789
      %v1371 = vpop.f32.mrb[0].mxu0
      %v1372 = vadd.f32 0.0, %v1371
      %v1373 = vpop.f32.mrb[0].mxu0
      %v1374 = vpop.f32.mrb[0].mxu0
      %v1375 = vadd.f32 0.0, %v1374
      %v1376 = vpop.f32.mrb[0].mxu0
      %1377 = vmatprep.mubr.bf16.mxu0 0
      %1378 = vmatmul.mubr.bf16.gmra.mrb[0].mxu0 %v791
      %v1379 = vpop.f32.mrb[0].mxu0
      %v1380 = vadd.f32 0.0, %v1379
      %v1381 = vpop.f32.mrb[0].mxu0
      %v1382 = vpop.f32.mrb[0].mxu0
      %v1383 = vadd.f32 0.0, %v1382
      %v1384 = vpop.f32.mrb[0].mxu0
      %1385 = vmatprep.mubr.bf16.mxu0 0
      %1386 = vmatmul.mubr.bf16.gmra.mrb[0].mxu0 %v793
      %v1387 = vpop.f32.mrb[0].mxu0
      %v1388 = vadd.f32 0.0, %v1387
      %v1389 = vpop.f32.mrb[0].mxu0
      %v1390 = vpop.f32.mrb[0].mxu0
      %v1391 = vadd.f32 0.0, %v1390
      %v1392 = vpop.f32.mrb[0].mxu0
      %1393 = vmatprep.mubr.bf16.mxu0 0
      %1394 = vmatmul.mubr.bf16.gmra.mrb[0].mxu0 %v795
      %v1395 = vpop.f32.mrb[0].mxu0
      %v1396 = vadd.f32 0.0, %v1395
      %v1397 = vpop.f32.mrb[0].mxu0
      %v1398 = vpop.f32.mrb[0].mxu0
      %v1399 = vadd.f32 0.0, %v1398
      %v1400 = vpop.f32.mrb[0].mxu0
      %1401 = vmatprep.mubr.bf16.mxu0 0
      %1402 = vmatmul.mubr.bf16.gmra.mrb[0].mxu0 %v797
      %v1403 = vpop.f32.mrb[0].mxu0
      %v1404 = vadd.f32 0.0, %v1403
      %v1405 = vpop.f32.mrb[0].mxu0
      %v1406 = vpop.f32.mrb[0].mxu0
      %v1407 = vadd.f32 0.0, %v1406
      %v1408 = vpop.f32.mrb[0].mxu0
      %1409 = vmatprep.mubr.bf16.mxu0 0
      %1410 = vmatmul.mubr.bf16.gmra.mrb[0].mxu0 %v799
      %v1411 = vpop.f32.mrb[0].mxu0
      %v1412 = vadd.f32 0.0, %v1411
      %v1413 = vpop.f32.mrb[0].mxu0
      %v1414 = vpop.f32.mrb[0].mxu0
      %v1415 = vadd.f32 0.0, %v1414
      %v1416 = vpop.f32.mrb[0].mxu0
      %1417 = vmatprep.mubr.bf16.mxu0 0
      %1418 = vmatmul.mubr.bf16.gmra.mrb[0].mxu0 %v801
      %v1419 = vpop.f32.mrb[0].mxu0
      %v1420 = vadd.f32 0.0, %v1419
      %v1421 = vpop.f32.mrb[0].mxu0
      %v1422 = vpop.f32.mrb[0].mxu0
      %v1423 = vadd.f32 0.0, %v1422
      %v1424 = vpop.f32.mrb[0].mxu0
      %1425 = vmatprep.mubr.bf16.mxu0 0
      %1426 = vmatmul.mubr.bf16.gmra.mrb[0].mxu0 %v803
      %v1427 = vpop.f32.mrb[0].mxu0
      %v1428 = vadd.f32 0.0, %v1427
      %v1429 = vpop.f32.mrb[0].mxu0
      %v1430 = vpop.f32.mrb[0].mxu0
      %v1431 = vadd.f32 0.0, %v1430
      %v1432 = vpop.f32.mrb[0].mxu0
      %1433 = vmatprep.mubr.bf16.mxu0 0
      %1434 = vmatmul.mubr.bf16.gmra.mrb[0].mxu0 %v805
      %v1435 = vpop.f32.mrb[0].mxu0
      %v1436 = vadd.f32 0.0, %v1435
      %v1437 = vpop.f32.mrb[0].mxu0
      %v1438 = vpop.f32.mrb[0].mxu0
      %v1439 = vadd.f32 0.0, %v1438
      %v1440 = vpop.f32.mrb[0].mxu0
      %1441 = vmatprep.mubr.bf16.mxu0 0
      %1442 = vmatmul.mubr.bf16.gmra.mrb[0].mxu0 %v807
      %v1443 = vpop.f32.mrb[0].mxu0
      %v1444 = vadd.f32 0.0, %v1443
      %v1445 = vpop.f32.mrb[0].mxu0
      %v1446 = vpop.f32.mrb[0].mxu0
      %v1447 = vadd.f32 0.0, %v1446
      %v1448 = vpop.f32.mrb[0].mxu0
      %1449 = vmatprep.mubr.bf16.mxu0 0
      %1450 = vmatmul.mubr.bf16.gmra.mrb[0].mxu0 %v809
      %v1451 = vpop.f32.mrb[0].mxu0
      %v1452 = vadd.f32 0.0, %v1451
      %v1453 = vpop.f32.mrb[0].mxu0
      %v1454 = vpop.f32.mrb[0].mxu0
      %v1455 = vadd.f32 0.0, %v1454
      %v1456 = vpop.f32.mrb[0].mxu0
      %1457 = vdwg.mxu0
      %v1458 = vadd.f32 %v1263, %v1340
      %v1459 = vadd.f32 %v1264, %v1343
      %v1460 = vadd.f32 %v1265, %v1348
      %v1461 = vadd.f32 %v1266, %v1351
      %v1462 = vadd.f32 %v1267, %v1356
      %v1463 = vadd.f32 %v1268, %v1359
      %v1464 = vadd.f32 %v1269, %v1364
      %v1465 = vadd.f32 %v1270, %v1367
      %v1466 = vadd.f32 %v1271, %v1372
      %v1467 = vadd.f32 %v1272, %v1375
      %v1468 = vadd.f32 %v1273, %v1380
      %v1469 = vadd.f32 %v1274, %v1383
      %v1470 = vadd.f32 %v1275, %v1388
      %v1471 = vadd.f32 %v1276, %v1391
      %v1472 = vadd.f32 %v1277, %v1396
      %v1473 = vadd.f32 %v1278, %v1399
      %v1474 = vadd.f32 %v1279, %v1404
      %v1475 = vadd.f32 %v1280, %v1407
      %v1476 = vadd.f32 %v1281, %v1412
      %v1477 = vadd.f32 %v1282, %v1415
      %v1478 = vadd.f32 %v1283, %v1420
      %v1479 = vadd.f32 %v1284, %v1423
      %v1480 = vadd.f32 %v1285, %v1428
      %v1481 = vadd.f32 %v1286, %v1431
      %v1482 = vadd.f32 %v1287, %v1436
      %v1483 = vadd.f32 %v1288, %v1439
      %v1484 = vadd.f32 %v1289, %v1444
      %v1485 = vadd.f32 %v1290, %v1447
      %v1486 = vadd.f32 %v1291, %v1452
      %v1487 = vadd.f32 %v1292, %v1455
      %1488 = vst.msk [vmem:[#allocation2] sm:$0xff] %vm676, %v1458
      %1489 = vst.msk [vmem:[#allocation2 + $0x8] sm:$0xff] %vm676, %v1459
      %1490 = vst.msk [vmem:[#allocation2 + $0x10] sm:$0xff] %vm676, %v1460
      %1491 = vst.msk [vmem:[#allocation2 + $0x18] sm:$0xff] %vm676, %v1461
      %1492 = vst.msk [vmem:[#allocation2 + $0x20] sm:$0xff] %vm676, %v1462
      %1493 = vst.msk [vmem:[#allocation2 + $0x28] sm:$0xff] %vm676, %v1463
      %1494 = vst.msk [vmem:[#allocation2 + $0x30] sm:$0xff] %vm676, %v1464
      %1495 = vst.msk [vmem:[#allocation2 + $0x38] sm:$0xff] %vm676, %v1465
      %1496 = vst.msk [vmem:[#allocation2 + $0x40] sm:$0xff] %vm676, %v1466
      %1497 = vst.msk [vmem:[#allocation2 + $0x48] sm:$0xff] %vm676, %v1467
      %1498 = vst.msk [vmem:[#allocation2 + $0x50] sm:$0xff] %vm676, %v1468
      %1499 = vst.msk [vmem:[#allocation2 + $0x58] sm:$0xff] %vm676, %v1469
      %1500 = vst.msk [vmem:[#allocation2 + $0x60] sm:$0xff] %vm676, %v1470
      %1501 = vst.msk [vmem:[#allocation2 + $0x68] sm:$0xff] %vm676, %v1471
      %1502 = vst.msk [vmem:[#allocation2 + $0x70] sm:$0xff] %vm676, %v1472
      %1503 = vst.msk [vmem:[#allocation2 + $0x78] sm:$0xff] %vm676, %v1473
      %1504 = vst.msk [vmem:[#allocation2 + $0x80] sm:$0xff] %vm676, %v1474
      %1505 = vst.msk [vmem:[#allocation2 + $0x88] sm:$0xff] %vm676, %v1475
      %1506 = vst.msk [vmem:[#allocation2 + $0x90] sm:$0xff] %vm676, %v1476
      %1507 = vst.msk [vmem:[#allocation2 + $0x98] sm:$0xff] %vm676, %v1477
      %1508 = vst.msk [vmem:[#allocation2 + $0xa0] sm:$0xff] %vm676, %v1478
      %1509 = vst.msk [vmem:[#allocation2 + $0xa8] sm:$0xff] %vm676, %v1479
      %1510 = vst.msk [vmem:[#allocation2 + $0xb0] sm:$0xff] %vm676, %v1480
      %1511 = vst.msk [vmem:[#allocation2 + $0xb8] sm:$0xff] %vm676, %v1481
      %1512 = vst.msk [vmem:[#allocation2 + $0xc0] sm:$0xff] %vm676, %v1482
      %1513 = vst.msk [vmem:[#allocation2 + $0xc8] sm:$0xff] %vm676, %v1483
      %1514 = vst.msk [vmem:[#allocation2 + $0xd0] sm:$0xff] %vm676, %v1484
      %1515 = vst.msk [vmem:[#allocation2 + $0xd8] sm:$0xff] %vm676, %v1485
      %1516 = vst.msk [vmem:[#allocation2 + $0xe0] sm:$0xff] %vm676, %v1486
      %1517 = vst.msk [vmem:[#allocation2 + $0xe8] sm:$0xff] %vm676, %v1487
      %v1518 = vld [vmem:[#allocation2] sm:$0xff]
      %v1519 = vld [vmem:[#allocation2 + $0x8] sm:$0xff]
      %v1520 = vld [vmem:[#allocation2 + $0x10] sm:$0xff]
      %v1521 = vld [vmem:[#allocation2 + $0x18] sm:$0xff]
      %v1522 = vld [vmem:[#allocation2 + $0x20] sm:$0xff]
      %v1523 = vld [vmem:[#allocation2 + $0x28] sm:$0xff]
      %v1524 = vld [vmem:[#allocation2 + $0x30] sm:$0xff]
      %v1525 = vld [vmem:[#allocation2 + $0x38] sm:$0xff]
      %v1526 = vld [vmem:[#allocation2 + $0x40] sm:$0xff]
      %v1527 = vld [vmem:[#allocation2 + $0x48] sm:$0xff]
      %v1528 = vld [vmem:[#allocation2 + $0x50] sm:$0xff]
      %v1529 = vld [vmem:[#allocation2 + $0x58] sm:$0xff]
      %v1530 = vld [vmem:[#allocation2 + $0x60] sm:$0xff]
      %v1531 = vld [vmem:[#allocation2 + $0x68] sm:$0xff]
      %v1532 = vld [vmem:[#allocation2 + $0x70] sm:$0xff]
      %v1533 = vld [vmem:[#allocation2 + $0x78] sm:$0xff]
      %v1534 = vld [vmem:[#allocation2 + $0x80] sm:$0xff]
      %v1535 = vld [vmem:[#allocation2 + $0x88] sm:$0xff]
      %v1536 = vld [vmem:[#allocation2 + $0x90] sm:$0xff]
      %v1537 = vld [vmem:[#allocation2 + $0x98] sm:$0xff]
      %v1538 = vld [vmem:[#allocation2 + $0xa0] sm:$0xff]
      %v1539 = vld [vmem:[#allocation2 + $0xa8] sm:$0xff]
      %v1540 = vld [vmem:[#allocation2 + $0xb0] sm:$0xff]
      %v1541 = vld [vmem:[#allocation2 + $0xb8] sm:$0xff]
      %v1542 = vld [vmem:[#allocation2 + $0xc0] sm:$0xff]
      %v1543 = vld [vmem:[#allocation2 + $0xc8] sm:$0xff]
      %v1544 = vld [vmem:[#allocation2 + $0xd0] sm:$0xff]
      %v1545 = vld [vmem:[#allocation2 + $0xd8] sm:$0xff]
      %v1546 = vld [vmem:[#allocation2 + $0xe0] sm:$0xff]
      %v1547 = vld [vmem:[#allocation2 + $0xe8] sm:$0xff]
      %v1548 = vld [vmem:[#allocation2 + $0xf0] sm:$0xff]
      %v1549 = vld [vmem:[#allocation2 + $0xf8] sm:$0xff]
      %v1550 = vpack.c.bf16 %v1519, %v1518
      %v1551 = vpack.c.bf16 %v1521, %v1520
      %v1552 = vpack.c.bf16 %v1523, %v1522
      %v1553 = vpack.c.bf16 %v1525, %v1524
      %v1554 = vpack.c.bf16 %v1527, %v1526
      %v1555 = vpack.c.bf16 %v1529, %v1528
      %v1556 = vpack.c.bf16 %v1531, %v1530
      %v1557 = vpack.c.bf16 %v1533, %v1532
      %v1558 = vpack.c.bf16 %v1535, %v1534
      %v1559 = vpack.c.bf16 %v1537, %v1536
      %v1560 = vpack.c.bf16 %v1539, %v1538
      %v1561 = vpack.c.bf16 %v1541, %v1540
      %v1562 = vpack.c.bf16 %v1543, %v1542
      %v1563 = vpack.c.bf16 %v1545, %v1544
      %v1564 = vpack.c.bf16 %v1547, %v1546
      %v1565 = vpack.c.bf16 %v1549, %v1548
      %v1582 = vunpack.c.l.b16 %v1550
      %v1583 = vunpack.c.h.b16 %v1550
      %v1584 = vunpack.c.l.b16 %v1551
      %v1585 = vunpack.c.h.b16 %v1551
      %v1586 = vunpack.c.l.b16 %v1552
      %v1587 = vunpack.c.h.b16 %v1552
      %v1588 = vunpack.c.l.b16 %v1553
      %v1589 = vunpack.c.h.b16 %v1553
      %v1590 = vunpack.c.l.b16 %v1554
      %v1591 = vunpack.c.h.b16 %v1554
      %v1592 = vunpack.c.l.b16 %v1555
      %v1593 = vunpack.c.h.b16 %v1555
      %v1594 = vunpack.c.l.b16 %v1556
      %v1595 = vunpack.c.h.b16 %v1556
      %v1596 = vunpack.c.l.b16 %v1557
      %v1597 = vunpack.c.h.b16 %v1557
      %v1598 = vunpack.c.l.b16 %v1558
      %v1599 = vunpack.c.h.b16 %v1558
      %v1600 = vunpack.c.l.b16 %v1559
      %v1601 = vunpack.c.h.b16 %v1559
      %v1602 = vunpack.c.l.b16 %v1560
      %v1603 = vunpack.c.h.b16 %v1560
      %v1604 = vunpack.c.l.b16 %v1561
      %v1605 = vunpack.c.h.b16 %v1561
      %v1606 = vunpack.c.l.b16 %v1562
      %v1607 = vunpack.c.h.b16 %v1562
      %v1608 = vunpack.c.l.b16 %v1563
      %v1609 = vunpack.c.h.b16 %v1563
      %v1610 = vunpack.c.l.b16 %v1564
      %v1611 = vunpack.c.h.b16 %v1564
      %v1612 = vunpack.c.l.b16 %v1565
      %v1613 = vunpack.c.h.b16 %v1565
      %v1614 = vpack.c.b16 %v1582, %v1582
      %v1615 = vpack.c.b16 %v1583, %v1583
      %v1616 = vpack.c.b16 %v1584, %v1584
      %v1617 = vpack.c.b16 %v1585, %v1585
      %v1618 = vpack.c.b16 %v1586, %v1586
      %v1619 = vpack.c.b16 %v1587, %v1587
      %v1620 = vpack.c.b16 %v1588, %v1588
      %v1621 = vpack.c.b16 %v1589, %v1589
      %v1622 = vpack.c.b16 %v1590, %v1590
      %v1623 = vpack.c.b16 %v1591, %v1591
      %v1624 = vpack.c.b16 %v1592, %v1592
      %v1625 = vpack.c.b16 %v1593, %v1593
      %v1626 = vpack.c.b16 %v1594, %v1594
      %v1627 = vpack.c.b16 %v1595, %v1595
      %v1628 = vpack.c.b16 %v1596, %v1596
      %v1629 = vpack.c.b16 %v1597, %v1597
      %v1630 = vpack.c.b16 %v1598, %v1598
      %v1631 = vpack.c.b16 %v1599, %v1599
      %v1632 = vpack.c.b16 %v1600, %v1600
      %v1633 = vpack.c.b16 %v1601, %v1601
      %v1634 = vpack.c.b16 %v1602, %v1602
      %v1635 = vpack.c.b16 %v1603, %v1603
      %v1636 = vpack.c.b16 %v1604, %v1604
      %v1637 = vpack.c.b16 %v1605, %v1605
      %v1638 = vpack.c.b16 %v1606, %v1606
      %v1639 = vpack.c.b16 %v1607, %v1607
      %v1640 = vpack.c.b16 %v1608, %v1608
      %v1641 = vpack.c.b16 %v1609, %v1609
      %v1642 = vpack.c.b16 %v1610, %v1610
      %v1643 = vpack.c.b16 %v1611, %v1611
      %v1644 = vpack.c.b16 %v1612, %v1612
      %v1645 = vpack.c.b16 %v1613, %v1613
      %vm1678 = vcmask 60416
      %1679 = vst.msk [vmem:[%s262] sm:$0xf] %vm1678, %v1614
      %1680 = vst.msk [vmem:[%s262 + $0x4] sm:$0xf] %vm1678, %v1615
      %1681 = vst.msk [vmem:[%s262 + $0x8] sm:$0xf] %vm1678, %v1616
      %1682 = vst.msk [vmem:[%s262 + $0xc] sm:$0xf] %vm1678, %v1617
      %1683 = vst.msk [vmem:[%s262 + $0x10] sm:$0xf] %vm1678, %v1618
      %1684 = vst.msk [vmem:[%s262 + $0x14] sm:$0xf] %vm1678, %v1619
      %1685 = vst.msk [vmem:[%s262 + $0x18] sm:$0xf] %vm1678, %v1620
      %1686 = vst.msk [vmem:[%s262 + $0x1c] sm:$0xf] %vm1678, %v1621
      %1687 = vst.msk [vmem:[%s262 + $0x20] sm:$0xf] %vm1678, %v1622
      %1688 = vst.msk [vmem:[%s262 + $0x24] sm:$0xf] %vm1678, %v1623
      %1689 = vst.msk [vmem:[%s262 + $0x28] sm:$0xf] %vm1678, %v1624
      %1690 = vst.msk [vmem:[%s262 + $0x2c] sm:$0xf] %vm1678, %v1625
      %1691 = vst.msk [vmem:[%s262 + $0x30] sm:$0xf] %vm1678, %v1626
      %1692 = vst.msk [vmem:[%s262 + $0x34] sm:$0xf] %vm1678, %v1627
      %1693 = vst.msk [vmem:[%s262 + $0x38] sm:$0xf] %vm1678, %v1628
      %1694 = vst.msk [vmem:[%s262 + $0x3c] sm:$0xf] %vm1678, %v1629
      %1695 = vst.msk [vmem:[%s262 + $0x40] sm:$0xf] %vm1678, %v1630
      %1696 = vst.msk [vmem:[%s262 + $0x44] sm:$0xf] %vm1678, %v1631
      %1697 = vst.msk [vmem:[%s262 + $0x48] sm:$0xf] %vm1678, %v1632
      %1698 = vst.msk [vmem:[%s262 + $0x4c] sm:$0xf] %vm1678, %v1633
      %1699 = vst.msk [vmem:[%s262 + $0x50] sm:$0xf] %vm1678, %v1634
      %1700 = vst.msk [vmem:[%s262 + $0x54] sm:$0xf] %vm1678, %v1635
      %1701 = vst.msk [vmem:[%s262 + $0x58] sm:$0xf] %vm1678, %v1636
      %1702 = vst.msk [vmem:[%s262 + $0x5c] sm:$0xf] %vm1678, %v1637
      %1703 = vst.msk [vmem:[%s262 + $0x60] sm:$0xf] %vm1678, %v1638
      %1704 = vst.msk [vmem:[%s262 + $0x64] sm:$0xf] %vm1678, %v1639
      %1705 = vst.msk [vmem:[%s262 + $0x68] sm:$0xf] %vm1678, %v1640
      %1706 = vst.msk [vmem:[%s262 + $0x6c] sm:$0xf] %vm1678, %v1641
      %1707 = vst.msk [vmem:[%s262 + $0x70] sm:$0xf] %vm1678, %v1642
      %1708 = vst.msk [vmem:[%s262 + $0x74] sm:$0xf] %vm1678, %v1643
      %1709 = vst.msk [vmem:[%s262 + $0x78] sm:$0xf] %vm1678, %v1644
      %1710 = vst.msk [vmem:[%s262 + $0x7c] sm:$0xf] %vm1678, %v1645
      %v1711 = vsel %vm676, %v1518, 0.0
      %v1712 = vsel %vm676, %v1519, 0.0
      %v1713 = vadd.f32 %v1711, %v1712
      %v1714 = vsel %vm676, %v1520, 0.0
      %v1715 = vadd.f32 %v1713, %v1714
      %v1716 = vsel %vm676, %v1521, 0.0
      %v1717 = vadd.f32 %v1715, %v1716
      %v1718 = vsel %vm676, %v1522, 0.0
      %v1719 = vadd.f32 %v1717, %v1718
      %v1720 = vsel %vm676, %v1523, 0.0
      %v1721 = vadd.f32 %v1719, %v1720
      %v1722 = vsel %vm676, %v1524, 0.0
      %v1723 = vadd.f32 %v1721, %v1722
      %v1724 = vsel %vm676, %v1525, 0.0
      %v1725 = vadd.f32 %v1723, %v1724
      %v1726 = vsel %vm676, %v1526, 0.0
      %v1727 = vadd.f32 %v1725, %v1726
      %v1728 = vsel %vm676, %v1527, 0.0
      %v1729 = vadd.f32 %v1727, %v1728
      %v1730 = vsel %vm676, %v1528, 0.0
      %v1731 = vadd.f32 %v1729, %v1730
      %v1732 = vsel %vm676, %v1529, 0.0
      %v1733 = vadd.f32 %v1731, %v1732
      %v1734 = vsel %vm676, %v1530, 0.0
      %v1735 = vadd.f32 %v1733, %v1734
      %v1736 = vsel %vm676, %v1531, 0.0
      %v1737 = vadd.f32 %v1735, %v1736
      %v1738 = vsel %vm676, %v1532, 0.0
      %v1739 = vadd.f32 %v1737, %v1738
      %v1740 = vsel %vm676, %v1533, 0.0
      %v1741 = vadd.f32 %v1739, %v1740
      %v1742 = vsel %vm676, %v1534, 0.0
      %v1743 = vadd.f32 %v1741, %v1742
      %v1744 = vsel %vm676, %v1535, 0.0
      %v1745 = vadd.f32 %v1743, %v1744
      %v1746 = vsel %vm676, %v1536, 0.0
      %v1747 = vadd.f32 %v1745, %v1746
      %v1748 = vsel %vm676, %v1537, 0.0
      %v1749 = vadd.f32 %v1747, %v1748
      %v1750 = vsel %vm676, %v1538, 0.0
      %v1751 = vadd.f32 %v1749, %v1750
      %v1752 = vsel %vm676, %v1539, 0.0
      %v1753 = vadd.f32 %v1751, %v1752
      %v1754 = vsel %vm676, %v1540, 0.0
      %v1755 = vadd.f32 %v1753, %v1754
      %v1756 = vsel %vm676, %v1541, 0.0
      %v1757 = vadd.f32 %v1755, %v1756
      %v1758 = vsel %vm676, %v1542, 0.0
      %v1759 = vadd.f32 %v1757, %v1758
      %v1760 = vsel %vm676, %v1543, 0.0
      %v1761 = vadd.f32 %v1759, %v1760
      %v1762 = vsel %vm676, %v1544, 0.0
      %v1763 = vadd.f32 %v1761, %v1762
      %v1764 = vsel %vm676, %v1545, 0.0
      %v1765 = vadd.f32 %v1763, %v1764
      %v1766 = vsel %vm676, %v1546, 0.0
      %v1767 = vadd.f32 %v1765, %v1766
      %v1768 = vsel %vm676, %v1547, 0.0
      %v1769 = vadd.f32 %v1767, %v1768
      %v1770 = vsel %vm676, %v1548, 0.0
      %v1771 = vadd.f32 %v1769, %v1770
      %v1772 = vsel %vm676, %v1549, 0.0
      %v1773 = vadd.f32 %v1771, %v1772
      %v1774 = vrot.slane %v1773, 4
      %v1775 = vadd.f32 %v1773, %v1774
      %v1776 = vrot.slane %v1775, 2
      %v1777 = vadd.f32 %v1775, %v1776
      %v1778 = vrot.slane %v1777, 1
      %v1779 = vadd.f32 %v1777, %v1778
      %vm1780 = vcmask 57344
      %1781 = vst.msk [vmem:[%s265] sm:$0x1] %vm1780, %v1779
      %v1782 = vmul.f32 %v1518, %v1518
      %v1783 = vmul.f32 %v1519, %v1519
      %v1784 = vmul.f32 %v1520, %v1520
      %v1785 = vmul.f32 %v1521, %v1521
      %v1786 = vmul.f32 %v1522, %v1522
      %v1787 = vmul.f32 %v1523, %v1523
      %v1788 = vmul.f32 %v1524, %v1524
      %v1789 = vmul.f32 %v1525, %v1525
      %v1790 = vmul.f32 %v1526, %v1526
      %v1791 = vmul.f32 %v1527, %v1527
      %v1792 = vmul.f32 %v1528, %v1528
      %v1793 = vmul.f32 %v1529, %v1529
      %v1794 = vmul.f32 %v1530, %v1530
      %v1795 = vmul.f32 %v1531, %v1531
      %v1796 = vmul.f32 %v1532, %v1532
      %v1797 = vmul.f32 %v1533, %v1533
      %v1798 = vmul.f32 %v1534, %v1534
      %v1799 = vmul.f32 %v1535, %v1535
      %v1800 = vmul.f32 %v1536, %v1536
      %v1801 = vmul.f32 %v1537, %v1537
      %v1802 = vmul.f32 %v1538, %v1538
      %v1803 = vmul.f32 %v1539, %v1539
      %v1804 = vmul.f32 %v1540, %v1540
      %v1805 = vmul.f32 %v1541, %v1541
      %v1806 = vmul.f32 %v1542, %v1542
      %v1807 = vmul.f32 %v1543, %v1543
      %v1808 = vmul.f32 %v1544, %v1544
      %v1809 = vmul.f32 %v1545, %v1545
      %v1810 = vmul.f32 %v1546, %v1546
      %v1811 = vmul.f32 %v1547, %v1547
      %v1812 = vmul.f32 %v1548, %v1548
      %v1813 = vmul.f32 %v1549, %v1549
      %v1814 = vsel %vm676, %v1782, 0.0
      %v1815 = vsel %vm676, %v1783, 0.0
      %v1816 = vadd.f32 %v1814, %v1815
      %v1817 = vsel %vm676, %v1784, 0.0
      %v1818 = vadd.f32 %v1816, %v1817
      %v1819 = vsel %vm676, %v1785, 0.0
      %v1820 = vadd.f32 %v1818, %v1819
      %v1821 = vsel %vm676, %v1786, 0.0
      %v1822 = vadd.f32 %v1820, %v1821
      %v1823 = vsel %vm676, %v1787, 0.0
      %v1824 = vadd.f32 %v1822, %v1823
      %v1825 = vsel %vm676, %v1788, 0.0
      %v1826 = vadd.f32 %v1824, %v1825
      %v1827 = vsel %vm676, %v1789, 0.0
      %v1828 = vadd.f32 %v1826, %v1827
      %v1829 = vsel %vm676, %v1790, 0.0
      %v1830 = vadd.f32 %v1828, %v1829
      %v1831 = vsel %vm676, %v1791, 0.0
      %v1832 = vadd.f32 %v1830, %v1831
      %v1833 = vsel %vm676, %v1792, 0.0
      %v1834 = vadd.f32 %v1832, %v1833
      %v1835 = vsel %vm676, %v1793, 0.0
      %v1836 = vadd.f32 %v1834, %v1835
      %v1837 = vsel %vm676, %v1794, 0.0
      %v1838 = vadd.f32 %v1836, %v1837
      %v1839 = vsel %vm676, %v1795, 0.0
      %v1840 = vadd.f32 %v1838, %v1839
      %v1841 = vsel %vm676, %v1796, 0.0
      %v1842 = vadd.f32 %v1840, %v1841
      %v1843 = vsel %vm676, %v1797, 0.0
      %v1844 = vadd.f32 %v1842, %v1843
      %v1845 = vsel %vm676, %v1798, 0.0
      %v1846 = vadd.f32 %v1844, %v1845
      %v1847 = vsel %vm676, %v1799, 0.0
      %v1848 = vadd.f32 %v1846, %v1847
      %v1849 = vsel %vm676, %v1800, 0.0
      %v1850 = vadd.f32 %v1848, %v1849
      %v1851 = vsel %vm676, %v1801, 0.0
      %v1852 = vadd.f32 %v1850, %v1851
      %v1853 = vsel %vm676, %v1802, 0.0
      %v1854 = vadd.f32 %v1852, %v1853
      %v1855 = vsel %vm676, %v1803, 0.0
      %v1856 = vadd.f32 %v1854, %v1855
      %v1857 = vsel %vm676, %v1804, 0.0
      %v1858 = vadd.f32 %v1856, %v1857
      %v1859 = vsel %vm676, %v1805, 0.0
      %v1860 = vadd.f32 %v1858, %v1859
      %v1861 = vsel %vm676, %v1806, 0.0
      %v1862 = vadd.f32 %v1860, %v1861
      %v1863 = vsel %vm676, %v1807, 0.0
      %v1864 = vadd.f32 %v1862, %v1863
      %v1865 = vsel %vm676, %v1808, 0.0
      %v1866 = vadd.f32 %v1864, %v1865
      %v1867 = vsel %vm676, %v1809, 0.0
      %v1868 = vadd.f32 %v1866, %v1867
      %v1869 = vsel %vm676, %v1810, 0.0
      %v1870 = vadd.f32 %v1868, %v1869
      %v1871 = vsel %vm676, %v1811, 0.0
      %v1872 = vadd.f32 %v1870, %v1871
      %v1873 = vsel %vm676, %v1812, 0.0
      %v1874 = vadd.f32 %v1872, %v1873
      %v1875 = vsel %vm676, %v1813, 0.0
      %v1876 = vadd.f32 %v1874, %v1875
      %v1877 = vrot.slane %v1876, 4
      %v1878 = vadd.f32 %v1876, %v1877
      %v1879 = vrot.slane %v1878, 2
      %v1880 = vadd.f32 %v1878, %v1879
      %v1881 = vrot.slane %v1880, 1
      %v1882 = vadd.f32 %v1880, %v1881
      %1883 = vst.msk [vmem:[%s268] sm:$0x1] %vm1780, %v1882
      %p1884 = scmp.lt.s32.totalorder %s18, 1
      %s1885 = scalar_select %p1884, %s18, 1
      %s1886 = smul.addr %s1885, 32
      %s1887 = smul.addr %s1886, 4
      %s1888 = scalar_lea.vmem %s4, %s1887
      %p1889 = scmp.lt.s32.totalorder %s18, 1
      %s1890 = scalar_select %p1889, %s18, 1
      %s1891 = scalar_lea.vmem %s5, %s1890
      %p1892 = scmp.lt.s32.totalorder %s18, 1
      %s1893 = scalar_select %p1892, %s18, 1
      %s1894 = scalar_lea.vmem %s6, %s1893
      // Predicated region
      $region37: #{basic_block_forward.3} parent=35 // pred_check
        %p1895 = pneg %p125
      $region38: #{basic_block_forward.3} parent=35 // pred_check_branch
        %1897 = sbr.rel (%p1895) target = $region40
      $region39: #{basic_block_forward.3} parent=35 // pred_region
        _
      $region40: #{basic_block_forward.3} parent=35 // pred_fallthru
        _
      // Predicated region
      $region41: #{basic_block_forward.3} parent=35 // pred_check
        %p1898 = pneg %p151
      $region42: #{basic_block_forward.3} parent=35 // pred_check_branch
        %1900 = sbr.rel (%p1898) target = $region44
      $region43: #{basic_block_forward.3} parent=35 // pred_region
        _
      $region44: #{basic_block_forward.3} parent=35 // pred_fallthru
        _
      // Predicated region
      $region45: #{basic_block_forward.3} parent=35 // pred_check
        %p1901 = pneg %p177
      $region46: #{basic_block_forward.3} parent=35 // pred_check_branch
        %1903 = sbr.rel (%p1901) target = $region48
      $region47: #{basic_block_forward.3} parent=35 // pred_region
        _
      $region48: #{basic_block_forward.3} parent=35 // pred_fallthru
        _
    $region36: #{basic_block_forward.3} parent=5 // pred_fallthru
      _
    %p1904 = scmp.le.s32.totalorder 2, %s13
    // Predicated region
    $region49: #{basic_block_forward.3} parent=5 // pred_check
      %p1905 = pneg %p1904
    $region50: #{basic_block_forward.3} parent=5 // pred_check_branch
      %1907 = sbr.rel (%p1905) target = $region52
    $region51: #{basic_block_forward.3} parent=5 // pred_region
      %s1908 = ssub.s32 %s13, 2
      // Predicated region
      $region53: #{basic_block_forward.3} parent=51 // pred_check
        %p1909 = pneg %p131
      $region54: #{basic_block_forward.3} parent=51 // pred_check_branch
        %1911 = sbr.rel (%p1909) target = $region56
      $region55: #{basic_block_forward.3} parent=51 // pred_region
        %p1912 = scmp.lt.s32.totalorder %s19, 1
        %s1913 = scalar_select %p1912, %s19, 1
        %s1914 = smul.addr %s1913, 32
        %s1915 = smul.addr %s1914, 4
        %s1916 = scalar_lea.vmem %s4, %s1915
      $region56: #{basic_block_forward.3} parent=51 // pred_fallthru
        _
      // Predicated region
      $region57: #{basic_block_forward.3} parent=51 // pred_check
        %p1917 = pneg %p157
      $region58: #{basic_block_forward.3} parent=51 // pred_check_branch
        %1919 = sbr.rel (%p1917) target = $region60
      $region59: #{basic_block_forward.3} parent=51 // pred_region
        %p1920 = scmp.lt.s32.totalorder %s19, 1
        %s1921 = scalar_select %p1920, %s19, 1
        %s1922 = scalar_lea.vmem %s5, %s1921
      $region60: #{basic_block_forward.3} parent=51 // pred_fallthru
        _
      // Predicated region
      $region61: #{basic_block_forward.3} parent=51 // pred_check
        %p1923 = pneg %p183
      $region62: #{basic_block_forward.3} parent=51 // pred_check_branch
        %1925 = sbr.rel (%p1923) target = $region64
      $region63: #{basic_block_forward.3} parent=51 // pred_region
        %p1926 = scmp.lt.s32.totalorder %s19, 1
        %s1927 = scalar_select %p1926, %s19, 1
        %s1928 = scalar_lea.vmem %s6, %s1927
      $region64: #{basic_block_forward.3} parent=51 // pred_fallthru
        _
    $region52: #{basic_block_forward.3} parent=5 // pred_fallthru
      _
  $region6: #{basic_block_forward.3} parent=0 // loop_footer
    %s17 = sadd.s32 1, %s13
  $region7: #{basic_block_forward.3} parent=0 // loop_footer_branch
    %12 = sbr.rel target = $region3
  $region8: #{basic_block_forward.3} parent=0 // loop_exit
    _

// kernel: basic_block_forward.5
$region0: #{basic_block_forward.5}
  #allocation0 [shape = 'u32[]', space=smem, size = 0x4, offset = 0x4, fixed_abs, tag = 'smem constant byte address 0x4 - core index']
  #allocation1 [shape = 'u32[144,128]{1,0:T(1,128)}', space=vmem, size = 0x12000, scoped, tag = 'internal scratch']
  %s0 = inlined_call_operand.vmem [shape: bf16[32,128], index: 0, kind: input, shape index: {}]
  %s1 = inlined_call_operand.vmem [shape: bf16[32,128], index: 1, kind: input, shape index: {}]
  %s2 = inlined_call_operand.vmem [shape: f32[1,128], index: 2, kind: input, shape index: {}]
  %s3 = inlined_call_operand.vmem [shape: f32[1,128], index: 3, kind: input, shape index: {}]
  %s4 = inlined_call_operand.vmem [shape: f32[32,128], index: 4, kind: output, shape index: {}]
  %s5 = sld [smem:[#allocation0]]
  $region26: #{basic_block_forward.5} parent=0
    _
  %s7 = ssub.s32 1, %s5
  %s8 = scalar_select 0, %s7, %s5
  // Predicated region
  $region2: #{basic_block_forward.5} parent=0 // pred_check
    _
  $region3: #{basic_block_forward.5} parent=0 // pred_check_branch
    %10 = sbr.rel (0) target = $region5
  $region4: #{basic_block_forward.5} parent=0 // pred_region
    _
  $region5: #{basic_block_forward.5} parent=0 // pred_fallthru
    _
  // Predicated region
  $region6: #{basic_block_forward.5} parent=0 // pred_check
    _
  $region7: #{basic_block_forward.5} parent=0 // pred_check_branch
    %12 = sbr.rel (0) target = $region9
  $region8: #{basic_block_forward.5} parent=0 // pred_region
    _
  $region9: #{basic_block_forward.5} parent=0 // pred_fallthru
    _
  // Predicated region
  $region10: #{basic_block_forward.5} parent=0 // pred_check
    _
  $region11: #{basic_block_forward.5} parent=0 // pred_check_branch
    %14 = sbr.rel (0) target = $region13
  $region12: #{basic_block_forward.5} parent=0 // pred_region
    _
  $region13: #{basic_block_forward.5} parent=0 // pred_fallthru
    _
  // Predicated region
  $region14: #{basic_block_forward.5} parent=0 // pred_check
    _
  $region15: #{basic_block_forward.5} parent=0 // pred_check_branch
    %16 = sbr.rel (0) target = $region17
  $region16: #{basic_block_forward.5} parent=0 // pred_region
    _
  $region17: #{basic_block_forward.5} parent=0 // pred_fallthru
    _
  %v17 = vld [vmem:[%s0] sm:$0xf]
  %v18 = vld [vmem:[%s0 + $0x4] sm:$0xf]
  %v19 = vld [vmem:[%s0 + $0x8] sm:$0xf]
  %v20 = vld [vmem:[%s0 + $0xc] sm:$0xf]
  %v21 = vunpack.c.l.bf16 %v17
  %v22 = vunpack.c.l.bf16 %v18
  %v23 = vunpack.c.l.bf16 %v19
  %v24 = vunpack.c.l.bf16 %v20
  %v25 = vld [vmem:[%s1] sm:$0xf]
  %v26 = vld [vmem:[%s1 + $0x4] sm:$0xf]
  %v27 = vld [vmem:[%s1 + $0x8] sm:$0xf]
  %v28 = vld [vmem:[%s1 + $0xc] sm:$0xf]
  %v29 = vunpack.c.l.bf16 %v25
  %v30 = vunpack.c.l.bf16 %v26
  %v31 = vunpack.c.l.bf16 %v27
  %v32 = vunpack.c.l.bf16 %v28
  %v33 = vld [vmem:[%s2] sm:$0x1]
  %v35 = vlaneseq
  %v36 = vshrl.u32 %v35, 7
  %v37 = vsub.s32 0, %v36
  %v38 = vrot.slane %v33, %v37
  %v40 = vmul.f32 %v21, %v38
  %v41 = vmul.f32 %v22, %v38
  %v42 = vmul.f32 %v23, %v38
  %v43 = vmul.f32 %v24, %v38
  %v44 = vld [vmem:[%s3] sm:$0x1]
  %v46 = vlaneseq
  %v47 = vshrl.u32 %v46, 7
  %v48 = vsub.s32 0, %v47
  %v49 = vrot.slane %v44, %v48
  %v51 = vadd.f32 %v40, %v49
  %v52 = vadd.f32 %v41, %v49
  %v53 = vadd.f32 %v42, %v49
  %v54 = vadd.f32 %v43, %v49
  %v55 = vadd.f32 %v51, %v29
  %v56 = vadd.f32 %v52, %v30
  %v57 = vadd.f32 %v53, %v31
  %v58 = vadd.f32 %v54, %v32
  %v59 = vmax.f32 %v55, 0.0
  %v60 = vmax.f32 %v56, 0.0
  %v61 = vmax.f32 %v57, 0.0
  %v62 = vmax.f32 %v58, 0.0
  %63 = vst [vmem:[%s4] sm:$0xff] %v59
  %64 = vst [vmem:[%s4 + $0x8] sm:$0xff] %v60
  %65 = vst [vmem:[%s4 + $0x10] sm:$0xff] %v61
  %66 = vst [vmem:[%s4 + $0x18] sm:$0xff] %v62
  // Predicated region
  $region18: #{basic_block_forward.5} parent=0 // pred_check
    _
  $region19: #{basic_block_forward.5} parent=0 // pred_check_branch
    %68 = sbr.rel (0) target = $region21
  $region20: #{basic_block_forward.5} parent=0 // pred_region
    _
  $region21: #{basic_block_forward.5} parent=0 // pred_fallthru
    _
  // Predicated region
  $region22: #{basic_block_forward.5} parent=0 // pred_check
    _
  $region23: #{basic_block_forward.5} parent=0 // pred_check_branch
    %70 = sbr.rel (0) target = $region25
  $region24: #{basic_block_forward.5} parent=0 // pred_region
    _
  $region25: #{basic_block_forward.5} parent=0 // pred_fallthru
    _

// kernel: basic_block_forward.4
$region0: #{basic_block_forward.4}
  #allocation0 [shape = 'u32[]', space=smem, size = 0x4, offset = 0x4, fixed_abs, tag = 'smem constant byte address 0x4 - core index']
  #allocation1 [shape = 'u32[144,128]{1,0:T(1,128)}', space=vmem, size = 0x12000, scoped, tag = 'internal scratch']
  #allocation2 [shape = 'f32[256,8]{1,0:T(8,128)}', space=vmem, size = 0x20000, scoped, tag = 'scratch operand']
  %s0 = inlined_call_operand.vmem [shape: bf16[2,16,16,8], index: 0, kind: input, shape index: {}]
  %s1 = inlined_call_operand.vmem [shape: f32[1,8], index: 1, kind: input, shape index: {}]
  %s2 = inlined_call_operand.vmem [shape: f32[1,8], index: 2, kind: input, shape index: {}]
  %s3 = inlined_call_operand.vmem [shape: bf16[3,24,8], index: 3, kind: input, shape index: {}]
  %s4 = inlined_call_operand.vmem [shape: bf16[2,16,16,8], index: 4, kind: output, shape index: {0}]
  %s5 = inlined_call_operand.vmem [shape: f32[2,1,8], index: 5, kind: output, shape index: {1}]
  %s6 = inlined_call_operand.vmem [shape: f32[2,1,8], index: 6, kind: output, shape index: {2}]
  %7 = xla_tuple %s4, %s5, %s6
  %s8 = sld [smem:[#allocation0]]
  $region65: #{basic_block_forward.4} parent=0
    _
  %s10 = ssub.s32 1, %s8
  %s11 = scalar_select 0, %s10, %s8
  loop: start=0, step=1, limit=4
  $region2: #{basic_block_forward.4} parent=0 // loop_pre_header
    _
  $region3: #{basic_block_forward.4} parent=0 // loop_header
    %s13 = sphi 0, %s17
    %p14 = scmp.ge.s32.totalorder %s13, 4
    %s23 = sphi 0, %s25
    %s26 = sphi 0, %s23
    %s27 = sphi 0, %s26
    %s43 = sphi 0, %s27
    %s47 = sphi 0, %s47
    %s49 = sphi 0, %s47
    %s50 = sphi 0, %s49
    %s64 = sphi 0, %s50
    %s68 = sphi 0, %s68
    %s70 = sphi 0, %s68
    %s71 = sphi 0, %s70
    %s85 = sphi 0, %s71
    %s89 = sphi 0, %s89
    %s91 = sphi 0, %s89
    %s92 = sphi 0, %s91
    %s106 = sphi 0, %s92
    %s112 = sphi 0, %s114
    %s115 = sphi 0, %s112
    %s116 = sphi 0, %s115
    %s132 = sphi 0, %s116
    %s138 = sphi 0, %s140
    %s141 = sphi 0, %s138
    %s142 = sphi 0, %s141
    %s158 = sphi 0, %s142
    %s164 = sphi 0, %s166
    %s167 = sphi 0, %s164
    %s168 = sphi 0, %s167
    %s184 = sphi 0, %s168
  $region4: #{basic_block_forward.4} parent=0 // loop_header_branch
    %16 = sbr.rel (%p14) target = $region8
  $region5: #{basic_block_forward.4} parent=0 // loop_body
    %s18 = ssub.s32 %s13, 1
    %s19 = ssub.s32 %s13, 2
    %s20 = sadd.s32 %s13, 1
    %s21 = ssub.s32 %s13, %s20
    %p22 = scmp.eq.s32.totalorder %s21, 0
    %s24 = sadd.s32 %s23, 1
    %s25 = scalar_select %p22, %s23, %s24
    %p28 = pneg %p22
    %p29 = scmp.eq.s32.totalorder %s13, 1
    %p30 = por %p28, %p29
    %p31 = scmp.ne.s32.totalorder %s23, %s26
    %p32 = scmp.eq.s32.totalorder %s13, 0
    %p33 = por %p31, %p32
    %p34 = scmp.ne.s32.totalorder %s23, %s26
    %p35 = scmp.eq.s32.totalorder %s18, 1
    %p36 = por %p34, %p35
    %p37 = scmp.ne.s32.totalorder %s26, %s27
    %p38 = scmp.eq.s32.totalorder %s18, 0
    %p39 = por %p37, %p38
    %p40 = scmp.ne.s32.totalorder %s26, %s27
    %p41 = scmp.eq.s32.totalorder %s19, 1
    %p42 = por %p40, %p41
    %p44 = scmp.ne.s32.totalorder %s27, %s43
    %p45 = scmp.eq.s32.totalorder %s19, 0
    %p46 = por %p44, %p45
    %s48 = sadd.s32 %s47, 1
    %p51 = scmp.eq.s32.totalorder %s13, 1
    %p52 = scmp.ne.s32.totalorder %s47, %s49
    %p53 = scmp.eq.s32.totalorder %s13, 0
    %p54 = por %p52, %p53
    %p55 = scmp.ne.s32.totalorder %s47, %s49
    %p56 = scmp.eq.s32.totalorder %s18, 1
    %p57 = por %p55, %p56
    %p58 = scmp.ne.s32.totalorder %s49, %s50
    %p59 = scmp.eq.s32.totalorder %s18, 0
    %p60 = por %p58, %p59
    %p61 = scmp.ne.s32.totalorder %s49, %s50
    %p62 = scmp.eq.s32.totalorder %s19, 1
    %p63 = por %p61, %p62
    %p65 = scmp.ne.s32.totalorder %s50, %s64
    %p66 = scmp.eq.s32.totalorder %s19, 0
    %p67 = por %p65, %p66
    %s69 = sadd.s32 %s68, 1
    %p72 = scmp.eq.s32.totalorder %s13, 1
    %p73 = scmp.ne.s32.totalorder %s68, %s70
    %p74 = scmp.eq.s32.totalorder %s13, 0
    %p75 = por %p73, %p74
    %p76 = scmp.ne.s32.totalorder %s68, %s70
    %p77 = scmp.eq.s32.totalorder %s18, 1
    %p78 = por %p76, %p77
    %p79 = scmp.ne.s32.totalorder %s70, %s71
    %p80 = scmp.eq.s32.totalorder %s18, 0
    %p81 = por %p79, %p80
    %p82 = scmp.ne.s32.totalorder %s70, %s71
    %p83 = scmp.eq.s32.totalorder %s19, 1
    %p84 = por %p82, %p83
    %p86 = scmp.ne.s32.totalorder %s71, %s85
    %p87 = scmp.eq.s32.totalorder %s19, 0
    %p88 = por %p86, %p87
    %s90 = sadd.s32 %s89, 1
    %p93 = scmp.eq.s32.totalorder %s13, 1
    %p94 = scmp.ne.s32.totalorder %s89, %s91
    %p95 = scmp.eq.s32.totalorder %s13, 0
    %p96 = por %p94, %p95
    %p97 = scmp.ne.s32.totalorder %s89, %s91
    %p98 = scmp.eq.s32.totalorder %s18, 1
    %p99 = por %p97, %p98
    %p100 = scmp.ne.s32.totalorder %s91, %s92
    %p101 = scmp.eq.s32.totalorder %s18, 0
    %p102 = por %p100, %p101
    %p103 = scmp.ne.s32.totalorder %s91, %s92
    %p104 = scmp.eq.s32.totalorder %s19, 1
    %p105 = por %p103, %p104
    %p107 = scmp.ne.s32.totalorder %s92, %s106
    %p108 = scmp.eq.s32.totalorder %s19, 0
    %p109 = por %p107, %p108
    %s110 = ssub.s32 %s13, %s20
    %p111 = scmp.eq.s32.totalorder %s110, 0
    %s113 = sadd.s32 %s112, 1
    %s114 = scalar_select %p111, %s112, %s113
    %p117 = pneg %p111
    %p118 = scmp.eq.s32.totalorder %s13, 1
    %p119 = por %p117, %p118
    %p120 = scmp.ne.s32.totalorder %s112, %s115
    %p121 = scmp.eq.s32.totalorder %s13, 0
    %p122 = por %p120, %p121
    %p123 = scmp.ne.s32.totalorder %s112, %s115
    %p124 = scmp.eq.s32.totalorder %s18, 1
    %p125 = por %p123, %p124
    %p126 = scmp.ne.s32.totalorder %s115, %s116
    %p127 = scmp.eq.s32.totalorder %s18, 0
    %p128 = por %p126, %p127
    %p129 = scmp.ne.s32.totalorder %s115, %s116
    %p130 = scmp.eq.s32.totalorder %s19, 1
    %p131 = por %p129, %p130
    %p133 = scmp.ne.s32.totalorder %s116, %s132
    %p134 = scmp.eq.s32.totalorder %s19, 0
    %p135 = por %p133, %p134
    %s136 = ssub.s32 %s13, %s20
    %p137 = scmp.eq.s32.totalorder %s136, 0
    %s139 = sadd.s32 %s138, 1
    %s140 = scalar_select %p137, %s138, %s139
    %p143 = pneg %p137
    %p144 = scmp.eq.s32.totalorder %s13, 1
    %p145 = por %p143, %p144
    %p146 = scmp.ne.s32.totalorder %s138, %s141
    %p147 = scmp.eq.s32.totalorder %s13, 0
    %p148 = por %p146, %p147
    %p149 = scmp.ne.s32.totalorder %s138, %s141
    %p150 = scmp.eq.s32.totalorder %s18, 1
    %p151 = por %p149, %p150
    %p152 = scmp.ne.s32.totalorder %s141, %s142
    %p153 = scmp.eq.s32.totalorder %s18, 0
    %p154 = por %p152, %p153
    %p155 = scmp.ne.s32.totalorder %s141, %s142
    %p156 = scmp.eq.s32.totalorder %s19, 1
    %p157 = por %p155, %p156
    %p159 = scmp.ne.s32.totalorder %s142, %s158
    %p160 = scmp.eq.s32.totalorder %s19, 0
    %p161 = por %p159, %p160
    %s162 = ssub.s32 %s13, %s20
    %p163 = scmp.eq.s32.totalorder %s162, 0
    %s165 = sadd.s32 %s164, 1
    %s166 = scalar_select %p163, %s164, %s165
    %p169 = pneg %p163
    %p170 = scmp.eq.s32.totalorder %s13, 1
    %p171 = por %p169, %p170
    %p172 = scmp.ne.s32.totalorder %s164, %s167
    %p173 = scmp.eq.s32.totalorder %s13, 0
    %p174 = por %p172, %p173
    %p175 = scmp.ne.s32.totalorder %s164, %s167
    %p176 = scmp.eq.s32.totalorder %s18, 1
    %p177 = por %p175, %p176
    %p178 = scmp.ne.s32.totalorder %s167, %s168
    %p179 = scmp.eq.s32.totalorder %s18, 0
    %p180 = por %p178, %p179
    %p181 = scmp.ne.s32.totalorder %s167, %s168
    %p182 = scmp.eq.s32.totalorder %s19, 1
    %p183 = por %p181, %p182
    %p185 = scmp.ne.s32.totalorder %s168, %s184
    %p186 = scmp.eq.s32.totalorder %s19, 0
    %p187 = por %p185, %p186
    %p188 = scmp.le.s32.totalorder 1, %s13
    %p189 = scmp.lt.s32.totalorder %s13, 3
    %p190 = pnand %p188, %p189
    %p191 = pneg %p190
    // Predicated region
    $region9: #{basic_block_forward.4} parent=5 // pred_check
      _
    $region10: #{basic_block_forward.4} parent=5 // pred_check_branch
      %193 = sbr.rel (%p190) target = $region12
    $region11: #{basic_block_forward.4} parent=5 // pred_region
      %s194 = ssub.s32 %s13, 1
      // Predicated region
      $region13: #{basic_block_forward.4} parent=11 // pred_check
        %p195 = pneg %p60
      $region14: #{basic_block_forward.4} parent=11 // pred_check_branch
        %197 = sbr.rel (%p195) target = $region16
      $region15: #{basic_block_forward.4} parent=11 // pred_region
        _
      $region16: #{basic_block_forward.4} parent=11 // pred_fallthru
        _
      // Predicated region
      $region17: #{basic_block_forward.4} parent=11 // pred_check
        %p198 = pneg %p81
      $region18: #{basic_block_forward.4} parent=11 // pred_check_branch
        %200 = sbr.rel (%p198) target = $region20
      $region19: #{basic_block_forward.4} parent=11 // pred_region
        _
      $region20: #{basic_block_forward.4} parent=11 // pred_fallthru
        _
      // Predicated region
      $region21: #{basic_block_forward.4} parent=11 // pred_check
        %p201 = pneg %p102
      $region22: #{basic_block_forward.4} parent=11 // pred_check_branch
        %203 = sbr.rel (%p201) target = $region24
      $region23: #{basic_block_forward.4} parent=11 // pred_region
        _
      $region24: #{basic_block_forward.4} parent=11 // pred_fallthru
        _
    $region12: #{basic_block_forward.4} parent=5 // pred_fallthru
      _
    %p204 = scmp.lt.s32.totalorder %s13, 2
    // Predicated region
    $region25: #{basic_block_forward.4} parent=5 // pred_check
      %p205 = pneg %p204
    $region26: #{basic_block_forward.4} parent=5 // pred_check_branch
      %207 = sbr.rel (%p205) target = $region28
    $region27: #{basic_block_forward.4} parent=5 // pred_region
      // Predicated region
      $region29: #{basic_block_forward.4} parent=27 // pred_check
        %p208 = pneg %p33
      $region30: #{basic_block_forward.4} parent=27 // pred_check_branch
        %210 = sbr.rel (%p208) target = $region32
      $region31: #{basic_block_forward.4} parent=27 // pred_region
        %p211 = scmp.lt.s32.totalorder %s13, 1
        %s212 = scalar_select %p211, %s13, 1
        %s213 = smul.addr %s212, 32
        %s214 = smul.addr %s213, 4
        %s215 = scalar_lea.vmem %s0, %s214
      $region32: #{basic_block_forward.4} parent=27 // pred_fallthru
        _
    $region28: #{basic_block_forward.4} parent=5 // pred_fallthru
      _
    %p216 = scmp.le.s32.totalorder 1, %s13
    %p217 = scmp.lt.s32.totalorder %s13, 3
    %p218 = pnand %p216, %p217
    %p219 = pneg %p218
    // Predicated region
    $region33: #{basic_block_forward.4} parent=5 // pred_check
      _
    $region34: #{basic_block_forward.4} parent=5 // pred_check_branch
      %221 = sbr.rel (%p218) target = $region36
    $region35: #{basic_block_forward.4} parent=5 // pred_region
      %s222 = ssub.s32 %s13, 1
      %p223 = scmp.lt.s32.totalorder %s18, 1
      %s224 = scalar_select %p223, %s18, 1
      %s225 = smul.addr %s224, 32
      %s226 = smul.addr %s225, 4
      %s227 = scalar_lea.vmem %s0, %s226
      %p228 = pneg %p39
      %p229 = pneg %p36
      %p230 = pneg %p60
      %p231 = pneg %p57
      %p232 = pneg %p81
      %p233 = pneg %p78
      %p234 = pneg %p102
      %p235 = pneg %p99
      %p236 = pneg %p128
      %p237 = pneg %p125
      %p238 = scmp.lt.s32.totalorder %s18, 1
      %s239 = scalar_select %p238, %s18, 1
      %s240 = smul.addr %s239, 32
      %s241 = smul.addr %s240, 4
      %s242 = scalar_lea.vmem %s4, %s241
      %p243 = pneg %p154
      %p244 = pneg %p151
      %p245 = scmp.lt.s32.totalorder %s18, 1
      %s246 = scalar_select %p245, %s18, 1
      %s247 = scalar_lea.vmem %s5, %s246
      %p248 = pneg %p180
      %p249 = pneg %p177
      %p250 = scmp.lt.s32.totalorder %s18, 1
      %s251 = scalar_select %p250, %s18, 1
      %s252 = scalar_lea.vmem %s6, %s251
      %p253 = scmp.lt.s32.totalorder %s18, 1
      %s254 = scalar_select %p253, %s18, 1
      %s255 = smul.addr %s254, 32
      %s256 = smul.addr %s255, 4
      %s257 = scalar_lea.vmem %s0, %s256
      %p258 = scmp.lt.s32.totalorder %s18, 1
      %s259 = scalar_select %p258, %s18, 1
      %s260 = smul.addr %s259, 32
      %s261 = smul.addr %s260, 4
      %s262 = scalar_lea.vmem %s4, %s261
      %p263 = scmp.lt.s32.totalorder %s18, 1
      %s264 = scalar_select %p263, %s18, 1
      %s265 = scalar_lea.vmem %s5, %s264
      %p266 = scmp.lt.s32.totalorder %s18, 1
      %s267 = scalar_select %p266, %s18, 1
      %s268 = scalar_lea.vmem %s6, %s267
      %v270 = vld [vmem:[%s257] sm:$0xf]
      %v271 = vld [vmem:[%s257 + $0x4] sm:$0xf]
      %v272 = vld [vmem:[%s257 + $0x8] sm:$0xf]
      %v273 = vld [vmem:[%s257 + $0xc] sm:$0xf]
      %v274 = vld [vmem:[%s257 + $0x10] sm:$0xf]
      %v275 = vld [vmem:[%s257 + $0x14] sm:$0xf]
      %v276 = vld [vmem:[%s257 + $0x18] sm:$0xf]
      %v277 = vld [vmem:[%s257 + $0x1c] sm:$0xf]
      %v278 = vld [vmem:[%s257 + $0x20] sm:$0xf]
      %v279 = vld [vmem:[%s257 + $0x24] sm:$0xf]
      %v280 = vld [vmem:[%s257 + $0x28] sm:$0xf]
      %v281 = vld [vmem:[%s257 + $0x2c] sm:$0xf]
      %v282 = vld [vmem:[%s257 + $0x30] sm:$0xf]
      %v283 = vld [vmem:[%s257 + $0x34] sm:$0xf]
      %v284 = vld [vmem:[%s257 + $0x38] sm:$0xf]
      %v285 = vld [vmem:[%s257 + $0x3c] sm:$0xf]
      %v286 = vld [vmem:[%s257 + $0x40] sm:$0xf]
      %v287 = vld [vmem:[%s257 + $0x44] sm:$0xf]
      %v288 = vld [vmem:[%s257 + $0x48] sm:$0xf]
      %v289 = vld [vmem:[%s257 + $0x4c] sm:$0xf]
      %v290 = vld [vmem:[%s257 + $0x50] sm:$0xf]
      %v291 = vld [vmem:[%s257 + $0x54] sm:$0xf]
      %v292 = vld [vmem:[%s257 + $0x58] sm:$0xf]
      %v293 = vld [vmem:[%s257 + $0x5c] sm:$0xf]
      %v294 = vld [vmem:[%s257 + $0x60] sm:$0xf]
      %v295 = vld [vmem:[%s257 + $0x64] sm:$0xf]
      %v296 = vld [vmem:[%s257 + $0x68] sm:$0xf]
      %v297 = vld [vmem:[%s257 + $0x6c] sm:$0xf]
      %v298 = vld [vmem:[%s257 + $0x70] sm:$0xf]
      %v299 = vld [vmem:[%s257 + $0x74] sm:$0xf]
      %v300 = vld [vmem:[%s257 + $0x78] sm:$0xf]
      %v301 = vld [vmem:[%s257 + $0x7c] sm:$0xf]
      %v302 = vunpack.c.l.bf16 %v270
      %v303 = vunpack.c.l.bf16 %v271
      %v304 = vunpack.c.l.bf16 %v272
      %v305 = vunpack.c.l.bf16 %v273
      %v306 = vunpack.c.l.bf16 %v274
      %v307 = vunpack.c.l.bf16 %v275
      %v308 = vunpack.c.l.bf16 %v276
      %v309 = vunpack.c.l.bf16 %v277
      %v310 = vunpack.c.l.bf16 %v278
      %v311 = vunpack.c.l.bf16 %v279
      %v312 = vunpack.c.l.bf16 %v280
      %v313 = vunpack.c.l.bf16 %v281
      %v314 = vunpack.c.l.bf16 %v282
      %v315 = vunpack.c.l.bf16 %v283
      %v316 = vunpack.c.l.bf16 %v284
      %v317 = vunpack.c.l.bf16 %v285
      %v318 = vunpack.c.l.bf16 %v286
      %v319 = vunpack.c.l.bf16 %v287
      %v320 = vunpack.c.l.bf16 %v288
      %v321 = vunpack.c.l.bf16 %v289
      %v322 = vunpack.c.l.bf16 %v290
      %v323 = vunpack.c.l.bf16 %v291
      %v324 = vunpack.c.l.bf16 %v292
      %v325 = vunpack.c.l.bf16 %v293
      %v326 = vunpack.c.l.bf16 %v294
      %v327 = vunpack.c.l.bf16 %v295
      %v328 = vunpack.c.l.bf16 %v296
      %v329 = vunpack.c.l.bf16 %v297
      %v330 = vunpack.c.l.bf16 %v298
      %v331 = vunpack.c.l.bf16 %v299
      %v332 = vunpack.c.l.bf16 %v300
      %v333 = vunpack.c.l.bf16 %v301
      %v334 = vld [vmem:[%s1] sm:$0x1]
      %v336 = vlaneseq
      %v337 = vshrl.u32 %v336, 7
      %v338 = vsub.s32 0, %v337
      %v339 = vrot.slane %v334, %v338
      %v341 = vmul.f32 %v302, %v339
      %v342 = vmul.f32 %v303, %v339
      %v343 = vmul.f32 %v304, %v339
      %v344 = vmul.f32 %v305, %v339
      %v345 = vmul.f32 %v306, %v339
      %v346 = vmul.f32 %v307, %v339
      %v347 = vmul.f32 %v308, %v339
      %v348 = vmul.f32 %v309, %v339
      %v349 = vmul.f32 %v310, %v339
      %v350 = vmul.f32 %v311, %v339
      %v351 = vmul.f32 %v312, %v339
      %v352 = vmul.f32 %v313, %v339
      %v353 = vmul.f32 %v314, %v339
      %v354 = vmul.f32 %v315, %v339
      %v355 = vmul.f32 %v316, %v339
      %v356 = vmul.f32 %v317, %v339
      %v357 = vmul.f32 %v318, %v339
      %v358 = vmul.f32 %v319, %v339
      %v359 = vmul.f32 %v320, %v339
      %v360 = vmul.f32 %v321, %v339
      %v361 = vmul.f32 %v322, %v339
      %v362 = vmul.f32 %v323, %v339
      %v363 = vmul.f32 %v324, %v339
      %v364 = vmul.f32 %v325, %v339
      %v365 = vmul.f32 %v326, %v339
      %v366 = vmul.f32 %v327, %v339
      %v367 = vmul.f32 %v328, %v339
      %v368 = vmul.f32 %v329, %v339
      %v369 = vmul.f32 %v330, %v339
      %v370 = vmul.f32 %v331, %v339
      %v371 = vmul.f32 %v332, %v339
      %v372 = vmul.f32 %v333, %v339
      %v373 = vld [vmem:[%s2] sm:$0x1]
      %v375 = vlaneseq
      %v376 = vshrl.u32 %v375, 7
      %v377 = vsub.s32 0, %v376
      %v378 = vrot.slane %v373, %v377
      %v380 = vadd.f32 %v341, %v378
      %v381 = vadd.f32 %v342, %v378
      %v382 = vadd.f32 %v343, %v378
      %v383 = vadd.f32 %v344, %v378
      %v384 = vadd.f32 %v345, %v378
      %v385 = vadd.f32 %v346, %v378
      %v386 = vadd.f32 %v347, %v378
      %v387 = vadd.f32 %v348, %v378
      %v388 = vadd.f32 %v349, %v378
      %v389 = vadd.f32 %v350, %v378
      %v390 = vadd.f32 %v351, %v378
      %v391 = vadd.f32 %v352, %v378
      %v392 = vadd.f32 %v353, %v378
      %v393 = vadd.f32 %v354, %v378
      %v394 = vadd.f32 %v355, %v378
      %v395 = vadd.f32 %v356, %v378
      %v396 = vadd.f32 %v357, %v378
      %v397 = vadd.f32 %v358, %v378
      %v398 = vadd.f32 %v359, %v378
      %v399 = vadd.f32 %v360, %v378
      %v400 = vadd.f32 %v361, %v378
      %v401 = vadd.f32 %v362, %v378
      %v402 = vadd.f32 %v363, %v378
      %v403 = vadd.f32 %v364, %v378
      %v404 = vadd.f32 %v365, %v378
      %v405 = vadd.f32 %v366, %v378
      %v406 = vadd.f32 %v367, %v378
      %v407 = vadd.f32 %v368, %v378
      %v408 = vadd.f32 %v369, %v378
      %v409 = vadd.f32 %v370, %v378
      %v410 = vadd.f32 %v371, %v378
      %v411 = vadd.f32 %v372, %v378
      %v412 = vmax.f32 %v380, 0.0
      %v413 = vmax.f32 %v381, 0.0
      %v414 = vmax.f32 %v382, 0.0
      %v415 = vmax.f32 %v383, 0.0
      %v416 = vmax.f32 %v384, 0.0
      %v417 = vmax.f32 %v385, 0.0
      %v418 = vmax.f32 %v386, 0.0
      %v419 = vmax.f32 %v387, 0.0
      %v420 = vmax.f32 %v388, 0.0
      %v421 = vmax.f32 %v389, 0.0
      %v422 = vmax.f32 %v390, 0.0
      %v423 = vmax.f32 %v391, 0.0
      %v424 = vmax.f32 %v392, 0.0
      %v425 = vmax.f32 %v393, 0.0
      %v426 = vmax.f32 %v394, 0.0
      %v427 = vmax.f32 %v395, 0.0
      %v428 = vmax.f32 %v396, 0.0
      %v429 = vmax.f32 %v397, 0.0
      %v430 = vmax.f32 %v398, 0.0
      %v431 = vmax.f32 %v399, 0.0
      %v432 = vmax.f32 %v400, 0.0
      %v433 = vmax.f32 %v401, 0.0
      %v434 = vmax.f32 %v402, 0.0
      %v435 = vmax.f32 %v403, 0.0
      %v436 = vmax.f32 %v404, 0.0
      %v437 = vmax.f32 %v405, 0.0
      %v438 = vmax.f32 %v406, 0.0
      %v439 = vmax.f32 %v407, 0.0
      %v440 = vmax.f32 %v408, 0.0
      %v441 = vmax.f32 %v409, 0.0
      %v442 = vmax.f32 %v410, 0.0
      %v443 = vmax.f32 %v411, 0.0
      %v444 = vpack.c.bf16 %v413, %v412
      %v445 = vpack.c.bf16 %v415, %v414
      %v446 = vpack.c.bf16 %v417, %v416
      %v447 = vpack.c.bf16 %v419, %v418
      %v448 = vpack.c.bf16 %v421, %v420
      %v449 = vpack.c.bf16 %v423, %v422
      %v450 = vpack.c.bf16 %v425, %v424
      %v451 = vpack.c.bf16 %v427, %v426
      %v452 = vpack.c.bf16 %v429, %v428
      %v453 = vpack.c.bf16 %v431, %v430
      %v454 = vpack.c.bf16 %v433, %v432
      %v455 = vpack.c.bf16 %v435, %v434
      %v456 = vpack.c.bf16 %v437, %v436
      %v457 = vpack.c.bf16 %v439, %v438
      %v458 = vpack.c.bf16 %v441, %v440
      %v459 = vpack.c.bf16 %v443, %v442
      %v461 = vshrl.u32 %v444, 16
      %v463 = vrot.slane %v461, 7
      %v464 = vshll.u32 %v444, 16
      %v466 = vor.u32 %v463, %v464
      %v468 = vshrl.u32 %v445, 16
      %v470 = vrot.slane %v468, 7
      %v471 = vshll.u32 %v445, 16
      %v473 = vor.u32 %v470, %v471
      %v475 = vshrl.u32 %v446, 16
      %v477 = vrot.slane %v475, 7
      %v478 = vshll.u32 %v446, 16
      %v480 = vor.u32 %v477, %v478
      %v482 = vshrl.u32 %v447, 16
      %v484 = vrot.slane %v482, 7
      %v485 = vshll.u32 %v447, 16
      %v487 = vor.u32 %v484, %v485
      %v489 = vshrl.u32 %v448, 16
      %v491 = vrot.slane %v489, 7
      %v492 = vshll.u32 %v448, 16
      %v494 = vor.u32 %v491, %v492
      %v496 = vshrl.u32 %v449, 16
      %v498 = vrot.slane %v496, 7
      %v499 = vshll.u32 %v449, 16
      %v501 = vor.u32 %v498, %v499
      %v503 = vshrl.u32 %v450, 16
      %v505 = vrot.slane %v503, 7
      %v506 = vshll.u32 %v450, 16
      %v508 = vor.u32 %v505, %v506
      %v510 = vshrl.u32 %v451, 16
      %v512 = vrot.slane %v510, 7
      %v513 = vshll.u32 %v451, 16
      %v515 = vor.u32 %v512, %v513
      %v517 = vshrl.u32 %v452, 16
      %v519 = vrot.slane %v517, 7
      %v520 = vshll.u32 %v452, 16
      %v522 = vor.u32 %v519, %v520
      %v524 = vshrl.u32 %v453, 16
      %v526 = vrot.slane %v524, 7
      %v527 = vshll.u32 %v453, 16
      %v529 = vor.u32 %v526, %v527
      %v531 = vshrl.u32 %v454, 16
      %v533 = vrot.slane %v531, 7
      %v534 = vshll.u32 %v454, 16
      %v536 = vor.u32 %v533, %v534
      %v538 = vshrl.u32 %v455, 16
      %v540 = vrot.slane %v538, 7
      %v541 = vshll.u32 %v455, 16
      %v543 = vor.u32 %v540, %v541
      %v545 = vshrl.u32 %v456, 16
      %v547 = vrot.slane %v545, 7
      %v548 = vshll.u32 %v456, 16
      %v550 = vor.u32 %v547, %v548
      %v552 = vshrl.u32 %v457, 16
      %v554 = vrot.slane %v552, 7
      %v555 = vshll.u32 %v457, 16
      %v557 = vor.u32 %v554, %v555
      %v559 = vshrl.u32 %v458, 16
      %v561 = vrot.slane %v559, 7
      %v562 = vshll.u32 %v458, 16
      %v564 = vor.u32 %v561, %v562
      %v566 = vshrl.u32 %v459, 16
      %v568 = vrot.slane %v566, 7
      %v569 = vshll.u32 %v459, 16
      %v571 = vor.u32 %v568, %v569
      %vm588 = vcmask 1040384
      %vm589 = vsmask.f32 256
      %vm590 = vmand %vm588, %vm589
      %v591 = vsel %vm590, 0, %v466
      %v592 = vsel %vm590, 0, %v473
      %v593 = vsel %vm590, 0, %v480
      %v594 = vsel %vm590, 0, %v487
      %v595 = vsel %vm590, 0, %v494
      %v596 = vsel %vm590, 0, %v501
      %v597 = vsel %vm590, 0, %v508
      %v598 = vsel %vm590, 0, %v515
      %v599 = vsel %vm590, 0, %v522
      %v600 = vsel %vm590, 0, %v529
      %v601 = vsel %vm590, 0, %v536
      %v602 = vsel %vm590, 0, %v543
      %v603 = vsel %vm590, 0, %v550
      %v604 = vsel %vm590, 0, %v557
      %v605 = vsel %vm590, 0, %v564
      %v606 = vsel %vm590, 0, %v571
      %v607 = vrot.slane %v464, 1
      %v608 = vor.u32 %v461, %v607
      %v609 = vrot.slane %v471, 1
      %v610 = vor.u32 %v468, %v609
      %v611 = vrot.slane %v478, 1
      %v612 = vor.u32 %v475, %v611
      %v613 = vrot.slane %v485, 1
      %v614 = vor.u32 %v482, %v613
      %v615 = vrot.slane %v492, 1
      %v616 = vor.u32 %v489, %v615
      %v617 = vrot.slane %v499, 1
      %v618 = vor.u32 %v496, %v617
      %v619 = vrot.slane %v506, 1
      %v620 = vor.u32 %v503, %v619
      %v621 = vrot.slane %v513, 1
      %v622 = vor.u32 %v510, %v621
      %v623 = vrot.slane %v520, 1
      %v624 = vor.u32 %v517, %v623
      %v625 = vrot.slane %v527, 1
      %v626 = vor.u32 %v524, %v625
      %v627 = vrot.slane %v534, 1
      %v628 = vor.u32 %v531, %v627
      %v629 = vrot.slane %v541, 1
      %v630 = vor.u32 %v538, %v629
      %v631 = vrot.slane %v548, 1
      %v632 = vor.u32 %v545, %v631
      %v633 = vrot.slane %v555, 1
      %v634 = vor.u32 %v552, %v633
      %v635 = vrot.slane %v562, 1
      %v636 = vor.u32 %v559, %v635
      %v637 = vrot.slane %v569, 1
      %v638 = vor.u32 %v566, %v637
      %vm655 = vcmask 1047552
      %vm656 = vsmask.f32 7424
      %vm657 = vmand %vm655, %vm656
      %v658 = vsel %vm657, %v608, 0
      %v659 = vsel %vm657, %v610, 0
      %v660 = vsel %vm657, %v612, 0
      %v661 = vsel %vm657, %v614, 0
      %v662 = vsel %vm657, %v616, 0
      %v663 = vsel %vm657, %v618, 0
      %v664 = vsel %vm657, %v620, 0
      %v665 = vsel %vm657, %v622, 0
      %v666 = vsel %vm657, %v624, 0
      %v667 = vsel %vm657, %v626, 0
      %v668 = vsel %vm657, %v628, 0
      %v669 = vsel %vm657, %v630, 0
      %v670 = vsel %vm657, %v632, 0
      %v671 = vsel %vm657, %v634, 0
      %v672 = vsel %vm657, %v636, 0
      %v673 = vsel %vm657, %v638, 0
      %690 = vrot.lane.b32.xlu0 %v444, 8
      %v691 = vpop.permute.xlu0 %690
      %692 = vrot.lane.b32.xlu0 %v445, 8
      %v693 = vpop.permute.xlu0 %692
      %694 = vrot.lane.b32.xlu0 %v446, 8
      %v695 = vpop.permute.xlu0 %694
      %696 = vrot.lane.b32.xlu0 %v447, 8
      %v697 = vpop.permute.xlu0 %696
      %698 = vrot.lane.b32.xlu0 %v448, 8
      %v699 = vpop.permute.xlu0 %698
      %700 = vrot.lane.b32.xlu0 %v449, 8
      %v701 = vpop.permute.xlu0 %700
      %702 = vrot.lane.b32.xlu0 %v450, 8
      %v703 = vpop.permute.xlu0 %702
      %704 = vrot.lane.b32.xlu0 %v451, 8
      %v705 = vpop.permute.xlu0 %704
      %706 = vrot.lane.b32.xlu0 %v452, 8
      %v707 = vpop.permute.xlu0 %706
      %708 = vrot.lane.b32.xlu0 %v453, 8
      %v709 = vpop.permute.xlu0 %708
      %710 = vrot.lane.b32.xlu0 %v454, 8
      %v711 = vpop.permute.xlu0 %710
      %712 = vrot.lane.b32.xlu0 %v455, 8
      %v713 = vpop.permute.xlu0 %712
      %714 = vrot.lane.b32.xlu0 %v456, 8
      %v715 = vpop.permute.xlu0 %714
      %716 = vrot.lane.b32.xlu0 %v457, 8
      %v717 = vpop.permute.xlu0 %716
      %718 = vrot.lane.b32.xlu0 %v458, 8
      %v719 = vpop.permute.xlu0 %718
      %720 = vrot.lane.b32.xlu0 %v459, 8
      %v721 = vpop.permute.xlu0 %720
      %738 = vrot.lane.b32.xlu0 %v658, 16
      %v739 = vpop.permute.xlu0 %738
      %740 = vrot.lane.b32.xlu0 %v659, 16
      %v741 = vpop.permute.xlu0 %740
      %742 = vrot.lane.b32.xlu0 %v660, 16
      %v743 = vpop.permute.xlu0 %742
      %744 = vrot.lane.b32.xlu0 %v661, 16
      %v745 = vpop.permute.xlu0 %744
      %746 = vrot.lane.b32.xlu0 %v662, 16
      %v747 = vpop.permute.xlu0 %746
      %748 = vrot.lane.b32.xlu0 %v663, 16
      %v749 = vpop.permute.xlu0 %748
      %750 = vrot.lane.b32.xlu0 %v664, 16
      %v751 = vpop.permute.xlu0 %750
      %752 = vrot.lane.b32.xlu0 %v665, 16
      %v753 = vpop.permute.xlu0 %752
      %754 = vrot.lane.b32.xlu0 %v666, 16
      %v755 = vpop.permute.xlu0 %754
      %756 = vrot.lane.b32.xlu0 %v667, 16
      %v757 = vpop.permute.xlu0 %756
      %758 = vrot.lane.b32.xlu0 %v668, 16
      %v759 = vpop.permute.xlu0 %758
      %760 = vrot.lane.b32.xlu0 %v669, 16
      %v761 = vpop.permute.xlu0 %760
      %762 = vrot.lane.b32.xlu0 %v670, 16
      %v763 = vpop.permute.xlu0 %762
      %764 = vrot.lane.b32.xlu0 %v671, 16
      %v765 = vpop.permute.xlu0 %764
      %766 = vrot.lane.b32.xlu0 %v672, 16
      %v767 = vpop.permute.xlu0 %766
      %768 = vrot.lane.b32.xlu0 %v673, 16
      %v769 = vpop.permute.xlu0 %768
      %vm770 = vcmask 64512
      %v773 = vsel %vm770, %v591, %v691
      %v776 = vsel %vm770, %v592, %v693
      %v779 = vsel %vm770, %v593, %v695
      %v782 = vsel %vm770, %v594, %v697
      %v785 = vsel %vm770, %v595, %v699
      %v788 = vsel %vm770, %v596, %v701
      %v791 = vsel %vm770, %v597, %v703
      %v794 = vsel %vm770, %v598, %v705
      %v797 = vsel %vm770, %v599, %v707
      %v800 = vsel %vm770, %v600, %v709
      %v803 = vsel %vm770, %v601, %v711
      %v806 = vsel %vm770, %v602, %v713
      %v809 = vsel %vm770, %v603, %v715
      %v812 = vsel %vm770, %v604, %v717
      %v815 = vsel %vm770, %v605, %v719
      %v818 = vsel %vm770, %v606, %v721
      %vm819 = vcmask 130048
      %v821 = vsel %vm819, %v773, %v739
      %v823 = vsel %vm819, %v776, %v741
      %v825 = vsel %vm819, %v779, %v743
      %v827 = vsel %vm819, %v782, %v745
      %v829 = vsel %vm819, %v785, %v747
      %v831 = vsel %vm819, %v788, %v749
      %v833 = vsel %vm819, %v791, %v751
      %v835 = vsel %vm819, %v794, %v753
      %v837 = vsel %vm819, %v797, %v755
      %v839 = vsel %vm819, %v800, %v757
      %v841 = vsel %vm819, %v803, %v759
      %v843 = vsel %vm819, %v806, %v761
      %v845 = vsel %vm819, %v809, %v763
      %v847 = vsel %vm819, %v812, %v765
      %v849 = vsel %vm819, %v815, %v767
      %v851 = vsel %vm819, %v818, %v769
      %v852 = vld [vmem:[%s3] sm:$0xf]
      %v853 = vld [vmem:[%s3 + $0x4] sm:$0xf]
      %v854 = vld [vmem:[%s3 + $0x8] sm:$0xf]
      %s855 = scalar_lea.vmem %s3, 12
      %v856 = vld [vmem:[%s855] sm:$0xf]
      %v857 = vld [vmem:[%s855 + $0x4] sm:$0xf]
      %v858 = vld [vmem:[%s855 + $0x8] sm:$0xf]
      %s859 = scalar_lea.vmem %s3, 24
      %v860 = vld [vmem:[%s859] sm:$0xf]
      %v861 = vld [vmem:[%s859 + $0x4] sm:$0xf]
      %v862 = vld [vmem:[%s859 + $0x8] sm:$0xf]
      %v866 = vunpack.c.l.b16 %v856
      %v867 = vunpack.c.l.b16 %v857
      %v868 = vunpack.c.l.b16 %v858
      %v869 = vpack.c.b16 %v867, %v866
      %v870 = vpack.c.b16 %v868, %v868
      %vm872 = vcmask 195584
      %v873 = vsel %vm872, %v821, 0
      %v875 = vsel %vm872, %v823, 0
      %v877 = vsel %vm872, %v825, 0
      %v879 = vsel %vm872, %v827, 0
      %v881 = vsel %vm872, %v829, 0
      %v883 = vsel %vm872, %v831, 0
      %v885 = vsel %vm872, %v833, 0
      %v887 = vsel %vm872, %v835, 0
      %v889 = vsel %vm872, %v837, 0
      %v891 = vsel %vm872, %v839, 0
      %v893 = vsel %vm872, %v841, 0
      %v895 = vsel %vm872, %v843, 0
      %v897 = vsel %vm872, %v845, 0
      %v899 = vsel %vm872, %v847, 0
      %v901 = vsel %vm872, %v849, 0
      %v903 = vsel %vm872, %v851, 0
      %vm905 = vcmask 1043456
      %v907 = vsel %vm905, %v870, 0
      %909 = vmatprep.subr.bf16.mxu0 0
      %910 = vmatpush1.bf16.msra.mxu0 %v869
      %911 = vmatprep.subr.bf16.mxu0 0
      %912 = vmatpush1.bf16.msra.mxu0 %v907
      %913 = vmatprep.subr.bf16.mxu0 0
      %914 = vmatpush1.bf16.msra.mxu0 0
      %915 = vmatprep.subr.bf16.mxu0 0
      %916 = vmatpush1.bf16.msra.mxu0 0
      %917 = vmatprep.subr.bf16.mxu0 0
      %918 = vmatpush1.bf16.msra.mxu0 0
      %919 = vmatprep.subr.bf16.mxu0 0
      %920 = vmatpush1.bf16.msra.mxu0 0
      %921 = vmatprep.subr.bf16.mxu0 0
      %922 = vmatpush1.bf16.msra.mxu0 0
      %923 = vmatprep.subr.bf16.mxu0 0
      %924 = vmatpush1.bf16.msra.mxu0 0
      %925 = vmatprep.subr.bf16.mxu0 0
      %926 = vmatpush1.bf16.msra.mxu0 0
      %927 = vmatprep.subr.bf16.mxu0 0
      %928 = vmatpush1.bf16.msra.mxu0 0
      %929 = vmatprep.subr.bf16.mxu0 0
      %930 = vmatpush1.bf16.msra.mxu0 0
      %931 = vmatprep.subr.bf16.mxu0 0
      %932 = vmatpush1.bf16.msra.mxu0 0
      %933 = vmatprep.subr.bf16.mxu0 0
      %934 = vmatpush1.bf16.msra.mxu0 0
      %935 = vmatprep.subr.bf16.mxu0 0
      %936 = vmatpush1.bf16.msra.mxu0 0
      %937 = vmatprep.subr.bf16.mxu0 0
      %938 = vmatpush1.bf16.msra.mxu0 0
      %939 = vmatprep.subr.bf16.mxu0 0
      %940 = vmatpush1.bf16.msra.mxu0 0
      %941 = vmatprep.mubr.bf16.mxu0 0
      %942 = vmatmul.mubr.bf16.gmra.mrb[0].mxu0 %v873
      %v943 = vpop.f32.mrb[0].mxu0
      %v944 = vadd.f32 0.0, %v943
      %v945 = vpop.f32.mrb[0].mxu0
      %v946 = vpop.f32.mrb[0].mxu0
      %v947 = vadd.f32 0.0, %v946
      %v948 = vpop.f32.mrb[0].mxu0
      %949 = vmatprep.mubr.bf16.mxu0 0
      %950 = vmatmul.mubr.bf16.gmra.mrb[0].mxu0 %v875
      %v951 = vpop.f32.mrb[0].mxu0
      %v952 = vadd.f32 0.0, %v951
      %v953 = vpop.f32.mrb[0].mxu0
      %v954 = vpop.f32.mrb[0].mxu0
      %v955 = vadd.f32 0.0, %v954
      %v956 = vpop.f32.mrb[0].mxu0
      %957 = vmatprep.mubr.bf16.mxu0 0
      %958 = vmatmul.mubr.bf16.gmra.mrb[0].mxu0 %v877
      %v959 = vpop.f32.mrb[0].mxu0
      %v960 = vadd.f32 0.0, %v959
      %v961 = vpop.f32.mrb[0].mxu0
      %v962 = vpop.f32.mrb[0].mxu0
      %v963 = vadd.f32 0.0, %v962
      %v964 = vpop.f32.mrb[0].mxu0
      %965 = vmatprep.mubr.bf16.mxu0 0
      %966 = vmatmul.mubr.bf16.gmra.mrb[0].mxu0 %v879
      %v967 = vpop.f32.mrb[0].mxu0
      %v968 = vadd.f32 0.0, %v967
      %v969 = vpop.f32.mrb[0].mxu0
      %v970 = vpop.f32.mrb[0].mxu0
      %v971 = vadd.f32 0.0, %v970
      %v972 = vpop.f32.mrb[0].mxu0
      %973 = vmatprep.mubr.bf16.mxu0 0
      %974 = vmatmul.mubr.bf16.gmra.mrb[0].mxu0 %v881
      %v975 = vpop.f32.mrb[0].mxu0
      %v976 = vadd.f32 0.0, %v975
      %v977 = vpop.f32.mrb[0].mxu0
      %v978 = vpop.f32.mrb[0].mxu0
      %v979 = vadd.f32 0.0, %v978
      %v980 = vpop.f32.mrb[0].mxu0
      %981 = vmatprep.mubr.bf16.mxu0 0
      %982 = vmatmul.mubr.bf16.gmra.mrb[0].mxu0 %v883
      %v983 = vpop.f32.mrb[0].mxu0
      %v984 = vadd.f32 0.0, %v983
      %v985 = vpop.f32.mrb[0].mxu0
      %v986 = vpop.f32.mrb[0].mxu0
      %v987 = vadd.f32 0.0, %v986
      %v988 = vpop.f32.mrb[0].mxu0
      %989 = vmatprep.mubr.bf16.mxu0 0
      %990 = vmatmul.mubr.bf16.gmra.mrb[0].mxu0 %v885
      %v991 = vpop.f32.mrb[0].mxu0
      %v992 = vadd.f32 0.0, %v991
      %v993 = vpop.f32.mrb[0].mxu0
      %v994 = vpop.f32.mrb[0].mxu0
      %v995 = vadd.f32 0.0, %v994
      %v996 = vpop.f32.mrb[0].mxu0
      %997 = vmatprep.mubr.bf16.mxu0 0
      %998 = vmatmul.mubr.bf16.gmra.mrb[0].mxu0 %v887
      %v999 = vpop.f32.mrb[0].mxu0
      %v1000 = vadd.f32 0.0, %v999
      %v1001 = vpop.f32.mrb[0].mxu0
      %v1002 = vpop.f32.mrb[0].mxu0
      %v1003 = vadd.f32 0.0, %v1002
      %v1004 = vpop.f32.mrb[0].mxu0
      %1005 = vmatprep.mubr.bf16.mxu0 0
      %1006 = vmatmul.mubr.bf16.gmra.mrb[0].mxu0 %v889
      %v1007 = vpop.f32.mrb[0].mxu0
      %v1008 = vadd.f32 0.0, %v1007
      %v1009 = vpop.f32.mrb[0].mxu0
      %v1010 = vpop.f32.mrb[0].mxu0
      %v1011 = vadd.f32 0.0, %v1010
      %v1012 = vpop.f32.mrb[0].mxu0
      %1013 = vmatprep.mubr.bf16.mxu0 0
      %1014 = vmatmul.mubr.bf16.gmra.mrb[0].mxu0 %v891
      %v1015 = vpop.f32.mrb[0].mxu0
      %v1016 = vadd.f32 0.0, %v1015
      %v1017 = vpop.f32.mrb[0].mxu0
      %v1018 = vpop.f32.mrb[0].mxu0
      %v1019 = vadd.f32 0.0, %v1018
      %v1020 = vpop.f32.mrb[0].mxu0
      %1021 = vmatprep.mubr.bf16.mxu0 0
      %1022 = vmatmul.mubr.bf16.gmra.mrb[0].mxu0 %v893
      %v1023 = vpop.f32.mrb[0].mxu0
      %v1024 = vadd.f32 0.0, %v1023
      %v1025 = vpop.f32.mrb[0].mxu0
      %v1026 = vpop.f32.mrb[0].mxu0
      %v1027 = vadd.f32 0.0, %v1026
      %v1028 = vpop.f32.mrb[0].mxu0
      %1029 = vmatprep.mubr.bf16.mxu0 0
      %1030 = vmatmul.mubr.bf16.gmra.mrb[0].mxu0 %v895
      %v1031 = vpop.f32.mrb[0].mxu0
      %v1032 = vadd.f32 0.0, %v1031
      %v1033 = vpop.f32.mrb[0].mxu0
      %v1034 = vpop.f32.mrb[0].mxu0
      %v1035 = vadd.f32 0.0, %v1034
      %v1036 = vpop.f32.mrb[0].mxu0
      %1037 = vmatprep.mubr.bf16.mxu0 0
      %1038 = vmatmul.mubr.bf16.gmra.mrb[0].mxu0 %v897
      %v1039 = vpop.f32.mrb[0].mxu0
      %v1040 = vadd.f32 0.0, %v1039
      %v1041 = vpop.f32.mrb[0].mxu0
      %v1042 = vpop.f32.mrb[0].mxu0
      %v1043 = vadd.f32 0.0, %v1042
      %v1044 = vpop.f32.mrb[0].mxu0
      %1045 = vmatprep.mubr.bf16.mxu0 0
      %1046 = vmatmul.mubr.bf16.gmra.mrb[0].mxu0 %v899
      %v1047 = vpop.f32.mrb[0].mxu0
      %v1048 = vadd.f32 0.0, %v1047
      %v1049 = vpop.f32.mrb[0].mxu0
      %v1050 = vpop.f32.mrb[0].mxu0
      %v1051 = vadd.f32 0.0, %v1050
      %v1052 = vpop.f32.mrb[0].mxu0
      %1053 = vmatprep.mubr.bf16.mxu0 0
      %1054 = vmatmul.mubr.bf16.gmra.mrb[0].mxu0 %v901
      %v1055 = vpop.f32.mrb[0].mxu0
      %v1056 = vadd.f32 0.0, %v1055
      %v1057 = vpop.f32.mrb[0].mxu0
      %v1058 = vpop.f32.mrb[0].mxu0
      %v1059 = vadd.f32 0.0, %v1058
      %v1060 = vpop.f32.mrb[0].mxu0
      %1061 = vmatprep.mubr.bf16.mxu0 0
      %1062 = vmatmul.mubr.bf16.gmra.mrb[0].mxu0 %v903
      %v1063 = vpop.f32.mrb[0].mxu0
      %v1064 = vadd.f32 0.0, %v1063
      %v1065 = vpop.f32.mrb[0].mxu0
      %v1066 = vpop.f32.mrb[0].mxu0
      %v1067 = vadd.f32 0.0, %v1066
      %v1068 = vpop.f32.mrb[0].mxu0
      %1069 = vdwg.mxu0
      %1070 = vst.msk [vmem:[#allocation2] sm:$0xff] %vm770, %v944
      %1071 = vst.msk [vmem:[#allocation2 + $0x8] sm:$0xff] %vm770, %v947
      %1072 = vst.msk [vmem:[#allocation2 + $0x10] sm:$0xff] %vm770, %v952
      %1073 = vst.msk [vmem:[#allocation2 + $0x18] sm:$0xff] %vm770, %v955
      %1074 = vst.msk [vmem:[#allocation2 + $0x20] sm:$0xff] %vm770, %v960
      %1075 = vst.msk [vmem:[#allocation2 + $0x28] sm:$0xff] %vm770, %v963
      %1076 = vst.msk [vmem:[#allocation2 + $0x30] sm:$0xff] %vm770, %v968
      %1077 = vst.msk [vmem:[#allocation2 + $0x38] sm:$0xff] %vm770, %v971
      %1078 = vst.msk [vmem:[#allocation2 + $0x40] sm:$0xff] %vm770, %v976
      %1079 = vst.msk [vmem:[#allocation2 + $0x48] sm:$0xff] %vm770, %v979
      %1080 = vst.msk [vmem:[#allocation2 + $0x50] sm:$0xff] %vm770, %v984
      %1081 = vst.msk [vmem:[#allocation2 + $0x58] sm:$0xff] %vm770, %v987
      %1082 = vst.msk [vmem:[#allocation2 + $0x60] sm:$0xff] %vm770, %v992
      %1083 = vst.msk [vmem:[#allocation2 + $0x68] sm:$0xff] %vm770, %v995
      %1084 = vst.msk [vmem:[#allocation2 + $0x70] sm:$0xff] %vm770, %v1000
      %1085 = vst.msk [vmem:[#allocation2 + $0x78] sm:$0xff] %vm770, %v1003
      %1086 = vst.msk [vmem:[#allocation2 + $0x80] sm:$0xff] %vm770, %v1008
      %1087 = vst.msk [vmem:[#allocation2 + $0x88] sm:$0xff] %vm770, %v1011
      %1088 = vst.msk [vmem:[#allocation2 + $0x90] sm:$0xff] %vm770, %v1016
      %1089 = vst.msk [vmem:[#allocation2 + $0x98] sm:$0xff] %vm770, %v1019
      %1090 = vst.msk [vmem:[#allocation2 + $0xa0] sm:$0xff] %vm770, %v1024
      %1091 = vst.msk [vmem:[#allocation2 + $0xa8] sm:$0xff] %vm770, %v1027
      %1092 = vst.msk [vmem:[#allocation2 + $0xb0] sm:$0xff] %vm770, %v1032
      %1093 = vst.msk [vmem:[#allocation2 + $0xb8] sm:$0xff] %vm770, %v1035
      %1094 = vst.msk [vmem:[#allocation2 + $0xc0] sm:$0xff] %vm770, %v1040
      %1095 = vst.msk [vmem:[#allocation2 + $0xc8] sm:$0xff] %vm770, %v1043
      %1096 = vst.msk [vmem:[#allocation2 + $0xd0] sm:$0xff] %vm770, %v1048
      %1097 = vst.msk [vmem:[#allocation2 + $0xd8] sm:$0xff] %vm770, %v1051
      %1098 = vst.msk [vmem:[#allocation2 + $0xe0] sm:$0xff] %vm770, %v1056
      %1099 = vst.msk [vmem:[#allocation2 + $0xe8] sm:$0xff] %vm770, %v1059
      %1100 = vst.msk [vmem:[#allocation2 + $0xf0] sm:$0xff] %vm770, %v1064
      %1101 = vst.msk [vmem:[#allocation2 + $0xf8] sm:$0xff] %vm770, %v1067
      %v1102 = vld [vmem:[#allocation2 + $0x10] sm:$0xff]
      %v1103 = vld [vmem:[#allocation2 + $0x18] sm:$0xff]
      %v1104 = vld [vmem:[#allocation2 + $0x20] sm:$0xff]
      %v1105 = vld [vmem:[#allocation2 + $0x28] sm:$0xff]
      %v1106 = vld [vmem:[#allocation2 + $0x30] sm:$0xff]
      %v1107 = vld [vmem:[#allocation2 + $0x38] sm:$0xff]
      %v1108 = vld [vmem:[#allocation2 + $0x40] sm:$0xff]
      %v1109 = vld [vmem:[#allocation2 + $0x48] sm:$0xff]
      %v1110 = vld [vmem:[#allocation2 + $0x50] sm:$0xff]
      %v1111 = vld [vmem:[#allocation2 + $0x58] sm:$0xff]
      %v1112 = vld [vmem:[#allocation2 + $0x60] sm:$0xff]
      %v1113 = vld [vmem:[#allocation2 + $0x68] sm:$0xff]
      %v1114 = vld [vmem:[#allocation2 + $0x70] sm:$0xff]
      %v1115 = vld [vmem:[#allocation2 + $0x78] sm:$0xff]
      %v1116 = vld [vmem:[#allocation2 + $0x80] sm:$0xff]
      %v1117 = vld [vmem:[#allocation2 + $0x88] sm:$0xff]
      %v1118 = vld [vmem:[#allocation2 + $0x90] sm:$0xff]
      %v1119 = vld [vmem:[#allocation2 + $0x98] sm:$0xff]
      %v1120 = vld [vmem:[#allocation2 + $0xa0] sm:$0xff]
      %v1121 = vld [vmem:[#allocation2 + $0xa8] sm:$0xff]
      %v1122 = vld [vmem:[#allocation2 + $0xb0] sm:$0xff]
      %v1123 = vld [vmem:[#allocation2 + $0xb8] sm:$0xff]
      %v1124 = vld [vmem:[#allocation2 + $0xc0] sm:$0xff]
      %v1125 = vld [vmem:[#allocation2 + $0xc8] sm:$0xff]
      %v1126 = vld [vmem:[#allocation2 + $0xd0] sm:$0xff]
      %v1127 = vld [vmem:[#allocation2 + $0xd8] sm:$0xff]
      %v1128 = vld [vmem:[#allocation2 + $0xe0] sm:$0xff]
      %v1129 = vld [vmem:[#allocation2 + $0xe8] sm:$0xff]
      %v1130 = vld [vmem:[#allocation2 + $0xf0] sm:$0xff]
      %v1131 = vld [vmem:[#allocation2 + $0xf8] sm:$0xff]
      %v1135 = vunpack.c.l.b16 %v852
      %v1136 = vunpack.c.l.b16 %v853
      %v1137 = vunpack.c.l.b16 %v854
      %v1138 = vpack.c.b16 %v1136, %v1135
      %v1139 = vpack.c.b16 %v1137, %v1137
      %v1142 = vsel %vm905, %v1139, 0
      %1144 = vmatprep.subr.bf16.mxu0 0
      %1145 = vmatpush1.bf16.msra.mxu0 %v1138
      %1146 = vmatprep.subr.bf16.mxu0 0
      %1147 = vmatpush1.bf16.msra.mxu0 %v1142
      %1148 = vmatprep.subr.bf16.mxu0 0
      %1149 = vmatpush1.bf16.msra.mxu0 0
      %1150 = vmatprep.subr.bf16.mxu0 0
      %1151 = vmatpush1.bf16.msra.mxu0 0
      %1152 = vmatprep.subr.bf16.mxu0 0
      %1153 = vmatpush1.bf16.msra.mxu0 0
      %1154 = vmatprep.subr.bf16.mxu0 0
      %1155 = vmatpush1.bf16.msra.mxu0 0
      %1156 = vmatprep.subr.bf16.mxu0 0
      %1157 = vmatpush1.bf16.msra.mxu0 0
      %1158 = vmatprep.subr.bf16.mxu0 0
      %1159 = vmatpush1.bf16.msra.mxu0 0
      %1160 = vmatprep.subr.bf16.mxu0 0
      %1161 = vmatpush1.bf16.msra.mxu0 0
      %1162 = vmatprep.subr.bf16.mxu0 0
      %1163 = vmatpush1.bf16.msra.mxu0 0
      %1164 = vmatprep.subr.bf16.mxu0 0
      %1165 = vmatpush1.bf16.msra.mxu0 0
      %1166 = vmatprep.subr.bf16.mxu0 0
      %1167 = vmatpush1.bf16.msra.mxu0 0
      %1168 = vmatprep.subr.bf16.mxu0 0
      %1169 = vmatpush1.bf16.msra.mxu0 0
      %1170 = vmatprep.subr.bf16.mxu0 0
      %1171 = vmatpush1.bf16.msra.mxu0 0
      %1172 = vmatprep.subr.bf16.mxu0 0
      %1173 = vmatpush1.bf16.msra.mxu0 0
      %1174 = vmatprep.subr.bf16.mxu0 0
      %1175 = vmatpush1.bf16.msra.mxu0 0
      %1176 = vmatprep.mubr.bf16.mxu0 0
      %1177 = vmatmul.mubr.bf16.gmra.mrb[0].mxu0 %v873
      %v1178 = vpop.f32.mrb[0].mxu0
      %v1179 = vadd.f32 0.0, %v1178
      %v1180 = vpop.f32.mrb[0].mxu0
      %v1181 = vpop.f32.mrb[0].mxu0
      %v1182 = vadd.f32 0.0, %v1181
      %v1183 = vpop.f32.mrb[0].mxu0
      %1184 = vmatprep.mubr.bf16.mxu0 0
      %1185 = vmatmul.mubr.bf16.gmra.mrb[0].mxu0 %v875
      %v1186 = vpop.f32.mrb[0].mxu0
      %v1187 = vadd.f32 0.0, %v1186
      %v1188 = vpop.f32.mrb[0].mxu0
      %v1189 = vpop.f32.mrb[0].mxu0
      %v1190 = vadd.f32 0.0, %v1189
      %v1191 = vpop.f32.mrb[0].mxu0
      %1192 = vmatprep.mubr.bf16.mxu0 0
      %1193 = vmatmul.mubr.bf16.gmra.mrb[0].mxu0 %v877
      %v1194 = vpop.f32.mrb[0].mxu0
      %v1195 = vadd.f32 0.0, %v1194
      %v1196 = vpop.f32.mrb[0].mxu0
      %v1197 = vpop.f32.mrb[0].mxu0
      %v1198 = vadd.f32 0.0, %v1197
      %v1199 = vpop.f32.mrb[0].mxu0
      %1200 = vmatprep.mubr.bf16.mxu0 0
      %1201 = vmatmul.mubr.bf16.gmra.mrb[0].mxu0 %v879
      %v1202 = vpop.f32.mrb[0].mxu0
      %v1203 = vadd.f32 0.0, %v1202
      %v1204 = vpop.f32.mrb[0].mxu0
      %v1205 = vpop.f32.mrb[0].mxu0
      %v1206 = vadd.f32 0.0, %v1205
      %v1207 = vpop.f32.mrb[0].mxu0
      %1208 = vmatprep.mubr.bf16.mxu0 0
      %1209 = vmatmul.mubr.bf16.gmra.mrb[0].mxu0 %v881
      %v1210 = vpop.f32.mrb[0].mxu0
      %v1211 = vadd.f32 0.0, %v1210
      %v1212 = vpop.f32.mrb[0].mxu0
      %v1213 = vpop.f32.mrb[0].mxu0
      %v1214 = vadd.f32 0.0, %v1213
      %v1215 = vpop.f32.mrb[0].mxu0
      %1216 = vmatprep.mubr.bf16.mxu0 0
      %1217 = vmatmul.mubr.bf16.gmra.mrb[0].mxu0 %v883
      %v1218 = vpop.f32.mrb[0].mxu0
      %v1219 = vadd.f32 0.0, %v1218
      %v1220 = vpop.f32.mrb[0].mxu0
      %v1221 = vpop.f32.mrb[0].mxu0
      %v1222 = vadd.f32 0.0, %v1221
      %v1223 = vpop.f32.mrb[0].mxu0
      %1224 = vmatprep.mubr.bf16.mxu0 0
      %1225 = vmatmul.mubr.bf16.gmra.mrb[0].mxu0 %v885
      %v1226 = vpop.f32.mrb[0].mxu0
      %v1227 = vadd.f32 0.0, %v1226
      %v1228 = vpop.f32.mrb[0].mxu0
      %v1229 = vpop.f32.mrb[0].mxu0
      %v1230 = vadd.f32 0.0, %v1229
      %v1231 = vpop.f32.mrb[0].mxu0
      %1232 = vmatprep.mubr.bf16.mxu0 0
      %1233 = vmatmul.mubr.bf16.gmra.mrb[0].mxu0 %v887
      %v1234 = vpop.f32.mrb[0].mxu0
      %v1235 = vadd.f32 0.0, %v1234
      %v1236 = vpop.f32.mrb[0].mxu0
      %v1237 = vpop.f32.mrb[0].mxu0
      %v1238 = vadd.f32 0.0, %v1237
      %v1239 = vpop.f32.mrb[0].mxu0
      %1240 = vmatprep.mubr.bf16.mxu0 0
      %1241 = vmatmul.mubr.bf16.gmra.mrb[0].mxu0 %v889
      %v1242 = vpop.f32.mrb[0].mxu0
      %v1243 = vadd.f32 0.0, %v1242
      %v1244 = vpop.f32.mrb[0].mxu0
      %v1245 = vpop.f32.mrb[0].mxu0
      %v1246 = vadd.f32 0.0, %v1245
      %v1247 = vpop.f32.mrb[0].mxu0
      %1248 = vmatprep.mubr.bf16.mxu0 0
      %1249 = vmatmul.mubr.bf16.gmra.mrb[0].mxu0 %v891
      %v1250 = vpop.f32.mrb[0].mxu0
      %v1251 = vadd.f32 0.0, %v1250
      %v1252 = vpop.f32.mrb[0].mxu0
      %v1253 = vpop.f32.mrb[0].mxu0
      %v1254 = vadd.f32 0.0, %v1253
      %v1255 = vpop.f32.mrb[0].mxu0
      %1256 = vmatprep.mubr.bf16.mxu0 0
      %1257 = vmatmul.mubr.bf16.gmra.mrb[0].mxu0 %v893
      %v1258 = vpop.f32.mrb[0].mxu0
      %v1259 = vadd.f32 0.0, %v1258
      %v1260 = vpop.f32.mrb[0].mxu0
      %v1261 = vpop.f32.mrb[0].mxu0
      %v1262 = vadd.f32 0.0, %v1261
      %v1263 = vpop.f32.mrb[0].mxu0
      %1264 = vmatprep.mubr.bf16.mxu0 0
      %1265 = vmatmul.mubr.bf16.gmra.mrb[0].mxu0 %v895
      %v1266 = vpop.f32.mrb[0].mxu0
      %v1267 = vadd.f32 0.0, %v1266
      %v1268 = vpop.f32.mrb[0].mxu0
      %v1269 = vpop.f32.mrb[0].mxu0
      %v1270 = vadd.f32 0.0, %v1269
      %v1271 = vpop.f32.mrb[0].mxu0
      %1272 = vmatprep.mubr.bf16.mxu0 0
      %1273 = vmatmul.mubr.bf16.gmra.mrb[0].mxu0 %v897
      %v1274 = vpop.f32.mrb[0].mxu0
      %v1275 = vadd.f32 0.0, %v1274
      %v1276 = vpop.f32.mrb[0].mxu0
      %v1277 = vpop.f32.mrb[0].mxu0
      %v1278 = vadd.f32 0.0, %v1277
      %v1279 = vpop.f32.mrb[0].mxu0
      %1280 = vmatprep.mubr.bf16.mxu0 0
      %1281 = vmatmul.mubr.bf16.gmra.mrb[0].mxu0 %v899
      %v1282 = vpop.f32.mrb[0].mxu0
      %v1283 = vadd.f32 0.0, %v1282
      %v1284 = vpop.f32.mrb[0].mxu0
      %v1285 = vpop.f32.mrb[0].mxu0
      %v1286 = vadd.f32 0.0, %v1285
      %v1287 = vpop.f32.mrb[0].mxu0
      %1288 = vmatprep.mubr.bf16.mxu0 0
      %1289 = vmatmul.mubr.bf16.gmra.mrb[0].mxu0 %v901
      %v1290 = vpop.f32.mrb[0].mxu0
      %v1291 = vadd.f32 0.0, %v1290
      %v1292 = vpop.f32.mrb[0].mxu0
      %v1293 = vpop.f32.mrb[0].mxu0
      %v1294 = vadd.f32 0.0, %v1293
      %v1295 = vpop.f32.mrb[0].mxu0
      %1296 = vdwg.mxu0
      %v1297 = vadd.f32 %v1102, %v1179
      %v1298 = vadd.f32 %v1103, %v1182
      %v1299 = vadd.f32 %v1104, %v1187
      %v1300 = vadd.f32 %v1105, %v1190
      %v1301 = vadd.f32 %v1106, %v1195
      %v1302 = vadd.f32 %v1107, %v1198
      %v1303 = vadd.f32 %v1108, %v1203
      %v1304 = vadd.f32 %v1109, %v1206
      %v1305 = vadd.f32 %v1110, %v1211
      %v1306 = vadd.f32 %v1111, %v1214
      %v1307 = vadd.f32 %v1112, %v1219
      %v1308 = vadd.f32 %v1113, %v1222
      %v1309 = vadd.f32 %v1114, %v1227
      %v1310 = vadd.f32 %v1115, %v1230
      %v1311 = vadd.f32 %v1116, %v1235
      %v1312 = vadd.f32 %v1117, %v1238
      %v1313 = vadd.f32 %v1118, %v1243
      %v1314 = vadd.f32 %v1119, %v1246
      %v1315 = vadd.f32 %v1120, %v1251
      %v1316 = vadd.f32 %v1121, %v1254
      %v1317 = vadd.f32 %v1122, %v1259
      %v1318 = vadd.f32 %v1123, %v1262
      %v1319 = vadd.f32 %v1124, %v1267
      %v1320 = vadd.f32 %v1125, %v1270
      %v1321 = vadd.f32 %v1126, %v1275
      %v1322 = vadd.f32 %v1127, %v1278
      %v1323 = vadd.f32 %v1128, %v1283
      %v1324 = vadd.f32 %v1129, %v1286
      %v1325 = vadd.f32 %v1130, %v1291
      %v1326 = vadd.f32 %v1131, %v1294
      %1327 = vst.msk [vmem:[#allocation2 + $0x10] sm:$0xff] %vm770, %v1297
      %1328 = vst.msk [vmem:[#allocation2 + $0x18] sm:$0xff] %vm770, %v1298
      %1329 = vst.msk [vmem:[#allocation2 + $0x20] sm:$0xff] %vm770, %v1299
      %1330 = vst.msk [vmem:[#allocation2 + $0x28] sm:$0xff] %vm770, %v1300
      %1331 = vst.msk [vmem:[#allocation2 + $0x30] sm:$0xff] %vm770, %v1301
      %1332 = vst.msk [vmem:[#allocation2 + $0x38] sm:$0xff] %vm770, %v1302
      %1333 = vst.msk [vmem:[#allocation2 + $0x40] sm:$0xff] %vm770, %v1303
      %1334 = vst.msk [vmem:[#allocation2 + $0x48] sm:$0xff] %vm770, %v1304
      %1335 = vst.msk [vmem:[#allocation2 + $0x50] sm:$0xff] %vm770, %v1305
      %1336 = vst.msk [vmem:[#allocation2 + $0x58] sm:$0xff] %vm770, %v1306
      %1337 = vst.msk [vmem:[#allocation2 + $0x60] sm:$0xff] %vm770, %v1307
      %1338 = vst.msk [vmem:[#allocation2 + $0x68] sm:$0xff] %vm770, %v1308
      %1339 = vst.msk [vmem:[#allocation2 + $0x70] sm:$0xff] %vm770, %v1309
      %1340 = vst.msk [vmem:[#allocation2 + $0x78] sm:$0xff] %vm770, %v1310
      %1341 = vst.msk [vmem:[#allocation2 + $0x80] sm:$0xff] %vm770, %v1311
      %1342 = vst.msk [vmem:[#allocation2 + $0x88] sm:$0xff] %vm770, %v1312
      %1343 = vst.msk [vmem:[#allocation2 + $0x90] sm:$0xff] %vm770, %v1313
      %1344 = vst.msk [vmem:[#allocation2 + $0x98] sm:$0xff] %vm770, %v1314
      %1345 = vst.msk [vmem:[#allocation2 + $0xa0] sm:$0xff] %vm770, %v1315
      %1346 = vst.msk [vmem:[#allocation2 + $0xa8] sm:$0xff] %vm770, %v1316
      %1347 = vst.msk [vmem:[#allocation2 + $0xb0] sm:$0xff] %vm770, %v1317
      %1348 = vst.msk [vmem:[#allocation2 + $0xb8] sm:$0xff] %vm770, %v1318
      %1349 = vst.msk [vmem:[#allocation2 + $0xc0] sm:$0xff] %vm770, %v1319
      %1350 = vst.msk [vmem:[#allocation2 + $0xc8] sm:$0xff] %vm770, %v1320
      %1351 = vst.msk [vmem:[#allocation2 + $0xd0] sm:$0xff] %vm770, %v1321
      %1352 = vst.msk [vmem:[#allocation2 + $0xd8] sm:$0xff] %vm770, %v1322
      %1353 = vst.msk [vmem:[#allocation2 + $0xe0] sm:$0xff] %vm770, %v1323
      %1354 = vst.msk [vmem:[#allocation2 + $0xe8] sm:$0xff] %vm770, %v1324
      %1355 = vst.msk [vmem:[#allocation2 + $0xf0] sm:$0xff] %vm770, %v1325
      %1356 = vst.msk [vmem:[#allocation2 + $0xf8] sm:$0xff] %vm770, %v1326
      %v1357 = vld [vmem:[#allocation2] sm:$0xff]
      %v1358 = vld [vmem:[#allocation2 + $0x8] sm:$0xff]
      %v1359 = vld [vmem:[#allocation2 + $0x10] sm:$0xff]
      %v1360 = vld [vmem:[#allocation2 + $0x18] sm:$0xff]
      %v1361 = vld [vmem:[#allocation2 + $0x20] sm:$0xff]
      %v1362 = vld [vmem:[#allocation2 + $0x28] sm:$0xff]
      %v1363 = vld [vmem:[#allocation2 + $0x30] sm:$0xff]
      %v1364 = vld [vmem:[#allocation2 + $0x38] sm:$0xff]
      %v1365 = vld [vmem:[#allocation2 + $0x40] sm:$0xff]
      %v1366 = vld [vmem:[#allocation2 + $0x48] sm:$0xff]
      %v1367 = vld [vmem:[#allocation2 + $0x50] sm:$0xff]
      %v1368 = vld [vmem:[#allocation2 + $0x58] sm:$0xff]
      %v1369 = vld [vmem:[#allocation2 + $0x60] sm:$0xff]
      %v1370 = vld [vmem:[#allocation2 + $0x68] sm:$0xff]
      %v1371 = vld [vmem:[#allocation2 + $0x70] sm:$0xff]
      %v1372 = vld [vmem:[#allocation2 + $0x78] sm:$0xff]
      %v1373 = vld [vmem:[#allocation2 + $0x80] sm:$0xff]
      %v1374 = vld [vmem:[#allocation2 + $0x88] sm:$0xff]
      %v1375 = vld [vmem:[#allocation2 + $0x90] sm:$0xff]
      %v1376 = vld [vmem:[#allocation2 + $0x98] sm:$0xff]
      %v1377 = vld [vmem:[#allocation2 + $0xa0] sm:$0xff]
      %v1378 = vld [vmem:[#allocation2 + $0xa8] sm:$0xff]
      %v1379 = vld [vmem:[#allocation2 + $0xb0] sm:$0xff]
      %v1380 = vld [vmem:[#allocation2 + $0xb8] sm:$0xff]
      %v1381 = vld [vmem:[#allocation2 + $0xc0] sm:$0xff]
      %v1382 = vld [vmem:[#allocation2 + $0xc8] sm:$0xff]
      %v1383 = vld [vmem:[#allocation2 + $0xd0] sm:$0xff]
      %v1384 = vld [vmem:[#allocation2 + $0xd8] sm:$0xff]
      %v1385 = vld [vmem:[#allocation2 + $0xe0] sm:$0xff]
      %v1386 = vld [vmem:[#allocation2 + $0xe8] sm:$0xff]
      %v1390 = vunpack.c.l.b16 %v860
      %v1391 = vunpack.c.l.b16 %v861
      %v1392 = vunpack.c.l.b16 %v862
      %v1393 = vpack.c.b16 %v1391, %v1390
      %v1394 = vpack.c.b16 %v1392, %v1392
      %v1397 = vsel %vm905, %v1394, 0
      %1399 = vmatprep.subr.bf16.mxu0 0
      %1400 = vmatpush1.bf16.msra.mxu0 %v1393
      %1401 = vmatprep.subr.bf16.mxu0 0
      %1402 = vmatpush1.bf16.msra.mxu0 %v1397
      %1403 = vmatprep.subr.bf16.mxu0 0
      %1404 = vmatpush1.bf16.msra.mxu0 0
      %1405 = vmatprep.subr.bf16.mxu0 0
      %1406 = vmatpush1.bf16.msra.mxu0 0
      %1407 = vmatprep.subr.bf16.mxu0 0
      %1408 = vmatpush1.bf16.msra.mxu0 0
      %1409 = vmatprep.subr.bf16.mxu0 0
      %1410 = vmatpush1.bf16.msra.mxu0 0
      %1411 = vmatprep.subr.bf16.mxu0 0
      %1412 = vmatpush1.bf16.msra.mxu0 0
      %1413 = vmatprep.subr.bf16.mxu0 0
      %1414 = vmatpush1.bf16.msra.mxu0 0
      %1415 = vmatprep.subr.bf16.mxu0 0
      %1416 = vmatpush1.bf16.msra.mxu0 0
      %1417 = vmatprep.subr.bf16.mxu0 0
      %1418 = vmatpush1.bf16.msra.mxu0 0
      %1419 = vmatprep.subr.bf16.mxu0 0
      %1420 = vmatpush1.bf16.msra.mxu0 0
      %1421 = vmatprep.subr.bf16.mxu0 0
      %1422 = vmatpush1.bf16.msra.mxu0 0
      %1423 = vmatprep.subr.bf16.mxu0 0
      %1424 = vmatpush1.bf16.msra.mxu0 0
      %1425 = vmatprep.subr.bf16.mxu0 0
      %1426 = vmatpush1.bf16.msra.mxu0 0
      %1427 = vmatprep.subr.bf16.mxu0 0
      %1428 = vmatpush1.bf16.msra.mxu0 0
      %1429 = vmatprep.subr.bf16.mxu0 0
      %1430 = vmatpush1.bf16.msra.mxu0 0
      %1431 = vmatprep.mubr.bf16.mxu0 0
      %1432 = vmatmul.mubr.bf16.gmra.mrb[0].mxu0 %v875
      %v1433 = vpop.f32.mrb[0].mxu0
      %v1434 = vadd.f32 0.0, %v1433
      %v1435 = vpop.f32.mrb[0].mxu0
      %v1436 = vpop.f32.mrb[0].mxu0
      %v1437 = vadd.f32 0.0, %v1436
      %v1438 = vpop.f32.mrb[0].mxu0
      %1439 = vmatprep.mubr.bf16.mxu0 0
      %1440 = vmatmul.mubr.bf16.gmra.mrb[0].mxu0 %v877
      %v1441 = vpop.f32.mrb[0].mxu0
      %v1442 = vadd.f32 0.0, %v1441
      %v1443 = vpop.f32.mrb[0].mxu0
      %v1444 = vpop.f32.mrb[0].mxu0
      %v1445 = vadd.f32 0.0, %v1444
      %v1446 = vpop.f32.mrb[0].mxu0
      %1447 = vmatprep.mubr.bf16.mxu0 0
      %1448 = vmatmul.mubr.bf16.gmra.mrb[0].mxu0 %v879
      %v1449 = vpop.f32.mrb[0].mxu0
      %v1450 = vadd.f32 0.0, %v1449
      %v1451 = vpop.f32.mrb[0].mxu0
      %v1452 = vpop.f32.mrb[0].mxu0
      %v1453 = vadd.f32 0.0, %v1452
      %v1454 = vpop.f32.mrb[0].mxu0
      %1455 = vmatprep.mubr.bf16.mxu0 0
      %1456 = vmatmul.mubr.bf16.gmra.mrb[0].mxu0 %v881
      %v1457 = vpop.f32.mrb[0].mxu0
      %v1458 = vadd.f32 0.0, %v1457
      %v1459 = vpop.f32.mrb[0].mxu0
      %v1460 = vpop.f32.mrb[0].mxu0
      %v1461 = vadd.f32 0.0, %v1460
      %v1462 = vpop.f32.mrb[0].mxu0
      %1463 = vmatprep.mubr.bf16.mxu0 0
      %1464 = vmatmul.mubr.bf16.gmra.mrb[0].mxu0 %v883
      %v1465 = vpop.f32.mrb[0].mxu0
      %v1466 = vadd.f32 0.0, %v1465
      %v1467 = vpop.f32.mrb[0].mxu0
      %v1468 = vpop.f32.mrb[0].mxu0
      %v1469 = vadd.f32 0.0, %v1468
      %v1470 = vpop.f32.mrb[0].mxu0
      %1471 = vmatprep.mubr.bf16.mxu0 0
      %1472 = vmatmul.mubr.bf16.gmra.mrb[0].mxu0 %v885
      %v1473 = vpop.f32.mrb[0].mxu0
      %v1474 = vadd.f32 0.0, %v1473
      %v1475 = vpop.f32.mrb[0].mxu0
      %v1476 = vpop.f32.mrb[0].mxu0
      %v1477 = vadd.f32 0.0, %v1476
      %v1478 = vpop.f32.mrb[0].mxu0
      %1479 = vmatprep.mubr.bf16.mxu0 0
      %1480 = vmatmul.mubr.bf16.gmra.mrb[0].mxu0 %v887
      %v1481 = vpop.f32.mrb[0].mxu0
      %v1482 = vadd.f32 0.0, %v1481
      %v1483 = vpop.f32.mrb[0].mxu0
      %v1484 = vpop.f32.mrb[0].mxu0
      %v1485 = vadd.f32 0.0, %v1484
      %v1486 = vpop.f32.mrb[0].mxu0
      %1487 = vmatprep.mubr.bf16.mxu0 0
      %1488 = vmatmul.mubr.bf16.gmra.mrb[0].mxu0 %v889
      %v1489 = vpop.f32.mrb[0].mxu0
      %v1490 = vadd.f32 0.0, %v1489
      %v1491 = vpop.f32.mrb[0].mxu0
      %v1492 = vpop.f32.mrb[0].mxu0
      %v1493 = vadd.f32 0.0, %v1492
      %v1494 = vpop.f32.mrb[0].mxu0
      %1495 = vmatprep.mubr.bf16.mxu0 0
      %1496 = vmatmul.mubr.bf16.gmra.mrb[0].mxu0 %v891
      %v1497 = vpop.f32.mrb[0].mxu0
      %v1498 = vadd.f32 0.0, %v1497
      %v1499 = vpop.f32.mrb[0].mxu0
      %v1500 = vpop.f32.mrb[0].mxu0
      %v1501 = vadd.f32 0.0, %v1500
      %v1502 = vpop.f32.mrb[0].mxu0
      %1503 = vmatprep.mubr.bf16.mxu0 0
      %1504 = vmatmul.mubr.bf16.gmra.mrb[0].mxu0 %v893
      %v1505 = vpop.f32.mrb[0].mxu0
      %v1506 = vadd.f32 0.0, %v1505
      %v1507 = vpop.f32.mrb[0].mxu0
      %v1508 = vpop.f32.mrb[0].mxu0
      %v1509 = vadd.f32 0.0, %v1508
      %v1510 = vpop.f32.mrb[0].mxu0
      %1511 = vmatprep.mubr.bf16.mxu0 0
      %1512 = vmatmul.mubr.bf16.gmra.mrb[0].mxu0 %v895
      %v1513 = vpop.f32.mrb[0].mxu0
      %v1514 = vadd.f32 0.0, %v1513
      %v1515 = vpop.f32.mrb[0].mxu0
      %v1516 = vpop.f32.mrb[0].mxu0
      %v1517 = vadd.f32 0.0, %v1516
      %v1518 = vpop.f32.mrb[0].mxu0
      %1519 = vmatprep.mubr.bf16.mxu0 0
      %1520 = vmatmul.mubr.bf16.gmra.mrb[0].mxu0 %v897
      %v1521 = vpop.f32.mrb[0].mxu0
      %v1522 = vadd.f32 0.0, %v1521
      %v1523 = vpop.f32.mrb[0].mxu0
      %v1524 = vpop.f32.mrb[0].mxu0
      %v1525 = vadd.f32 0.0, %v1524
      %v1526 = vpop.f32.mrb[0].mxu0
      %1527 = vmatprep.mubr.bf16.mxu0 0
      %1528 = vmatmul.mubr.bf16.gmra.mrb[0].mxu0 %v899
      %v1529 = vpop.f32.mrb[0].mxu0
      %v1530 = vadd.f32 0.0, %v1529
      %v1531 = vpop.f32.mrb[0].mxu0
      %v1532 = vpop.f32.mrb[0].mxu0
      %v1533 = vadd.f32 0.0, %v1532
      %v1534 = vpop.f32.mrb[0].mxu0
      %1535 = vmatprep.mubr.bf16.mxu0 0
      %1536 = vmatmul.mubr.bf16.gmra.mrb[0].mxu0 %v901
      %v1537 = vpop.f32.mrb[0].mxu0
      %v1538 = vadd.f32 0.0, %v1537
      %v1539 = vpop.f32.mrb[0].mxu0
      %v1540 = vpop.f32.mrb[0].mxu0
      %v1541 = vadd.f32 0.0, %v1540
      %v1542 = vpop.f32.mrb[0].mxu0
      %1543 = vmatprep.mubr.bf16.mxu0 0
      %1544 = vmatmul.mubr.bf16.gmra.mrb[0].mxu0 %v903
      %v1545 = vpop.f32.mrb[0].mxu0
      %v1546 = vadd.f32 0.0, %v1545
      %v1547 = vpop.f32.mrb[0].mxu0
      %v1548 = vpop.f32.mrb[0].mxu0
      %v1549 = vadd.f32 0.0, %v1548
      %v1550 = vpop.f32.mrb[0].mxu0
      %1551 = vdwg.mxu0
      %v1552 = vadd.f32 %v1357, %v1434
      %v1553 = vadd.f32 %v1358, %v1437
      %v1554 = vadd.f32 %v1359, %v1442
      %v1555 = vadd.f32 %v1360, %v1445
      %v1556 = vadd.f32 %v1361, %v1450
      %v1557 = vadd.f32 %v1362, %v1453
      %v1558 = vadd.f32 %v1363, %v1458
      %v1559 = vadd.f32 %v1364, %v1461
      %v1560 = vadd.f32 %v1365, %v1466
      %v1561 = vadd.f32 %v1366, %v1469
      %v1562 = vadd.f32 %v1367, %v1474
      %v1563 = vadd.f32 %v1368, %v1477
      %v1564 = vadd.f32 %v1369, %v1482
      %v1565 = vadd.f32 %v1370, %v1485
      %v1566 = vadd.f32 %v1371, %v1490
      %v1567 = vadd.f32 %v1372, %v1493
      %v1568 = vadd.f32 %v1373, %v1498
      %v1569 = vadd.f32 %v1374, %v1501
      %v1570 = vadd.f32 %v1375, %v1506
      %v1571 = vadd.f32 %v1376, %v1509
      %v1572 = vadd.f32 %v1377, %v1514
      %v1573 = vadd.f32 %v1378, %v1517
      %v1574 = vadd.f32 %v1379, %v1522
      %v1575 = vadd.f32 %v1380, %v1525
      %v1576 = vadd.f32 %v1381, %v1530
      %v1577 = vadd.f32 %v1382, %v1533
      %v1578 = vadd.f32 %v1383, %v1538
      %v1579 = vadd.f32 %v1384, %v1541
      %v1580 = vadd.f32 %v1385, %v1546
      %v1581 = vadd.f32 %v1386, %v1549
      %1582 = vst.msk [vmem:[#allocation2] sm:$0xff] %vm770, %v1552
      %1583 = vst.msk [vmem:[#allocation2 + $0x8] sm:$0xff] %vm770, %v1553
      %1584 = vst.msk [vmem:[#allocation2 + $0x10] sm:$0xff] %vm770, %v1554
      %1585 = vst.msk [vmem:[#allocation2 + $0x18] sm:$0xff] %vm770, %v1555
      %1586 = vst.msk [vmem:[#allocation2 + $0x20] sm:$0xff] %vm770, %v1556
      %1587 = vst.msk [vmem:[#allocation2 + $0x28] sm:$0xff] %vm770, %v1557
      %1588 = vst.msk [vmem:[#allocation2 + $0x30] sm:$0xff] %vm770, %v1558
      %1589 = vst.msk [vmem:[#allocation2 + $0x38] sm:$0xff] %vm770, %v1559
      %1590 = vst.msk [vmem:[#allocation2 + $0x40] sm:$0xff] %vm770, %v1560
      %1591 = vst.msk [vmem:[#allocation2 + $0x48] sm:$0xff] %vm770, %v1561
      %1592 = vst.msk [vmem:[#allocation2 + $0x50] sm:$0xff] %vm770, %v1562
      %1593 = vst.msk [vmem:[#allocation2 + $0x58] sm:$0xff] %vm770, %v1563
      %1594 = vst.msk [vmem:[#allocation2 + $0x60] sm:$0xff] %vm770, %v1564
      %1595 = vst.msk [vmem:[#allocation2 + $0x68] sm:$0xff] %vm770, %v1565
      %1596 = vst.msk [vmem:[#allocation2 + $0x70] sm:$0xff] %vm770, %v1566
      %1597 = vst.msk [vmem:[#allocation2 + $0x78] sm:$0xff] %vm770, %v1567
      %1598 = vst.msk [vmem:[#allocation2 + $0x80] sm:$0xff] %vm770, %v1568
      %1599 = vst.msk [vmem:[#allocation2 + $0x88] sm:$0xff] %vm770, %v1569
      %1600 = vst.msk [vmem:[#allocation2 + $0x90] sm:$0xff] %vm770, %v1570
      %1601 = vst.msk [vmem:[#allocation2 + $0x98] sm:$0xff] %vm770, %v1571
      %1602 = vst.msk [vmem:[#allocation2 + $0xa0] sm:$0xff] %vm770, %v1572
      %1603 = vst.msk [vmem:[#allocation2 + $0xa8] sm:$0xff] %vm770, %v1573
      %1604 = vst.msk [vmem:[#allocation2 + $0xb0] sm:$0xff] %vm770, %v1574
      %1605 = vst.msk [vmem:[#allocation2 + $0xb8] sm:$0xff] %vm770, %v1575
      %1606 = vst.msk [vmem:[#allocation2 + $0xc0] sm:$0xff] %vm770, %v1576
      %1607 = vst.msk [vmem:[#allocation2 + $0xc8] sm:$0xff] %vm770, %v1577
      %1608 = vst.msk [vmem:[#allocation2 + $0xd0] sm:$0xff] %vm770, %v1578
      %1609 = vst.msk [vmem:[#allocation2 + $0xd8] sm:$0xff] %vm770, %v1579
      %1610 = vst.msk [vmem:[#allocation2 + $0xe0] sm:$0xff] %vm770, %v1580
      %1611 = vst.msk [vmem:[#allocation2 + $0xe8] sm:$0xff] %vm770, %v1581
      %v1612 = vld [vmem:[#allocation2] sm:$0xff]
      %v1613 = vld [vmem:[#allocation2 + $0x8] sm:$0xff]
      %v1614 = vld [vmem:[#allocation2 + $0x10] sm:$0xff]
      %v1615 = vld [vmem:[#allocation2 + $0x18] sm:$0xff]
      %v1616 = vld [vmem:[#allocation2 + $0x20] sm:$0xff]
      %v1617 = vld [vmem:[#allocation2 + $0x28] sm:$0xff]
      %v1618 = vld [vmem:[#allocation2 + $0x30] sm:$0xff]
      %v1619 = vld [vmem:[#allocation2 + $0x38] sm:$0xff]
      %v1620 = vld [vmem:[#allocation2 + $0x40] sm:$0xff]
      %v1621 = vld [vmem:[#allocation2 + $0x48] sm:$0xff]
      %v1622 = vld [vmem:[#allocation2 + $0x50] sm:$0xff]
      %v1623 = vld [vmem:[#allocation2 + $0x58] sm:$0xff]
      %v1624 = vld [vmem:[#allocation2 + $0x60] sm:$0xff]
      %v1625 = vld [vmem:[#allocation2 + $0x68] sm:$0xff]
      %v1626 = vld [vmem:[#allocation2 + $0x70] sm:$0xff]
      %v1627 = vld [vmem:[#allocation2 + $0x78] sm:$0xff]
      %v1628 = vld [vmem:[#allocation2 + $0x80] sm:$0xff]
      %v1629 = vld [vmem:[#allocation2 + $0x88] sm:$0xff]
      %v1630 = vld [vmem:[#allocation2 + $0x90] sm:$0xff]
      %v1631 = vld [vmem:[#allocation2 + $0x98] sm:$0xff]
      %v1632 = vld [vmem:[#allocation2 + $0xa0] sm:$0xff]
      %v1633 = vld [vmem:[#allocation2 + $0xa8] sm:$0xff]
      %v1634 = vld [vmem:[#allocation2 + $0xb0] sm:$0xff]
      %v1635 = vld [vmem:[#allocation2 + $0xb8] sm:$0xff]
      %v1636 = vld [vmem:[#allocation2 + $0xc0] sm:$0xff]
      %v1637 = vld [vmem:[#allocation2 + $0xc8] sm:$0xff]
      %v1638 = vld [vmem:[#allocation2 + $0xd0] sm:$0xff]
      %v1639 = vld [vmem:[#allocation2 + $0xd8] sm:$0xff]
      %v1640 = vld [vmem:[#allocation2 + $0xe0] sm:$0xff]
      %v1641 = vld [vmem:[#allocation2 + $0xe8] sm:$0xff]
      %v1642 = vld [vmem:[#allocation2 + $0xf0] sm:$0xff]
      %v1643 = vld [vmem:[#allocation2 + $0xf8] sm:$0xff]
      %v1644 = vpack.c.bf16 %v1613, %v1612
      %v1645 = vpack.c.bf16 %v1615, %v1614
      %v1646 = vpack.c.bf16 %v1617, %v1616
      %v1647 = vpack.c.bf16 %v1619, %v1618
      %v1648 = vpack.c.bf16 %v1621, %v1620
      %v1649 = vpack.c.bf16 %v1623, %v1622
      %v1650 = vpack.c.bf16 %v1625, %v1624
      %v1651 = vpack.c.bf16 %v1627, %v1626
      %v1652 = vpack.c.bf16 %v1629, %v1628
      %v1653 = vpack.c.bf16 %v1631, %v1630
      %v1654 = vpack.c.bf16 %v1633, %v1632
      %v1655 = vpack.c.bf16 %v1635, %v1634
      %v1656 = vpack.c.bf16 %v1637, %v1636
      %v1657 = vpack.c.bf16 %v1639, %v1638
      %v1658 = vpack.c.bf16 %v1641, %v1640
      %v1659 = vpack.c.bf16 %v1643, %v1642
      %v1676 = vunpack.c.l.b16 %v1644
      %v1677 = vunpack.c.h.b16 %v1644
      %v1678 = vunpack.c.l.b16 %v1645
      %v1679 = vunpack.c.h.b16 %v1645
      %v1680 = vunpack.c.l.b16 %v1646
      %v1681 = vunpack.c.h.b16 %v1646
      %v1682 = vunpack.c.l.b16 %v1647
      %v1683 = vunpack.c.h.b16 %v1647
      %v1684 = vunpack.c.l.b16 %v1648
      %v1685 = vunpack.c.h.b16 %v1648
      %v1686 = vunpack.c.l.b16 %v1649
      %v1687 = vunpack.c.h.b16 %v1649
      %v1688 = vunpack.c.l.b16 %v1650
      %v1689 = vunpack.c.h.b16 %v1650
      %v1690 = vunpack.c.l.b16 %v1651
      %v1691 = vunpack.c.h.b16 %v1651
      %v1692 = vunpack.c.l.b16 %v1652
      %v1693 = vunpack.c.h.b16 %v1652
      %v1694 = vunpack.c.l.b16 %v1653
      %v1695 = vunpack.c.h.b16 %v1653
      %v1696 = vunpack.c.l.b16 %v1654
      %v1697 = vunpack.c.h.b16 %v1654
      %v1698 = vunpack.c.l.b16 %v1655
      %v1699 = vunpack.c.h.b16 %v1655
      %v1700 = vunpack.c.l.b16 %v1656
      %v1701 = vunpack.c.h.b16 %v1656
      %v1702 = vunpack.c.l.b16 %v1657
      %v1703 = vunpack.c.h.b16 %v1657
      %v1704 = vunpack.c.l.b16 %v1658
      %v1705 = vunpack.c.h.b16 %v1658
      %v1706 = vunpack.c.l.b16 %v1659
      %v1707 = vunpack.c.h.b16 %v1659
      %v1708 = vpack.c.b16 %v1676, %v1676
      %v1709 = vpack.c.b16 %v1677, %v1677
      %v1710 = vpack.c.b16 %v1678, %v1678
      %v1711 = vpack.c.b16 %v1679, %v1679
      %v1712 = vpack.c.b16 %v1680, %v1680
      %v1713 = vpack.c.b16 %v1681, %v1681
      %v1714 = vpack.c.b16 %v1682, %v1682
      %v1715 = vpack.c.b16 %v1683, %v1683
      %v1716 = vpack.c.b16 %v1684, %v1684
      %v1717 = vpack.c.b16 %v1685, %v1685
      %v1718 = vpack.c.b16 %v1686, %v1686
      %v1719 = vpack.c.b16 %v1687, %v1687
      %v1720 = vpack.c.b16 %v1688, %v1688
      %v1721 = vpack.c.b16 %v1689, %v1689
      %v1722 = vpack.c.b16 %v1690, %v1690
      %v1723 = vpack.c.b16 %v1691, %v1691
      %v1724 = vpack.c.b16 %v1692, %v1692
      %v1725 = vpack.c.b16 %v1693, %v1693
      %v1726 = vpack.c.b16 %v1694, %v1694
      %v1727 = vpack.c.b16 %v1695, %v1695
      %v1728 = vpack.c.b16 %v1696, %v1696
      %v1729 = vpack.c.b16 %v1697, %v1697
      %v1730 = vpack.c.b16 %v1698, %v1698
      %v1731 = vpack.c.b16 %v1699, %v1699
      %v1732 = vpack.c.b16 %v1700, %v1700
      %v1733 = vpack.c.b16 %v1701, %v1701
      %v1734 = vpack.c.b16 %v1702, %v1702
      %v1735 = vpack.c.b16 %v1703, %v1703
      %v1736 = vpack.c.b16 %v1704, %v1704
      %v1737 = vpack.c.b16 %v1705, %v1705
      %v1738 = vpack.c.b16 %v1706, %v1706
      %v1739 = vpack.c.b16 %v1707, %v1707
      %vm1772 = vcmask 60416
      %1773 = vst.msk [vmem:[%s262] sm:$0xf] %vm1772, %v1708
      %1774 = vst.msk [vmem:[%s262 + $0x4] sm:$0xf] %vm1772, %v1709
      %1775 = vst.msk [vmem:[%s262 + $0x8] sm:$0xf] %vm1772, %v1710
      %1776 = vst.msk [vmem:[%s262 + $0xc] sm:$0xf] %vm1772, %v1711
      %1777 = vst.msk [vmem:[%s262 + $0x10] sm:$0xf] %vm1772, %v1712
      %1778 = vst.msk [vmem:[%s262 + $0x14] sm:$0xf] %vm1772, %v1713
      %1779 = vst.msk [vmem:[%s262 + $0x18] sm:$0xf] %vm1772, %v1714
      %1780 = vst.msk [vmem:[%s262 + $0x1c] sm:$0xf] %vm1772, %v1715
      %1781 = vst.msk [vmem:[%s262 + $0x20] sm:$0xf] %vm1772, %v1716
      %1782 = vst.msk [vmem:[%s262 + $0x24] sm:$0xf] %vm1772, %v1717
      %1783 = vst.msk [vmem:[%s262 + $0x28] sm:$0xf] %vm1772, %v1718
      %1784 = vst.msk [vmem:[%s262 + $0x2c] sm:$0xf] %vm1772, %v1719
      %1785 = vst.msk [vmem:[%s262 + $0x30] sm:$0xf] %vm1772, %v1720
      %1786 = vst.msk [vmem:[%s262 + $0x34] sm:$0xf] %vm1772, %v1721
      %1787 = vst.msk [vmem:[%s262 + $0x38] sm:$0xf] %vm1772, %v1722
      %1788 = vst.msk [vmem:[%s262 + $0x3c] sm:$0xf] %vm1772, %v1723
      %1789 = vst.msk [vmem:[%s262 + $0x40] sm:$0xf] %vm1772, %v1724
      %1790 = vst.msk [vmem:[%s262 + $0x44] sm:$0xf] %vm1772, %v1725
      %1791 = vst.msk [vmem:[%s262 + $0x48] sm:$0xf] %vm1772, %v1726
      %1792 = vst.msk [vmem:[%s262 + $0x4c] sm:$0xf] %vm1772, %v1727
      %1793 = vst.msk [vmem:[%s262 + $0x50] sm:$0xf] %vm1772, %v1728
      %1794 = vst.msk [vmem:[%s262 + $0x54] sm:$0xf] %vm1772, %v1729
      %1795 = vst.msk [vmem:[%s262 + $0x58] sm:$0xf] %vm1772, %v1730
      %1796 = vst.msk [vmem:[%s262 + $0x5c] sm:$0xf] %vm1772, %v1731
      %1797 = vst.msk [vmem:[%s262 + $0x60] sm:$0xf] %vm1772, %v1732
      %1798 = vst.msk [vmem:[%s262 + $0x64] sm:$0xf] %vm1772, %v1733
      %1799 = vst.msk [vmem:[%s262 + $0x68] sm:$0xf] %vm1772, %v1734
      %1800 = vst.msk [vmem:[%s262 + $0x6c] sm:$0xf] %vm1772, %v1735
      %1801 = vst.msk [vmem:[%s262 + $0x70] sm:$0xf] %vm1772, %v1736
      %1802 = vst.msk [vmem:[%s262 + $0x74] sm:$0xf] %vm1772, %v1737
      %1803 = vst.msk [vmem:[%s262 + $0x78] sm:$0xf] %vm1772, %v1738
      %1804 = vst.msk [vmem:[%s262 + $0x7c] sm:$0xf] %vm1772, %v1739
      %v1805 = vsel %vm770, %v1612, 0.0
      %v1806 = vsel %vm770, %v1613, 0.0
      %v1807 = vadd.f32 %v1805, %v1806
      %v1808 = vsel %vm770, %v1614, 0.0
      %v1809 = vadd.f32 %v1807, %v1808
      %v1810 = vsel %vm770, %v1615, 0.0
      %v1811 = vadd.f32 %v1809, %v1810
      %v1812 = vsel %vm770, %v1616, 0.0
      %v1813 = vadd.f32 %v1811, %v1812
      %v1814 = vsel %vm770, %v1617, 0.0
      %v1815 = vadd.f32 %v1813, %v1814
      %v1816 = vsel %vm770, %v1618, 0.0
      %v1817 = vadd.f32 %v1815, %v1816
      %v1818 = vsel %vm770, %v1619, 0.0
      %v1819 = vadd.f32 %v1817, %v1818
      %v1820 = vsel %vm770, %v1620, 0.0
      %v1821 = vadd.f32 %v1819, %v1820
      %v1822 = vsel %vm770, %v1621, 0.0
      %v1823 = vadd.f32 %v1821, %v1822
      %v1824 = vsel %vm770, %v1622, 0.0
      %v1825 = vadd.f32 %v1823, %v1824
      %v1826 = vsel %vm770, %v1623, 0.0
      %v1827 = vadd.f32 %v1825, %v1826
      %v1828 = vsel %vm770, %v1624, 0.0
      %v1829 = vadd.f32 %v1827, %v1828
      %v1830 = vsel %vm770, %v1625, 0.0
      %v1831 = vadd.f32 %v1829, %v1830
      %v1832 = vsel %vm770, %v1626, 0.0
      %v1833 = vadd.f32 %v1831, %v1832
      %v1834 = vsel %vm770, %v1627, 0.0
      %v1835 = vadd.f32 %v1833, %v1834
      %v1836 = vsel %vm770, %v1628, 0.0
      %v1837 = vadd.f32 %v1835, %v1836
      %v1838 = vsel %vm770, %v1629, 0.0
      %v1839 = vadd.f32 %v1837, %v1838
      %v1840 = vsel %vm770, %v1630, 0.0
      %v1841 = vadd.f32 %v1839, %v1840
      %v1842 = vsel %vm770, %v1631, 0.0
      %v1843 = vadd.f32 %v1841, %v1842
      %v1844 = vsel %vm770, %v1632, 0.0
      %v1845 = vadd.f32 %v1843, %v1844
      %v1846 = vsel %vm770, %v1633, 0.0
      %v1847 = vadd.f32 %v1845, %v1846
      %v1848 = vsel %vm770, %v1634, 0.0
      %v1849 = vadd.f32 %v1847, %v1848
      %v1850 = vsel %vm770, %v1635, 0.0
      %v1851 = vadd.f32 %v1849, %v1850
      %v1852 = vsel %vm770, %v1636, 0.0
      %v1853 = vadd.f32 %v1851, %v1852
      %v1854 = vsel %vm770, %v1637, 0.0
      %v1855 = vadd.f32 %v1853, %v1854
      %v1856 = vsel %vm770, %v1638, 0.0
      %v1857 = vadd.f32 %v1855, %v1856
      %v1858 = vsel %vm770, %v1639, 0.0
      %v1859 = vadd.f32 %v1857, %v1858
      %v1860 = vsel %vm770, %v1640, 0.0
      %v1861 = vadd.f32 %v1859, %v1860
      %v1862 = vsel %vm770, %v1641, 0.0
      %v1863 = vadd.f32 %v1861, %v1862
      %v1864 = vsel %vm770, %v1642, 0.0
      %v1865 = vadd.f32 %v1863, %v1864
      %v1866 = vsel %vm770, %v1643, 0.0
      %v1867 = vadd.f32 %v1865, %v1866
      %v1868 = vrot.slane %v1867, 4
      %v1869 = vadd.f32 %v1867, %v1868
      %v1870 = vrot.slane %v1869, 2
      %v1871 = vadd.f32 %v1869, %v1870
      %v1872 = vrot.slane %v1871, 1
      %v1873 = vadd.f32 %v1871, %v1872
      %vm1874 = vcmask 57344
      %1875 = vst.msk [vmem:[%s265] sm:$0x1] %vm1874, %v1873
      %v1876 = vmul.f32 %v1612, %v1612
      %v1877 = vmul.f32 %v1613, %v1613
      %v1878 = vmul.f32 %v1614, %v1614
      %v1879 = vmul.f32 %v1615, %v1615
      %v1880 = vmul.f32 %v1616, %v1616
      %v1881 = vmul.f32 %v1617, %v1617
      %v1882 = vmul.f32 %v1618, %v1618
      %v1883 = vmul.f32 %v1619, %v1619
      %v1884 = vmul.f32 %v1620, %v1620
      %v1885 = vmul.f32 %v1621, %v1621
      %v1886 = vmul.f32 %v1622, %v1622
      %v1887 = vmul.f32 %v1623, %v1623
      %v1888 = vmul.f32 %v1624, %v1624
      %v1889 = vmul.f32 %v1625, %v1625
      %v1890 = vmul.f32 %v1626, %v1626
      %v1891 = vmul.f32 %v1627, %v1627
      %v1892 = vmul.f32 %v1628, %v1628
      %v1893 = vmul.f32 %v1629, %v1629
      %v1894 = vmul.f32 %v1630, %v1630
      %v1895 = vmul.f32 %v1631, %v1631
      %v1896 = vmul.f32 %v1632, %v1632
      %v1897 = vmul.f32 %v1633, %v1633
      %v1898 = vmul.f32 %v1634, %v1634
      %v1899 = vmul.f32 %v1635, %v1635
      %v1900 = vmul.f32 %v1636, %v1636
      %v1901 = vmul.f32 %v1637, %v1637
      %v1902 = vmul.f32 %v1638, %v1638
      %v1903 = vmul.f32 %v1639, %v1639
      %v1904 = vmul.f32 %v1640, %v1640
      %v1905 = vmul.f32 %v1641, %v1641
      %v1906 = vmul.f32 %v1642, %v1642
      %v1907 = vmul.f32 %v1643, %v1643
      %v1908 = vsel %vm770, %v1876, 0.0
      %v1909 = vsel %vm770, %v1877, 0.0
      %v1910 = vadd.f32 %v1908, %v1909
      %v1911 = vsel %vm770, %v1878, 0.0
      %v1912 = vadd.f32 %v1910, %v1911
      %v1913 = vsel %vm770, %v1879, 0.0
      %v1914 = vadd.f32 %v1912, %v1913
      %v1915 = vsel %vm770, %v1880, 0.0
      %v1916 = vadd.f32 %v1914, %v1915
      %v1917 = vsel %vm770, %v1881, 0.0
      %v1918 = vadd.f32 %v1916, %v1917
      %v1919 = vsel %vm770, %v1882, 0.0
      %v1920 = vadd.f32 %v1918, %v1919
      %v1921 = vsel %vm770, %v1883, 0.0
      %v1922 = vadd.f32 %v1920, %v1921
      %v1923 = vsel %vm770, %v1884, 0.0
      %v1924 = vadd.f32 %v1922, %v1923
      %v1925 = vsel %vm770, %v1885, 0.0
      %v1926 = vadd.f32 %v1924, %v1925
      %v1927 = vsel %vm770, %v1886, 0.0
      %v1928 = vadd.f32 %v1926, %v1927
      %v1929 = vsel %vm770, %v1887, 0.0
      %v1930 = vadd.f32 %v1928, %v1929
      %v1931 = vsel %vm770, %v1888, 0.0
      %v1932 = vadd.f32 %v1930, %v1931
      %v1933 = vsel %vm770, %v1889, 0.0
      %v1934 = vadd.f32 %v1932, %v1933
      %v1935 = vsel %vm770, %v1890, 0.0
      %v1936 = vadd.f32 %v1934, %v1935
      %v1937 = vsel %vm770, %v1891, 0.0
      %v1938 = vadd.f32 %v1936, %v1937
      %v1939 = vsel %vm770, %v1892, 0.0
      %v1940 = vadd.f32 %v1938, %v1939
      %v1941 = vsel %vm770, %v1893, 0.0
      %v1942 = vadd.f32 %v1940, %v1941
      %v1943 = vsel %vm770, %v1894, 0.0
      %v1944 = vadd.f32 %v1942, %v1943
      %v1945 = vsel %vm770, %v1895, 0.0
      %v1946 = vadd.f32 %v1944, %v1945
      %v1947 = vsel %vm770, %v1896, 0.0
      %v1948 = vadd.f32 %v1946, %v1947
      %v1949 = vsel %vm770, %v1897, 0.0
      %v1950 = vadd.f32 %v1948, %v1949
      %v1951 = vsel %vm770, %v1898, 0.0
      %v1952 = vadd.f32 %v1950, %v1951
      %v1953 = vsel %vm770, %v1899, 0.0
      %v1954 = vadd.f32 %v1952, %v1953
      %v1955 = vsel %vm770, %v1900, 0.0
      %v1956 = vadd.f32 %v1954, %v1955
      %v1957 = vsel %vm770, %v1901, 0.0
      %v1958 = vadd.f32 %v1956, %v1957
      %v1959 = vsel %vm770, %v1902, 0.0
      %v1960 = vadd.f32 %v1958, %v1959
      %v1961 = vsel %vm770, %v1903, 0.0
      %v1962 = vadd.f32 %v1960, %v1961
      %v1963 = vsel %vm770, %v1904, 0.0
      %v1964 = vadd.f32 %v1962, %v1963
      %v1965 = vsel %vm770, %v1905, 0.0
      %v1966 = vadd.f32 %v1964, %v1965
      %v1967 = vsel %vm770, %v1906, 0.0
      %v1968 = vadd.f32 %v1966, %v1967
      %v1969 = vsel %vm770, %v1907, 0.0
      %v1970 = vadd.f32 %v1968, %v1969
      %v1971 = vrot.slane %v1970, 4
      %v1972 = vadd.f32 %v1970, %v1971
      %v1973 = vrot.slane %v1972, 2
      %v1974 = vadd.f32 %v1972, %v1973
      %v1975 = vrot.slane %v1974, 1
      %v1976 = vadd.f32 %v1974, %v1975
      %1977 = vst.msk [vmem:[%s268] sm:$0x1] %vm1874, %v1976
      %p1978 = scmp.lt.s32.totalorder %s18, 1
      %s1979 = scalar_select %p1978, %s18, 1
      %s1980 = smul.addr %s1979, 32
      %s1981 = smul.addr %s1980, 4
      %s1982 = scalar_lea.vmem %s4, %s1981
      %p1983 = scmp.lt.s32.totalorder %s18, 1
      %s1984 = scalar_select %p1983, %s18, 1
      %s1985 = scalar_lea.vmem %s5, %s1984
      %p1986 = scmp.lt.s32.totalorder %s18, 1
      %s1987 = scalar_select %p1986, %s18, 1
      %s1988 = scalar_lea.vmem %s6, %s1987
      // Predicated region
      $region37: #{basic_block_forward.4} parent=35 // pred_check
        %p1989 = pneg %p125
      $region38: #{basic_block_forward.4} parent=35 // pred_check_branch
        %1991 = sbr.rel (%p1989) target = $region40
      $region39: #{basic_block_forward.4} parent=35 // pred_region
        _
      $region40: #{basic_block_forward.4} parent=35 // pred_fallthru
        _
      // Predicated region
      $region41: #{basic_block_forward.4} parent=35 // pred_check
        %p1992 = pneg %p151
      $region42: #{basic_block_forward.4} parent=35 // pred_check_branch
        %1994 = sbr.rel (%p1992) target = $region44
      $region43: #{basic_block_forward.4} parent=35 // pred_region
        _
      $region44: #{basic_block_forward.4} parent=35 // pred_fallthru
        _
      // Predicated region
      $region45: #{basic_block_forward.4} parent=35 // pred_check
        %p1995 = pneg %p177
      $region46: #{basic_block_forward.4} parent=35 // pred_check_branch
        %1997 = sbr.rel (%p1995) target = $region48
      $region47: #{basic_block_forward.4} parent=35 // pred_region
        _
      $region48: #{basic_block_forward.4} parent=35 // pred_fallthru
        _
    $region36: #{basic_block_forward.4} parent=5 // pred_fallthru
      _
    %p1998 = scmp.le.s32.totalorder 2, %s13
    // Predicated region
    $region49: #{basic_block_forward.4} parent=5 // pred_check
      %p1999 = pneg %p1998
    $region50: #{basic_block_forward.4} parent=5 // pred_check_branch
      %2001 = sbr.rel (%p1999) target = $region52
    $region51: #{basic_block_forward.4} parent=5 // pred_region
      %s2002 = ssub.s32 %s13, 2
      // Predicated region
      $region53: #{basic_block_forward.4} parent=51 // pred_check
        %p2003 = pneg %p131
      $region54: #{basic_block_forward.4} parent=51 // pred_check_branch
        %2005 = sbr.rel (%p2003) target = $region56
      $region55: #{basic_block_forward.4} parent=51 // pred_region
        %p2006 = scmp.lt.s32.totalorder %s19, 1
        %s2007 = scalar_select %p2006, %s19, 1
        %s2008 = smul.addr %s2007, 32
        %s2009 = smul.addr %s2008, 4
        %s2010 = scalar_lea.vmem %s4, %s2009
      $region56: #{basic_block_forward.4} parent=51 // pred_fallthru
        _
      // Predicated region
      $region57: #{basic_block_forward.4} parent=51 // pred_check
        %p2011 = pneg %p157
      $region58: #{basic_block_forward.4} parent=51 // pred_check_branch
        %2013 = sbr.rel (%p2011) target = $region60
      $region59: #{basic_block_forward.4} parent=51 // pred_region
        %p2014 = scmp.lt.s32.totalorder %s19, 1
        %s2015 = scalar_select %p2014, %s19, 1
        %s2016 = scalar_lea.vmem %s5, %s2015
      $region60: #{basic_block_forward.4} parent=51 // pred_fallthru
        _
      // Predicated region
      $region61: #{basic_block_forward.4} parent=51 // pred_check
        %p2017 = pneg %p183
      $region62: #{basic_block_forward.4} parent=51 // pred_check_branch
        %2019 = sbr.rel (%p2017) target = $region64
      $region63: #{basic_block_forward.4} parent=51 // pred_region
        %p2020 = scmp.lt.s32.totalorder %s19, 1
        %s2021 = scalar_select %p2020, %s19, 1
        %s2022 = scalar_lea.vmem %s6, %s2021
      $region64: #{basic_block_forward.4} parent=51 // pred_fallthru
        _
    $region52: #{basic_block_forward.4} parent=5 // pred_fallthru
      _
  $region6: #{basic_block_forward.4} parent=0 // loop_footer
    %s17 = sadd.s32 1, %s13
  $region7: #{basic_block_forward.4} parent=0 // loop_footer_branch
    %12 = sbr.rel target = $region3
  $region8: #{basic_block_forward.4} parent=0 // loop_exit
    _

</llo_original>
